<compile_context>
chip_gen: v5e
topology: v5e:2x2
jax: 0.10.0
libtpu: 0.0.40
codegen_flags: <defaults>
</compile_context>

<pallas_src>
import functools

import jax
import jax.numpy as jnp
from jax import lax
from jax.experimental import pallas as pl
from jax.experimental.pallas import tpu as pltpu


EPS = 1e-8        # the module constructs GroupNorm(1, C, eps=1e-08) explicitly
KSIZE = 5         # spp_dw[0] uses kSize=5; spp_dw[i>=1] use kSize=2*stride+1=5
PAD = (KSIZE - 1) // 2


# ---------------------------------------------------------------------------
# Fused whole-block kernel: one sample per grid step, everything in VMEM
# ---------------------------------------------------------------------------
def _block_kernel(x_ref,
                  pw_ref, pb_ref, pg_ref, pbe_ref, pa_ref,
                  dww_ref, dwb_ref, dwg_ref, dwbe_ref,
                  fg_ref, fbe_ref, fa_ref,
                  ew_ref, eb_ref, eg_ref, ebe_ref,
                  mg_ref, mbe_ref, ma_ref,
                  o_ref, pad_ref, *, depth, eps):
    l = x_ref.shape[2]
    c_int = pw_ref.shape[0]

    def group_norm(v, gamma, beta, alpha=None):
        # GroupNorm(1, C): single group over (C, L); centered (two-pass) variance.
        inv_n = 1.0 / (v.shape[0] * v.shape[1])
        mean = jnp.sum(v, keepdims=True) * inv_n              # (1, 1)
        d = v - mean
        var = jnp.sum(d * d, keepdims=True) * inv_n           # (1, 1)
        y = d * lax.rsqrt(var + eps) * gamma + beta           # gamma/beta: (C, 1)
        if alpha is not None:                                  # per-channel PReLU
            y = jnp.where(y >= 0.0, y, alpha * y)
        return y

    x = x_ref[0].astype(jnp.float32)                           # (c_skip, l)

    # ---- proj_1x1 : 1x1 conv + GroupNorm + PReLU ---------------------------
    y = jnp.dot(pw_ref[...], x, preferred_element_type=jnp.float32) + pb_ref[...]
    cur = group_norm(y, pg_ref[...], pbe_ref[...], pa_ref[...])        # (c_int, l)

    # ---- spp_dw pyramid : depthwise k=5 convs + GroupNorm (stride 1, then 2)
    feats = []
    l_in = l
    for k in range(depth):
        stride = 1 if k == 0 else 2
        # Stage the conv input zero-padded by PAD in VMEM scratch; the 5 taps are
        # then plain static slices of that buffer (no HBM tap materialization).
        pad_ref[...] = jnp.zeros_like(pad_ref)
        pad_ref[:, PAD:PAD + l_in] = cur
        wk = dww_ref[k]                                        # (KSIZE, c_int, 1)
        s = jnp.zeros((c_int, l_in), jnp.float32)
        for j in range(KSIZE):
            s = s + wk[j] * pad_ref[:, j:j + l_in]
        if stride == 2:
            # keep every second output column via an exact 0/1 selection matmul (idle MXU)
            l_out = l_in // 2
            ii = lax.broadcasted_iota(jnp.int32, (l_in, l_out), 0)
            tt = lax.broadcasted_iota(jnp.int32, (l_in, l_out), 1)
            s = jnp.dot(s, (ii == 2 * tt).astype(jnp.float32),
                        preferred_element_type=jnp.float32)
        else:
            l_out = l_in
        cur = group_norm(s + dwb_ref[k], dwg_ref[k], dwbe_ref[k])      # no activation
        feats.append(cur)
        l_in = l_out

    # ---- MERGE : nearest 2x upsample + add, bottom-up, all in VMEM ---------
    m = feats[-1]
    for k in range(depth - 2, -1, -1):
        mm = m.shape[1]
        rr = lax.broadcasted_iota(jnp.int32, (mm, 2 * mm), 0)
        cc = lax.broadcasted_iota(jnp.int32, (mm, 2 * mm), 1)
        up_mat = ((cc == 2 * rr) | (cc == 2 * rr + 1)).astype(jnp.float32)
        m = feats[k] + jnp.dot(m, up_mat, preferred_element_type=jnp.float32)

    # ---- final_norm : GroupNorm + PReLU ------------------------------------
    merged = group_norm(m, fg_ref[...], fbe_ref[...], fa_ref[...])     # (c_int, l)

    # ---- conv_1x1_exp : 1x1 conv + GroupNorm (no activation) ---------------
    e = jnp.dot(ew_ref[...], merged, preferred_element_type=jnp.float32) + eb_ref[...]
    e = group_norm(e, eg_ref[...], ebe_ref[...])                       # (c_skip, l)

    # ---- module_act : GroupNorm(expanded + x) + PReLU ----------------------
    out = group_norm(e + x, mg_ref[...], mbe_ref[...], ma_ref[...])
    o_ref[0] = out.astype(o_ref.dtype)


# ---------------------------------------------------------------------------
# Wrapper
# ---------------------------------------------------------------------------
def block_forward(x, p, *, depth=4):
    """Pallas forward of `block`.  x: (B, out_channels, L)."""
    b, c_skip, l = x.shape
    c_int = p["proj_w"].shape[0]
    assert depth >= 2 and l % (1 << (depth - 1)) == 0, \
        "L must be divisible by 2**(depth-1)"

    f32 = jnp.float32
    col = lambda v: jnp.asarray(v, f32).reshape(-1, 1)                 # (C,) -> (C, 1)

    args = (
        x,
        jnp.asarray(p["proj_w"], f32), col(p["proj_b"]), col(p["proj_g"]),
        col(p["proj_beta"]), col(p["proj_alpha"]),
        # depthwise weights with the tap index leading: (depth, KSIZE, c_int, 1)
        jnp.stack([jnp.asarray(w, f32).T[:, :, None] for w in p["dw_w"]]),
        jnp.stack([col(v) for v in p["dw_b"]]),                        # (depth, c_int, 1)
        jnp.stack([col(v) for v in p["dw_g"]]),
        jnp.stack([col(v) for v in p["dw_beta"]]),
        col(p["fin_g"]), col(p["fin_beta"]), col(p["fin_alpha"]),
        jnp.asarray(p["exp_w"], f32), col(p["exp_b"]), col(p["exp_g"]), col(p["exp_beta"]),
        col(p["mod_g"]), col(p["mod_beta"]), col(p["mod_alpha"]),
    )

    def full_spec(a):
        nd = a.ndim
        return pl.BlockSpec(a.shape, lambda bb, _n=nd: (0,) * _n)

    in_specs = [pl.BlockSpec((1, c_skip, l), lambda bb: (bb, 0, 0))]
    in_specs += [full_spec(a) for a in args[1:]]

    # Per-sample VMEM footprint (f32 words): padded tap scratch + live intermediates,
    # with ~2x headroom.  Sized explicitly so larger shapes still request enough scoped
    # VMEM on v5e while staying under v7x's 64 MiB physical VMEM.
    per_sample = c_int * (l + 2 * PAD) + 8 * c_int * l + 4 * c_skip * l
    vmem_limit = int(min(60 * 2 ** 20, max(32 * 2 ** 20, 8 * per_sample)))

    kernel = functools.partial(_block_kernel, depth=depth, eps=EPS)
    return pl.pallas_call(
        kernel,
        out_shape=jax.ShapeDtypeStruct((b, c_skip, l), x.dtype),
        grid_spec=pltpu.PrefetchScalarGridSpec(
            num_scalar_prefetch=0,
            grid=(b,),                                # one sample per grid step
            in_specs=in_specs,
            out_specs=pl.BlockSpec((1, c_skip, l), lambda bb: (bb, 0, 0)),
            scratch_shapes=[pltpu.VMEM((c_int, l + 2 * PAD), jnp.float32)],
        ),
        compiler_params=pltpu.CompilerParams(
            dimension_semantics=("parallel",),        # B>=2 keeps both v7x TCs busy
            vmem_limit_bytes=vmem_limit,
        ),
    )(*args)


# ---------------------------------------------------------------------------
# Pure-JAX reference (mirrors the PyTorch module exactly)
# ---------------------------------------------------------------------------
def _ref_gn(x, gamma, beta, eps=EPS):
    mean = jnp.mean(x, axis=(1, 2), keepdims=True)
    var = jnp.mean((x - mean) ** 2, axis=(1, 2), keepdims=True)
    return (x - mean) / jnp.sqrt(var + eps) * gamma[None, :, None] + beta[None, :, None]


def _ref_prelu(x, alpha):
    return jnp.where(x >= 0.0, x, alpha[None, :, None] * x)


def _ref_pw_conv(x, w, b):
    return jnp.einsum("oc,bcl->bol", w, x) + b[None, :, None]


def _ref_dw_conv(x, w, b, stride):
    c, k = w.shape
    y = lax.conv_general_dilated(
        x, w[:, None, :], window_strides=(stride,),
        padding=[((k - 1) // 2, (k - 1) // 2)],
        dimension_numbers=("NCH", "OIH", "NCH"), feature_group_count=c)
    return y + b[None, :, None]


def block_reference(x, p, *, depth=4):
    out1 = _ref_prelu(_ref_gn(_ref_pw_conv(x, p["proj_w"], p["proj_b"]),
                              p["proj_g"], p["proj_beta"]), p["proj_alpha"])
    feats = [_ref_gn(_ref_dw_conv(out1, p["dw_w"][0], p["dw_b"][0], 1),
                     p["dw_g"][0], p["dw_beta"][0])]
    for k in range(1, depth):
        feats.append(_ref_gn(_ref_dw_conv(feats[-1], p["dw_w"][k], p["dw_b"][k], 2),
                             p["dw_g"][k], p["dw_beta"][k]))
    for _ in range(depth - 1):
        up = jnp.repeat(feats.pop(-1), 2, axis=-1)
        feats[-1] = feats[-1] + up
    merged = _ref_prelu(_ref_gn(feats[-1], p["fin_g"], p["fin_beta"]), p["fin_alpha"])
    expanded = _ref_gn(_ref_pw_conv(merged, p["exp_w"], p["exp_b"]),
                       p["exp_g"], p["exp_beta"])
    return _ref_prelu(_ref_gn(expanded + x, p["mod_g"], p["mod_beta"]), p["mod_alpha"])


if __name__ == "__main__":
    B = 2
    C_SKIP = 16   # block(out_channels=...)  — external / skip channel count
    C_INT = 32    # block(in_channels=...)   — internal channel count
    DEPTH = 4
    L = 32        # divisible by 2**(DEPTH-1)

    root = jax.random.PRNGKey(0)
    ks = jax.random.split(root, 16)
    x = jax.random.normal(ks[0], (B, C_SKIP, L), dtype=jnp.float32)

    def _uniform(key, shape, fan_in):
        bound = 1.0 / (fan_in ** 0.5)
        return jax.random.uniform(key, shape, minval=-bound, maxval=bound, dtype=jnp.float32)

    def _affine(key, c):
        kg, kb = jax.random.split(key)
        return (1.0 + 0.1 * jax.random.normal(kg, (c,), dtype=jnp.float32),
                0.1 * jax.random.normal(kb, (c,), dtype=jnp.float32))

    p = {}
    p["proj_w"] = _uniform(ks[1], (C_INT, C_SKIP), C_SKIP)         # Conv1d(C_SKIP->C_INT, k=1)
    p["proj_b"] = _uniform(ks[2], (C_INT,), C_SKIP)
    p["proj_g"], p["proj_beta"] = _affine(ks[3], C_INT)
    p["proj_alpha"] = jnp.full((C_INT,), 0.25, dtype=jnp.float32)  # PReLU default init

    p["dw_w"], p["dw_b"], p["dw_g"], p["dw_beta"] = [], [], [], []
    dks = jax.random.split(ks[4], 3 * DEPTH)
    for i in range(DEPTH):
        p["dw_w"].append(_uniform(dks[3 * i + 0], (C_INT, 5), 5))  # depthwise: fan_in = K
        p["dw_b"].append(_uniform(dks[3 * i + 1], (C_INT,), 5))
        g, bb = _affine(dks[3 * i + 2], C_INT)
        p["dw_g"].append(g)
        p["dw_beta"].append(bb)

    p["fin_g"], p["fin_beta"] = _affine(ks[5], C_INT)
    p["fin_alpha"] = jnp.full((C_INT,), 0.25, dtype=jnp.float32)

    p["exp_w"] = _uniform(ks[6], (C_SKIP, C_INT), C_INT)           # Conv1d(C_INT->C_SKIP, k=1)
    p["exp_b"] = _uniform(ks[7], (C_SKIP,), C_INT)
    p["exp_g"], p["exp_beta"] = _affine(ks[8], C_SKIP)

    p["mod_g"], p["mod_beta"] = _affine(ks[9], C_SKIP)
    p["mod_alpha"] = jnp.full((C_SKIP,), 0.25, dtype=jnp.float32)

    fwd = jax.jit(functools.partial(block_forward, depth=DEPTH))
    out = jax.block_until_ready(fwd(x, p))

    ref = block_reference(x, p, depth=DEPTH)
    if not jnp.allclose(out, ref, atol=1e-3, rtol=1e-3):
        max_err = float(jnp.max(jnp.abs(out - ref)))
        raise AssertionError(f"Pallas block forward mismatch (max abs err = {max_err})")

    print("KERNEL_OK")
</pallas_src>

<mosaic_0001>
module attributes {stable_mosaic.version = 11 : i64} {
  func.func @_block_kernel(%arg0: i32, %arg1: memref<1x16x32xf32, #tpu.memory_space<vmem>>, %arg2: memref<32x16xf32, #tpu.memory_space<vmem>>, %arg3: memref<32x1xf32, #tpu.memory_space<vmem>>, %arg4: memref<32x1xf32, #tpu.memory_space<vmem>>, %arg5: memref<32x1xf32, #tpu.memory_space<vmem>>, %arg6: memref<32x1xf32, #tpu.memory_space<vmem>>, %arg7: memref<4x5x32x1xf32, #tpu.memory_space<vmem>>, %arg8: memref<4x32x1xf32, #tpu.memory_space<vmem>>, %arg9: memref<4x32x1xf32, #tpu.memory_space<vmem>>, %arg10: memref<4x32x1xf32, #tpu.memory_space<vmem>>, %arg11: memref<32x1xf32, #tpu.memory_space<vmem>>, %arg12: memref<32x1xf32, #tpu.memory_space<vmem>>, %arg13: memref<32x1xf32, #tpu.memory_space<vmem>>, %arg14: memref<16x32xf32, #tpu.memory_space<vmem>>, %arg15: memref<16x1xf32, #tpu.memory_space<vmem>>, %arg16: memref<16x1xf32, #tpu.memory_space<vmem>>, %arg17: memref<16x1xf32, #tpu.memory_space<vmem>>, %arg18: memref<16x1xf32, #tpu.memory_space<vmem>>, %arg19: memref<16x1xf32, #tpu.memory_space<vmem>>, %arg20: memref<16x1xf32, #tpu.memory_space<vmem>>, %arg21: memref<1x16x32xf32, #tpu.memory_space<vmem>>, %arg22: memref<32x36xf32, #tpu.memory_space<vmem>>) attributes {dimension_semantics = [#tpu.dimension_semantics<parallel>], iteration_bounds = array<i64: 2>, scalar_prefetch = 0 : i64, scratch_operands = 1 : i64, tpu.core_type = #tpu.core_type<tc>, window_params = [{transform_indices = @transform_0, window_bounds = array<i64: 1, 16, 32>}, {pipeline_mode = #tpu.pipeline_mode<synchronous>, transform_indices = @transform_1, window_bounds = array<i64: 32, 16>}, {pipeline_mode = #tpu.pipeline_mode<synchronous>, transform_indices = @transform_2, window_bounds = array<i64: 32, 1>}, {pipeline_mode = #tpu.pipeline_mode<synchronous>, transform_indices = @transform_3, window_bounds = array<i64: 32, 1>}, {pipeline_mode = #tpu.pipeline_mode<synchronous>, transform_indices = @transform_4, window_bounds = array<i64: 32, 1>}, {pipeline_mode = #tpu.pipeline_mode<synchronous>, transform_indices = @transform_5, window_bounds = array<i64: 32, 1>}, {pipeline_mode = #tpu.pipeline_mode<synchronous>, transform_indices = @transform_6, window_bounds = array<i64: 4, 5, 32, 1>}, {pipeline_mode = #tpu.pipeline_mode<synchronous>, transform_indices = @transform_7, window_bounds = array<i64: 4, 32, 1>}, {pipeline_mode = #tpu.pipeline_mode<synchronous>, transform_indices = @transform_8, window_bounds = array<i64: 4, 32, 1>}, {pipeline_mode = #tpu.pipeline_mode<synchronous>, transform_indices = @transform_9, window_bounds = array<i64: 4, 32, 1>}, {pipeline_mode = #tpu.pipeline_mode<synchronous>, transform_indices = @transform_10, window_bounds = array<i64: 32, 1>}, {pipeline_mode = #tpu.pipeline_mode<synchronous>, transform_indices = @transform_11, window_bounds = array<i64: 32, 1>}, {pipeline_mode = #tpu.pipeline_mode<synchronous>, transform_indices = @transform_12, window_bounds = array<i64: 32, 1>}, {pipeline_mode = #tpu.pipeline_mode<synchronous>, transform_indices = @transform_13, window_bounds = array<i64: 16, 32>}, {pipeline_mode = #tpu.pipeline_mode<synchronous>, transform_indices = @transform_14, window_bounds = array<i64: 16, 1>}, {pipeline_mode = #tpu.pipeline_mode<synchronous>, transform_indices = @transform_15, window_bounds = array<i64: 16, 1>}, {pipeline_mode = #tpu.pipeline_mode<synchronous>, transform_indices = @transform_16, window_bounds = array<i64: 16, 1>}, {pipeline_mode = #tpu.pipeline_mode<synchronous>, transform_indices = @transform_17, window_bounds = array<i64: 16, 1>}, {pipeline_mode = #tpu.pipeline_mode<synchronous>, transform_indices = @transform_18, window_bounds = array<i64: 16, 1>}, {pipeline_mode = #tpu.pipeline_mode<synchronous>, transform_indices = @transform_19, window_bounds = array<i64: 16, 1>}, {transform_indices = @transform_20, window_bounds = array<i64: 1, 16, 32>}]} {
    %c0 = arith.constant 0 : index
    %c0_0 = arith.constant 0 : index
    %c0_1 = arith.constant 0 : index
    %0 = vector.load %arg1[%c0, %c0_0, %c0_1] : memref<1x16x32xf32, #tpu.memory_space<vmem>>, vector<1x16x32xf32>
    %1 = vector.shape_cast %0 : vector<1x16x32xf32> to vector<16x32xf32>
    %c0_2 = arith.constant 0 : index
    %c0_3 = arith.constant 0 : index
    %2 = vector.load %arg2[%c0_2, %c0_3] : memref<32x16xf32, #tpu.memory_space<vmem>>, vector<32x16xf32>
    %cst = arith.constant dense<0.000000e+00> : vector<32x32xf32>
    %3 = tpu.matmul %2, %1, %cst {dimension_numbers = #tpu.dot_dimension_numbers<[1], [0], [0], [1], [0, 0, 1, 1], [], []>} : vector<32x16xf32>, vector<16x32xf32>, vector<32x32xf32> -> vector<32x32xf32>
    %c0_4 = arith.constant 0 : index
    %c0_5 = arith.constant 0 : index
    %4 = vector.load %arg3[%c0_4, %c0_5] : memref<32x1xf32, #tpu.memory_space<vmem>>, vector<32x1xf32>
    %5 = vector.broadcast %4 : vector<32x1xf32> to vector<32x32xf32>
    %6 = arith.addf %3, %5 : vector<32x32xf32>
    %c0_6 = arith.constant 0 : index
    %c0_7 = arith.constant 0 : index
    %7 = vector.load %arg4[%c0_6, %c0_7] : memref<32x1xf32, #tpu.memory_space<vmem>>, vector<32x1xf32>
    %c0_8 = arith.constant 0 : index
    %c0_9 = arith.constant 0 : index
    %8 = vector.load %arg5[%c0_8, %c0_9] : memref<32x1xf32, #tpu.memory_space<vmem>>, vector<32x1xf32>
    %c0_10 = arith.constant 0 : index
    %c0_11 = arith.constant 0 : index
    %9 = vector.load %arg6[%c0_10, %c0_11] : memref<32x1xf32, #tpu.memory_space<vmem>>, vector<32x1xf32>
    %10 = vector.shape_cast %6 : vector<32x32xf32> to vector<1x32x32xf32>
    %cst_12 = arith.constant dense<0.000000e+00> : vector<1xf32>
    %11 = vector.multi_reduction <add>, %10, %cst_12 [1, 2] : vector<1x32x32xf32> to vector<1xf32>
    %12 = vector.shape_cast %11 : vector<1xf32> to vector<1x1x1xf32>
    %13 = vector.extract %12[0, 0, 0] : f32 from vector<1x1x1xf32>
    %14 = vector.broadcast %13 : f32 to vector<1x1xf32>
    %cst_13 = arith.constant 9.765625E-4 : f32
    %15 = vector.broadcast %cst_13 : f32 to vector<1x1xf32>
    %16 = arith.mulf %14, %15 : vector<1x1xf32>
    %17 = vector.broadcast %16 : vector<1x1xf32> to vector<32x32xf32>
    %18 = arith.subf %6, %17 : vector<32x32xf32>
    %19 = arith.mulf %18, %18 : vector<32x32xf32>
    %20 = vector.shape_cast %19 : vector<32x32xf32> to vector<1x32x32xf32>
    %cst_14 = arith.constant dense<0.000000e+00> : vector<1xf32>
    %21 = vector.multi_reduction <add>, %20, %cst_14 [1, 2] : vector<1x32x32xf32> to vector<1xf32>
    %22 = vector.shape_cast %21 : vector<1xf32> to vector<1x1x1xf32>
    %23 = vector.extract %22[0, 0, 0] : f32 from vector<1x1x1xf32>
    %24 = vector.broadcast %23 : f32 to vector<1x1xf32>
    %cst_15 = arith.constant 9.765625E-4 : f32
    %25 = vector.broadcast %cst_15 : f32 to vector<1x1xf32>
    %26 = arith.mulf %24, %25 : vector<1x1xf32>
    %cst_16 = arith.constant 9.99999993E-9 : f32
    %27 = vector.broadcast %cst_16 : f32 to vector<1x1xf32>
    %28 = arith.addf %26, %27 : vector<1x1xf32>
    %29 = math.rsqrt %28 : vector<1x1xf32>
    %30 = vector.broadcast %29 : vector<1x1xf32> to vector<32x32xf32>
    %31 = arith.mulf %18, %30 : vector<32x32xf32>
    %32 = vector.broadcast %7 : vector<32x1xf32> to vector<32x32xf32>
    %33 = arith.mulf %31, %32 : vector<32x32xf32>
    %34 = vector.broadcast %8 : vector<32x1xf32> to vector<32x32xf32>
    %35 = arith.addf %33, %34 : vector<32x32xf32>
    %cst_17 = arith.constant 0.000000e+00 : f32
    %36 = vector.broadcast %cst_17 : f32 to vector<32x32xf32>
    %37 = arith.cmpf oge, %35, %36 : vector<32x32xf32>
    %38 = vector.broadcast %9 : vector<32x1xf32> to vector<32x32xf32>
    %39 = arith.mulf %38, %35 : vector<32x32xf32>
    %40 = arith.select %37, %35, %39 : vector<32x32xi1>, vector<32x32xf32>
    %cst_18 = arith.constant 0.000000e+00 : f32
    %41 = vector.broadcast %cst_18 : f32 to vector<32x36xf32>
    %c0_19 = arith.constant 0 : index
    %c0_20 = arith.constant 0 : index
    %42 = vector.load %arg22[%c0_19, %c0_20] : memref<32x36xf32, #tpu.memory_space<vmem>>, vector<32x36xf32>
    tpu.vector_store %arg22[%c0_19, %c0_20], %41 {strides = array<i32>} : memref<32x36xf32, #tpu.memory_space<vmem>>, vector<32x36xf32>,
    %c0_21 = arith.constant 0 : index
    %c2 = arith.constant 2 : index
    %43 = vector.load %arg22[%c0_21, %c2] : memref<32x36xf32, #tpu.memory_space<vmem>>, vector<32x32xf32>
    tpu.vector_store %arg22[%c0_21, %c2], %40 {strides = array<i32>} : memref<32x36xf32, #tpu.memory_space<vmem>>, vector<32x32xf32>,
    %c0_22 = arith.constant 0 : index
    %c0_23 = arith.constant 0 : index
    %c0_24 = arith.constant 0 : index
    %c0_25 = arith.constant 0 : index
    %44 = vector.load %arg7[%c0_22, %c0_23, %c0_24, %c0_25] : memref<4x5x32x1xf32, #tpu.memory_space<vmem>>, vector<1x5x32x1xf32>
    %45 = vector.shape_cast %44 : vector<1x5x32x1xf32> to vector<5x32x1xf32>
    %cst_26 = arith.constant 0.000000e+00 : f32
    %46 = vector.broadcast %cst_26 : f32 to vector<32x32xf32>
    %47 = vector.extract_strided_slice %45 {offsets = [0, 0, 0], sizes = [1, 32, 1], strides = [1, 1, 1]} : vector<5x32x1xf32> to vector<1x32x1xf32>
    %48 = vector.shape_cast %47 : vector<1x32x1xf32> to vector<32x1xf32>
    %c0_27 = arith.constant 0 : index
    %c0_28 = arith.constant 0 : index
    %49 = vector.load %arg22[%c0_27, %c0_28] : memref<32x36xf32, #tpu.memory_space<vmem>>, vector<32x32xf32>
    %50 = vector.broadcast %48 : vector<32x1xf32> to vector<32x32xf32>
    %51 = arith.mulf %50, %49 : vector<32x32xf32>
    %52 = arith.addf %46, %51 : vector<32x32xf32>
    %53 = vector.extract_strided_slice %45 {offsets = [1, 0, 0], sizes = [1, 32, 1], strides = [1, 1, 1]} : vector<5x32x1xf32> to vector<1x32x1xf32>
    %54 = vector.shape_cast %53 : vector<1x32x1xf32> to vector<32x1xf32>
    %c0_29 = arith.constant 0 : index
    %c1 = arith.constant 1 : index
    %55 = vector.load %arg22[%c0_29, %c1] : memref<32x36xf32, #tpu.memory_space<vmem>>, vector<32x32xf32>
    %56 = vector.broadcast %54 : vector<32x1xf32> to vector<32x32xf32>
    %57 = arith.mulf %56, %55 : vector<32x32xf32>
    %58 = arith.addf %52, %57 : vector<32x32xf32>
    %59 = vector.extract_strided_slice %45 {offsets = [2, 0, 0], sizes = [1, 32, 1], strides = [1, 1, 1]} : vector<5x32x1xf32> to vector<1x32x1xf32>
    %60 = vector.shape_cast %59 : vector<1x32x1xf32> to vector<32x1xf32>
    %c0_30 = arith.constant 0 : index
    %c2_31 = arith.constant 2 : index
    %61 = vector.load %arg22[%c0_30, %c2_31] : memref<32x36xf32, #tpu.memory_space<vmem>>, vector<32x32xf32>
    %62 = vector.broadcast %60 : vector<32x1xf32> to vector<32x32xf32>
    %63 = arith.mulf %62, %61 : vector<32x32xf32>
    %64 = arith.addf %58, %63 : vector<32x32xf32>
    %65 = vector.extract_strided_slice %45 {offsets = [3, 0, 0], sizes = [1, 32, 1], strides = [1, 1, 1]} : vector<5x32x1xf32> to vector<1x32x1xf32>
    %66 = vector.shape_cast %65 : vector<1x32x1xf32> to vector<32x1xf32>
    %c0_32 = arith.constant 0 : index
    %c3 = arith.constant 3 : index
    %67 = vector.load %arg22[%c0_32, %c3] : memref<32x36xf32, #tpu.memory_space<vmem>>, vector<32x32xf32>
    %68 = vector.broadcast %66 : vector<32x1xf32> to vector<32x32xf32>
    %69 = arith.mulf %68, %67 : vector<32x32xf32>
    %70 = arith.addf %64, %69 : vector<32x32xf32>
    %71 = vector.extract_strided_slice %45 {offsets = [4, 0, 0], sizes = [1, 32, 1], strides = [1, 1, 1]} : vector<5x32x1xf32> to vector<1x32x1xf32>
    %72 = vector.shape_cast %71 : vector<1x32x1xf32> to vector<32x1xf32>
    %c0_33 = arith.constant 0 : index
    %c4 = arith.constant 4 : index
    %73 = vector.load %arg22[%c0_33, %c4] : memref<32x36xf32, #tpu.memory_space<vmem>>, vector<32x32xf32>
    %74 = vector.broadcast %72 : vector<32x1xf32> to vector<32x32xf32>
    %75 = arith.mulf %74, %73 : vector<32x32xf32>
    %76 = arith.addf %70, %75 : vector<32x32xf32>
    %c0_34 = arith.constant 0 : index
    %c0_35 = arith.constant 0 : index
    %c0_36 = arith.constant 0 : index
    %77 = vector.load %arg8[%c0_34, %c0_35, %c0_36] : memref<4x32x1xf32, #tpu.memory_space<vmem>>, vector<1x32x1xf32>
    %78 = vector.shape_cast %77 : vector<1x32x1xf32> to vector<32x1xf32>
    %79 = vector.broadcast %78 : vector<32x1xf32> to vector<32x32xf32>
    %80 = arith.addf %76, %79 : vector<32x32xf32>
    %c0_37 = arith.constant 0 : index
    %c0_38 = arith.constant 0 : index
    %c0_39 = arith.constant 0 : index
    %81 = vector.load %arg9[%c0_37, %c0_38, %c0_39] : memref<4x32x1xf32, #tpu.memory_space<vmem>>, vector<1x32x1xf32>
    %82 = vector.shape_cast %81 : vector<1x32x1xf32> to vector<32x1xf32>
    %c0_40 = arith.constant 0 : index
    %c0_41 = arith.constant 0 : index
    %c0_42 = arith.constant 0 : index
    %83 = vector.load %arg10[%c0_40, %c0_41, %c0_42] : memref<4x32x1xf32, #tpu.memory_space<vmem>>, vector<1x32x1xf32>
    %84 = vector.shape_cast %83 : vector<1x32x1xf32> to vector<32x1xf32>
    %85 = vector.shape_cast %80 : vector<32x32xf32> to vector<1x32x32xf32>
    %cst_43 = arith.constant dense<0.000000e+00> : vector<1xf32>
    %86 = vector.multi_reduction <add>, %85, %cst_43 [1, 2] : vector<1x32x32xf32> to vector<1xf32>
    %87 = vector.shape_cast %86 : vector<1xf32> to vector<1x1x1xf32>
    %88 = vector.extract %87[0, 0, 0] : f32 from vector<1x1x1xf32>
    %89 = vector.broadcast %88 : f32 to vector<1x1xf32>
    %cst_44 = arith.constant 9.765625E-4 : f32
    %90 = vector.broadcast %cst_44 : f32 to vector<1x1xf32>
    %91 = arith.mulf %89, %90 : vector<1x1xf32>
    %92 = vector.broadcast %91 : vector<1x1xf32> to vector<32x32xf32>
    %93 = arith.subf %80, %92 : vector<32x32xf32>
    %94 = arith.mulf %93, %93 : vector<32x32xf32>
    %95 = vector.shape_cast %94 : vector<32x32xf32> to vector<1x32x32xf32>
    %cst_45 = arith.constant dense<0.000000e+00> : vector<1xf32>
    %96 = vector.multi_reduction <add>, %95, %cst_45 [1, 2] : vector<1x32x32xf32> to vector<1xf32>
    %97 = vector.shape_cast %96 : vector<1xf32> to vector<1x1x1xf32>
    %98 = vector.extract %97[0, 0, 0] : f32 from vector<1x1x1xf32>
    %99 = vector.broadcast %98 : f32 to vector<1x1xf32>
    %cst_46 = arith.constant 9.765625E-4 : f32
    %100 = vector.broadcast %cst_46 : f32 to vector<1x1xf32>
    %101 = arith.mulf %99, %100 : vector<1x1xf32>
    %cst_47 = arith.constant 9.99999993E-9 : f32
    %102 = vector.broadcast %cst_47 : f32 to vector<1x1xf32>
    %103 = arith.addf %101, %102 : vector<1x1xf32>
    %104 = math.rsqrt %103 : vector<1x1xf32>
    %105 = vector.broadcast %104 : vector<1x1xf32> to vector<32x32xf32>
    %106 = arith.mulf %93, %105 : vector<32x32xf32>
    %107 = vector.broadcast %82 : vector<32x1xf32> to vector<32x32xf32>
    %108 = arith.mulf %106, %107 : vector<32x32xf32>
    %109 = vector.broadcast %84 : vector<32x1xf32> to vector<32x32xf32>
    %110 = arith.addf %108, %109 : vector<32x32xf32>
    %cst_48 = arith.constant 0.000000e+00 : f32
    %111 = vector.broadcast %cst_48 : f32 to vector<32x36xf32>
    %c0_49 = arith.constant 0 : index
    %c0_50 = arith.constant 0 : index
    %112 = vector.load %arg22[%c0_49, %c0_50] : memref<32x36xf32, #tpu.memory_space<vmem>>, vector<32x36xf32>
    tpu.vector_store %arg22[%c0_49, %c0_50], %111 {strides = array<i32>} : memref<32x36xf32, #tpu.memory_space<vmem>>, vector<32x36xf32>,
    %c0_51 = arith.constant 0 : index
    %c2_52 = arith.constant 2 : index
    %113 = vector.load %arg22[%c0_51, %c2_52] : memref<32x36xf32, #tpu.memory_space<vmem>>, vector<32x32xf32>
    tpu.vector_store %arg22[%c0_51, %c2_52], %110 {strides = array<i32>} : memref<32x36xf32, #tpu.memory_space<vmem>>, vector<32x32xf32>,
    %c1_53 = arith.constant 1 : index
    %c0_54 = arith.constant 0 : index
    %c0_55 = arith.constant 0 : index
    %c0_56 = arith.constant 0 : index
    %114 = vector.load %arg7[%c1_53, %c0_54, %c0_55, %c0_56] : memref<4x5x32x1xf32, #tpu.memory_space<vmem>>, vector<1x5x32x1xf32>
    %115 = vector.shape_cast %114 : vector<1x5x32x1xf32> to vector<5x32x1xf32>
    %cst_57 = arith.constant 0.000000e+00 : f32
    %116 = vector.broadcast %cst_57 : f32 to vector<32x32xf32>
    %117 = vector.extract_strided_slice %115 {offsets = [0, 0, 0], sizes = [1, 32, 1], strides = [1, 1, 1]} : vector<5x32x1xf32> to vector<1x32x1xf32>
    %118 = vector.shape_cast %117 : vector<1x32x1xf32> to vector<32x1xf32>
    %c0_58 = arith.constant 0 : index
    %c0_59 = arith.constant 0 : index
    %119 = vector.load %arg22[%c0_58, %c0_59] : memref<32x36xf32, #tpu.memory_space<vmem>>, vector<32x32xf32>
    %120 = vector.broadcast %118 : vector<32x1xf32> to vector<32x32xf32>
    %121 = arith.mulf %120, %119 : vector<32x32xf32>
    %122 = arith.addf %116, %121 : vector<32x32xf32>
    %123 = vector.extract_strided_slice %115 {offsets = [1, 0, 0], sizes = [1, 32, 1], strides = [1, 1, 1]} : vector<5x32x1xf32> to vector<1x32x1xf32>
    %124 = vector.shape_cast %123 : vector<1x32x1xf32> to vector<32x1xf32>
    %c0_60 = arith.constant 0 : index
    %c1_61 = arith.constant 1 : index
    %125 = vector.load %arg22[%c0_60, %c1_61] : memref<32x36xf32, #tpu.memory_space<vmem>>, vector<32x32xf32>
    %126 = vector.broadcast %124 : vector<32x1xf32> to vector<32x32xf32>
    %127 = arith.mulf %126, %125 : vector<32x32xf32>
    %128 = arith.addf %122, %127 : vector<32x32xf32>
    %129 = vector.extract_strided_slice %115 {offsets = [2, 0, 0], sizes = [1, 32, 1], strides = [1, 1, 1]} : vector<5x32x1xf32> to vector<1x32x1xf32>
    %130 = vector.shape_cast %129 : vector<1x32x1xf32> to vector<32x1xf32>
    %c0_62 = arith.constant 0 : index
    %c2_63 = arith.constant 2 : index
    %131 = vector.load %arg22[%c0_62, %c2_63] : memref<32x36xf32, #tpu.memory_space<vmem>>, vector<32x32xf32>
    %132 = vector.broadcast %130 : vector<32x1xf32> to vector<32x32xf32>
    %133 = arith.mulf %132, %131 : vector<32x32xf32>
    %134 = arith.addf %128, %133 : vector<32x32xf32>
    %135 = vector.extract_strided_slice %115 {offsets = [3, 0, 0], sizes = [1, 32, 1], strides = [1, 1, 1]} : vector<5x32x1xf32> to vector<1x32x1xf32>
    %136 = vector.shape_cast %135 : vector<1x32x1xf32> to vector<32x1xf32>
    %c0_64 = arith.constant 0 : index
    %c3_65 = arith.constant 3 : index
    %137 = vector.load %arg22[%c0_64, %c3_65] : memref<32x36xf32, #tpu.memory_space<vmem>>, vector<32x32xf32>
    %138 = vector.broadcast %136 : vector<32x1xf32> to vector<32x32xf32>
    %139 = arith.mulf %138, %137 : vector<32x32xf32>
    %140 = arith.addf %134, %139 : vector<32x32xf32>
    %141 = vector.extract_strided_slice %115 {offsets = [4, 0, 0], sizes = [1, 32, 1], strides = [1, 1, 1]} : vector<5x32x1xf32> to vector<1x32x1xf32>
    %142 = vector.shape_cast %141 : vector<1x32x1xf32> to vector<32x1xf32>
    %c0_66 = arith.constant 0 : index
    %c4_67 = arith.constant 4 : index
    %143 = vector.load %arg22[%c0_66, %c4_67] : memref<32x36xf32, #tpu.memory_space<vmem>>, vector<32x32xf32>
    %144 = vector.broadcast %142 : vector<32x1xf32> to vector<32x32xf32>
    %145 = arith.mulf %144, %143 : vector<32x32xf32>
    %146 = arith.addf %140, %145 : vector<32x32xf32>
    %147 = tpu.iota {dimensions = array<i32: 0>} : vector<32x16xi32>
    %148 = tpu.iota {dimensions = array<i32: 1>} : vector<32x16xi32>
    %c2_i32 = arith.constant 2 : i32
    %149 = vector.broadcast %c2_i32 : i32 to vector<32x16xi32>
    %150 = arith.muli %149, %148 : vector<32x16xi32>
    %151 = arith.cmpi eq, %147, %150 : vector<32x16xi32>
    %152 = arith.extui %151 : vector<32x16xi1> to vector<32x16xi32>
    %153 = arith.sitofp %152 : vector<32x16xi32> to vector<32x16xf32>
    %cst_68 = arith.constant dense<0.000000e+00> : vector<32x16xf32>
    %154 = tpu.matmul %146, %153, %cst_68 {dimension_numbers = #tpu.dot_dimension_numbers<[1], [0], [0], [1], [0, 0, 1, 1], [], []>} : vector<32x32xf32>, vector<32x16xf32>, vector<32x16xf32> -> vector<32x16xf32>
    %c1_69 = arith.constant 1 : index
    %c0_70 = arith.constant 0 : index
    %c0_71 = arith.constant 0 : index
    %155 = vector.load %arg8[%c1_69, %c0_70, %c0_71] : memref<4x32x1xf32, #tpu.memory_space<vmem>>, vector<1x32x1xf32>
    %156 = vector.shape_cast %155 : vector<1x32x1xf32> to vector<32x1xf32>
    %157 = vector.broadcast %156 : vector<32x1xf32> to vector<32x16xf32>
    %158 = arith.addf %154, %157 : vector<32x16xf32>
    %c1_72 = arith.constant 1 : index
    %c0_73 = arith.constant 0 : index
    %c0_74 = arith.constant 0 : index
    %159 = vector.load %arg9[%c1_72, %c0_73, %c0_74] : memref<4x32x1xf32, #tpu.memory_space<vmem>>, vector<1x32x1xf32>
    %160 = vector.shape_cast %159 : vector<1x32x1xf32> to vector<32x1xf32>
    %c1_75 = arith.constant 1 : index
    %c0_76 = arith.constant 0 : index
    %c0_77 = arith.constant 0 : index
    %161 = vector.load %arg10[%c1_75, %c0_76, %c0_77] : memref<4x32x1xf32, #tpu.memory_space<vmem>>, vector<1x32x1xf32>
    %162 = vector.shape_cast %161 : vector<1x32x1xf32> to vector<32x1xf32>
    %163 = vector.shape_cast %158 : vector<32x16xf32> to vector<1x32x16xf32>
    %cst_78 = arith.constant dense<0.000000e+00> : vector<1xf32>
    %164 = vector.multi_reduction <add>, %163, %cst_78 [1, 2] : vector<1x32x16xf32> to vector<1xf32>
    %165 = vector.shape_cast %164 : vector<1xf32> to vector<1x1x1xf32>
    %166 = vector.extract %165[0, 0, 0] : f32 from vector<1x1x1xf32>
    %167 = vector.broadcast %166 : f32 to vector<1x1xf32>
    %cst_79 = arith.constant 0.001953125 : f32
    %168 = vector.broadcast %cst_79 : f32 to vector<1x1xf32>
    %169 = arith.mulf %167, %168 : vector<1x1xf32>
    %170 = vector.broadcast %169 : vector<1x1xf32> to vector<32x16xf32>
    %171 = arith.subf %158, %170 : vector<32x16xf32>
    %172 = arith.mulf %171, %171 : vector<32x16xf32>
    %173 = vector.shape_cast %172 : vector<32x16xf32> to vector<1x32x16xf32>
    %cst_80 = arith.constant dense<0.000000e+00> : vector<1xf32>
    %174 = vector.multi_reduction <add>, %173, %cst_80 [1, 2] : vector<1x32x16xf32> to vector<1xf32>
    %175 = vector.shape_cast %174 : vector<1xf32> to vector<1x1x1xf32>
    %176 = vector.extract %175[0, 0, 0] : f32 from vector<1x1x1xf32>
    %177 = vector.broadcast %176 : f32 to vector<1x1xf32>
    %cst_81 = arith.constant 0.001953125 : f32
    %178 = vector.broadcast %cst_81 : f32 to vector<1x1xf32>
    %179 = arith.mulf %177, %178 : vector<1x1xf32>
    %cst_82 = arith.constant 9.99999993E-9 : f32
    %180 = vector.broadcast %cst_82 : f32 to vector<1x1xf32>
    %181 = arith.addf %179, %180 : vector<1x1xf32>
    %182 = math.rsqrt %181 : vector<1x1xf32>
    %183 = vector.broadcast %182 : vector<1x1xf32> to vector<32x16xf32>
    %184 = arith.mulf %171, %183 : vector<32x16xf32>
    %185 = vector.broadcast %160 : vector<32x1xf32> to vector<32x16xf32>
    %186 = arith.mulf %184, %185 : vector<32x16xf32>
    %187 = vector.broadcast %162 : vector<32x1xf32> to vector<32x16xf32>
    %188 = arith.addf %186, %187 : vector<32x16xf32>
    %cst_83 = arith.constant 0.000000e+00 : f32
    %189 = vector.broadcast %cst_83 : f32 to vector<32x36xf32>
    %c0_84 = arith.constant 0 : index
    %c0_85 = arith.constant 0 : index
    %190 = vector.load %arg22[%c0_84, %c0_85] : memref<32x36xf32, #tpu.memory_space<vmem>>, vector<32x36xf32>
    tpu.vector_store %arg22[%c0_84, %c0_85], %189 {strides = array<i32>} : memref<32x36xf32, #tpu.memory_space<vmem>>, vector<32x36xf32>,
    %c0_86 = arith.constant 0 : index
    %c2_87 = arith.constant 2 : index
    %191 = vector.load %arg22[%c0_86, %c2_87] : memref<32x36xf32, #tpu.memory_space<vmem>>, vector<32x16xf32>
    tpu.vector_store %arg22[%c0_86, %c2_87], %188 {strides = array<i32>} : memref<32x36xf32, #tpu.memory_space<vmem>>, vector<32x16xf32>,
    %c2_88 = arith.constant 2 : index
    %c0_89 = arith.constant 0 : index
    %c0_90 = arith.constant 0 : index
    %c0_91 = arith.constant 0 : index
    %192 = vector.load %arg7[%c2_88, %c0_89, %c0_90, %c0_91] : memref<4x5x32x1xf32, #tpu.memory_space<vmem>>, vector<1x5x32x1xf32>
    %193 = vector.shape_cast %192 : vector<1x5x32x1xf32> to vector<5x32x1xf32>
    %cst_92 = arith.constant 0.000000e+00 : f32
    %194 = vector.broadcast %cst_92 : f32 to vector<32x16xf32>
    %195 = vector.extract_strided_slice %193 {offsets = [0, 0, 0], sizes = [1, 32, 1], strides = [1, 1, 1]} : vector<5x32x1xf32> to vector<1x32x1xf32>
    %196 = vector.shape_cast %195 : vector<1x32x1xf32> to vector<32x1xf32>
    %c0_93 = arith.constant 0 : index
    %c0_94 = arith.constant 0 : index
    %197 = vector.load %arg22[%c0_93, %c0_94] : memref<32x36xf32, #tpu.memory_space<vmem>>, vector<32x16xf32>
    %198 = vector.broadcast %196 : vector<32x1xf32> to vector<32x16xf32>
    %199 = arith.mulf %198, %197 : vector<32x16xf32>
    %200 = arith.addf %194, %199 : vector<32x16xf32>
    %201 = vector.extract_strided_slice %193 {offsets = [1, 0, 0], sizes = [1, 32, 1], strides = [1, 1, 1]} : vector<5x32x1xf32> to vector<1x32x1xf32>
    %202 = vector.shape_cast %201 : vector<1x32x1xf32> to vector<32x1xf32>
    %c0_95 = arith.constant 0 : index
    %c1_96 = arith.constant 1 : index
    %203 = vector.load %arg22[%c0_95, %c1_96] : memref<32x36xf32, #tpu.memory_space<vmem>>, vector<32x16xf32>
    %204 = vector.broadcast %202 : vector<32x1xf32> to vector<32x16xf32>
    %205 = arith.mulf %204, %203 : vector<32x16xf32>
    %206 = arith.addf %200, %205 : vector<32x16xf32>
    %207 = vector.extract_strided_slice %193 {offsets = [2, 0, 0], sizes = [1, 32, 1], strides = [1, 1, 1]} : vector<5x32x1xf32> to vector<1x32x1xf32>
    %208 = vector.shape_cast %207 : vector<1x32x1xf32> to vector<32x1xf32>
    %c0_97 = arith.constant 0 : index
    %c2_98 = arith.constant 2 : index
    %209 = vector.load %arg22[%c0_97, %c2_98] : memref<32x36xf32, #tpu.memory_space<vmem>>, vector<32x16xf32>
    %210 = vector.broadcast %208 : vector<32x1xf32> to vector<32x16xf32>
    %211 = arith.mulf %210, %209 : vector<32x16xf32>
    %212 = arith.addf %206, %211 : vector<32x16xf32>
    %213 = vector.extract_strided_slice %193 {offsets = [3, 0, 0], sizes = [1, 32, 1], strides = [1, 1, 1]} : vector<5x32x1xf32> to vector<1x32x1xf32>
    %214 = vector.shape_cast %213 : vector<1x32x1xf32> to vector<32x1xf32>
    %c0_99 = arith.constant 0 : index
    %c3_100 = arith.constant 3 : index
    %215 = vector.load %arg22[%c0_99, %c3_100] : memref<32x36xf32, #tpu.memory_space<vmem>>, vector<32x16xf32>
    %216 = vector.broadcast %214 : vector<32x1xf32> to vector<32x16xf32>
    %217 = arith.mulf %216, %215 : vector<32x16xf32>
    %218 = arith.addf %212, %217 : vector<32x16xf32>
    %219 = vector.extract_strided_slice %193 {offsets = [4, 0, 0], sizes = [1, 32, 1], strides = [1, 1, 1]} : vector<5x32x1xf32> to vector<1x32x1xf32>
    %220 = vector.shape_cast %219 : vector<1x32x1xf32> to vector<32x1xf32>
    %c0_101 = arith.constant 0 : index
    %c4_102 = arith.constant 4 : index
    %221 = vector.load %arg22[%c0_101, %c4_102] : memref<32x36xf32, #tpu.memory_space<vmem>>, vector<32x16xf32>
    %222 = vector.broadcast %220 : vector<32x1xf32> to vector<32x16xf32>
    %223 = arith.mulf %222, %221 : vector<32x16xf32>
    %224 = arith.addf %218, %223 : vector<32x16xf32>
    %225 = tpu.iota {dimensions = array<i32: 0>} : vector<16x8xi32>
    %226 = tpu.iota {dimensions = array<i32: 1>} : vector<16x8xi32>
    %c2_i32_103 = arith.constant 2 : i32
    %227 = vector.broadcast %c2_i32_103 : i32 to vector<16x8xi32>
    %228 = arith.muli %227, %226 : vector<16x8xi32>
    %229 = arith.cmpi eq, %225, %228 : vector<16x8xi32>
    %230 = arith.extui %229 : vector<16x8xi1> to vector<16x8xi32>
    %231 = arith.sitofp %230 : vector<16x8xi32> to vector<16x8xf32>
    %cst_104 = arith.constant dense<0.000000e+00> : vector<32x8xf32>
    %232 = tpu.matmul %224, %231, %cst_104 {dimension_numbers = #tpu.dot_dimension_numbers<[1], [0], [0], [1], [0, 0, 1, 1], [], []>} : vector<32x16xf32>, vector<16x8xf32>, vector<32x8xf32> -> vector<32x8xf32>
    %c2_105 = arith.constant 2 : index
    %c0_106 = arith.constant 0 : index
    %c0_107 = arith.constant 0 : index
    %233 = vector.load %arg8[%c2_105, %c0_106, %c0_107] : memref<4x32x1xf32, #tpu.memory_space<vmem>>, vector<1x32x1xf32>
    %234 = vector.shape_cast %233 : vector<1x32x1xf32> to vector<32x1xf32>
    %235 = vector.broadcast %234 : vector<32x1xf32> to vector<32x8xf32>
    %236 = arith.addf %232, %235 : vector<32x8xf32>
    %c2_108 = arith.constant 2 : index
    %c0_109 = arith.constant 0 : index
    %c0_110 = arith.constant 0 : index
    %237 = vector.load %arg9[%c2_108, %c0_109, %c0_110] : memref<4x32x1xf32, #tpu.memory_space<vmem>>, vector<1x32x1xf32>
    %238 = vector.shape_cast %237 : vector<1x32x1xf32> to vector<32x1xf32>
    %c2_111 = arith.constant 2 : index
    %c0_112 = arith.constant 0 : index
    %c0_113 = arith.constant 0 : index
    %239 = vector.load %arg10[%c2_111, %c0_112, %c0_113] : memref<4x32x1xf32, #tpu.memory_space<vmem>>, vector<1x32x1xf32>
    %240 = vector.shape_cast %239 : vector<1x32x1xf32> to vector<32x1xf32>
    %241 = vector.shape_cast %236 : vector<32x8xf32> to vector<1x32x8xf32>
    %cst_114 = arith.constant dense<0.000000e+00> : vector<1xf32>
    %242 = vector.multi_reduction <add>, %241, %cst_114 [1, 2] : vector<1x32x8xf32> to vector<1xf32>
    %243 = vector.shape_cast %242 : vector<1xf32> to vector<1x1x1xf32>
    %244 = vector.extract %243[0, 0, 0] : f32 from vector<1x1x1xf32>
    %245 = vector.broadcast %244 : f32 to vector<1x1xf32>
    %cst_115 = arith.constant 3.906250e-03 : f32
    %246 = vector.broadcast %cst_115 : f32 to vector<1x1xf32>
    %247 = arith.mulf %245, %246 : vector<1x1xf32>
    %248 = vector.broadcast %247 : vector<1x1xf32> to vector<32x8xf32>
    %249 = arith.subf %236, %248 : vector<32x8xf32>
    %250 = arith.mulf %249, %249 : vector<32x8xf32>
    %251 = vector.shape_cast %250 : vector<32x8xf32> to vector<1x32x8xf32>
    %cst_116 = arith.constant dense<0.000000e+00> : vector<1xf32>
    %252 = vector.multi_reduction <add>, %251, %cst_116 [1, 2] : vector<1x32x8xf32> to vector<1xf32>
    %253 = vector.shape_cast %252 : vector<1xf32> to vector<1x1x1xf32>
    %254 = vector.extract %253[0, 0, 0] : f32 from vector<1x1x1xf32>
    %255 = vector.broadcast %254 : f32 to vector<1x1xf32>
    %cst_117 = arith.constant 3.906250e-03 : f32
    %256 = vector.broadcast %cst_117 : f32 to vector<1x1xf32>
    %257 = arith.mulf %255, %256 : vector<1x1xf32>
    %cst_118 = arith.constant 9.99999993E-9 : f32
    %258 = vector.broadcast %cst_118 : f32 to vector<1x1xf32>
    %259 = arith.addf %257, %258 : vector<1x1xf32>
    %260 = math.rsqrt %259 : vector<1x1xf32>
    %261 = vector.broadcast %260 : vector<1x1xf32> to vector<32x8xf32>
    %262 = arith.mulf %249, %261 : vector<32x8xf32>
    %263 = vector.broadcast %238 : vector<32x1xf32> to vector<32x8xf32>
    %264 = arith.mulf %262, %263 : vector<32x8xf32>
    %265 = vector.broadcast %240 : vector<32x1xf32> to vector<32x8xf32>
    %266 = arith.addf %264, %265 : vector<32x8xf32>
    %cst_119 = arith.constant 0.000000e+00 : f32
    %267 = vector.broadcast %cst_119 : f32 to vector<32x36xf32>
    %c0_120 = arith.constant 0 : index
    %c0_121 = arith.constant 0 : index
    %268 = vector.load %arg22[%c0_120, %c0_121] : memref<32x36xf32, #tpu.memory_space<vmem>>, vector<32x36xf32>
    tpu.vector_store %arg22[%c0_120, %c0_121], %267 {strides = array<i32>} : memref<32x36xf32, #tpu.memory_space<vmem>>, vector<32x36xf32>,
    %c0_122 = arith.constant 0 : index
    %c2_123 = arith.constant 2 : index
    %269 = vector.load %arg22[%c0_122, %c2_123] : memref<32x36xf32, #tpu.memory_space<vmem>>, vector<32x8xf32>
    tpu.vector_store %arg22[%c0_122, %c2_123], %266 {strides = array<i32>} : memref<32x36xf32, #tpu.memory_space<vmem>>, vector<32x8xf32>,
    %c3_124 = arith.constant 3 : index
    %c0_125 = arith.constant 0 : index
    %c0_126 = arith.constant 0 : index
    %c0_127 = arith.constant 0 : index
    %270 = vector.load %arg7[%c3_124, %c0_125, %c0_126, %c0_127] : memref<4x5x32x1xf32, #tpu.memory_space<vmem>>, vector<1x5x32x1xf32>
    %271 = vector.shape_cast %270 : vector<1x5x32x1xf32> to vector<5x32x1xf32>
    %cst_128 = arith.constant 0.000000e+00 : f32
    %272 = vector.broadcast %cst_128 : f32 to vector<32x8xf32>
    %273 = vector.extract_strided_slice %271 {offsets = [0, 0, 0], sizes = [1, 32, 1], strides = [1, 1, 1]} : vector<5x32x1xf32> to vector<1x32x1xf32>
    %274 = vector.shape_cast %273 : vector<1x32x1xf32> to vector<32x1xf32>
    %c0_129 = arith.constant 0 : index
    %c0_130 = arith.constant 0 : index
    %275 = vector.load %arg22[%c0_129, %c0_130] : memref<32x36xf32, #tpu.memory_space<vmem>>, vector<32x8xf32>
    %276 = vector.broadcast %274 : vector<32x1xf32> to vector<32x8xf32>
    %277 = arith.mulf %276, %275 : vector<32x8xf32>
    %278 = arith.addf %272, %277 : vector<32x8xf32>
    %279 = vector.extract_strided_slice %271 {offsets = [1, 0, 0], sizes = [1, 32, 1], strides = [1, 1, 1]} : vector<5x32x1xf32> to vector<1x32x1xf32>
    %280 = vector.shape_cast %279 : vector<1x32x1xf32> to vector<32x1xf32>
    %c0_131 = arith.constant 0 : index
    %c1_132 = arith.constant 1 : index
    %281 = vector.load %arg22[%c0_131, %c1_132] : memref<32x36xf32, #tpu.memory_space<vmem>>, vector<32x8xf32>
    %282 = vector.broadcast %280 : vector<32x1xf32> to vector<32x8xf32>
    %283 = arith.mulf %282, %281 : vector<32x8xf32>
    %284 = arith.addf %278, %283 : vector<32x8xf32>
    %285 = vector.extract_strided_slice %271 {offsets = [2, 0, 0], sizes = [1, 32, 1], strides = [1, 1, 1]} : vector<5x32x1xf32> to vector<1x32x1xf32>
    %286 = vector.shape_cast %285 : vector<1x32x1xf32> to vector<32x1xf32>
    %c0_133 = arith.constant 0 : index
    %c2_134 = arith.constant 2 : index
    %287 = vector.load %arg22[%c0_133, %c2_134] : memref<32x36xf32, #tpu.memory_space<vmem>>, vector<32x8xf32>
    %288 = vector.broadcast %286 : vector<32x1xf32> to vector<32x8xf32>
    %289 = arith.mulf %288, %287 : vector<32x8xf32>
    %290 = arith.addf %284, %289 : vector<32x8xf32>
    %291 = vector.extract_strided_slice %271 {offsets = [3, 0, 0], sizes = [1, 32, 1], strides = [1, 1, 1]} : vector<5x32x1xf32> to vector<1x32x1xf32>
    %292 = vector.shape_cast %291 : vector<1x32x1xf32> to vector<32x1xf32>
    %c0_135 = arith.constant 0 : index
    %c3_136 = arith.constant 3 : index
    %293 = vector.load %arg22[%c0_135, %c3_136] : memref<32x36xf32, #tpu.memory_space<vmem>>, vector<32x8xf32>
    %294 = vector.broadcast %292 : vector<32x1xf32> to vector<32x8xf32>
    %295 = arith.mulf %294, %293 : vector<32x8xf32>
    %296 = arith.addf %290, %295 : vector<32x8xf32>
    %297 = vector.extract_strided_slice %271 {offsets = [4, 0, 0], sizes = [1, 32, 1], strides = [1, 1, 1]} : vector<5x32x1xf32> to vector<1x32x1xf32>
    %298 = vector.shape_cast %297 : vector<1x32x1xf32> to vector<32x1xf32>
    %c0_137 = arith.constant 0 : index
    %c4_138 = arith.constant 4 : index
    %299 = vector.load %arg22[%c0_137, %c4_138] : memref<32x36xf32, #tpu.memory_space<vmem>>, vector<32x8xf32>
    %300 = vector.broadcast %298 : vector<32x1xf32> to vector<32x8xf32>
    %301 = arith.mulf %300, %299 : vector<32x8xf32>
    %302 = arith.addf %296, %301 : vector<32x8xf32>
    %303 = tpu.iota {dimensions = array<i32: 0>} : vector<8x4xi32>
    %304 = tpu.iota {dimensions = array<i32: 1>} : vector<8x4xi32>
    %c2_i32_139 = arith.constant 2 : i32
    %305 = vector.broadcast %c2_i32_139 : i32 to vector<8x4xi32>
    %306 = arith.muli %305, %304 : vector<8x4xi32>
    %307 = arith.cmpi eq, %303, %306 : vector<8x4xi32>
    %308 = arith.extui %307 : vector<8x4xi1> to vector<8x4xi32>
    %309 = arith.sitofp %308 : vector<8x4xi32> to vector<8x4xf32>
    %cst_140 = arith.constant dense<0.000000e+00> : vector<32x4xf32>
    %310 = tpu.matmul %302, %309, %cst_140 {dimension_numbers = #tpu.dot_dimension_numbers<[1], [0], [0], [1], [0, 0, 1, 1], [], []>} : vector<32x8xf32>, vector<8x4xf32>, vector<32x4xf32> -> vector<32x4xf32>
    %c3_141 = arith.constant 3 : index
    %c0_142 = arith.constant 0 : index
    %c0_143 = arith.constant 0 : index
    %311 = vector.load %arg8[%c3_141, %c0_142, %c0_143] : memref<4x32x1xf32, #tpu.memory_space<vmem>>, vector<1x32x1xf32>
    %312 = vector.shape_cast %311 : vector<1x32x1xf32> to vector<32x1xf32>
    %313 = vector.broadcast %312 : vector<32x1xf32> to vector<32x4xf32>
    %314 = arith.addf %310, %313 : vector<32x4xf32>
    %c3_144 = arith.constant 3 : index
    %c0_145 = arith.constant 0 : index
    %c0_146 = arith.constant 0 : index
    %315 = vector.load %arg9[%c3_144, %c0_145, %c0_146] : memref<4x32x1xf32, #tpu.memory_space<vmem>>, vector<1x32x1xf32>
    %316 = vector.shape_cast %315 : vector<1x32x1xf32> to vector<32x1xf32>
    %c3_147 = arith.constant 3 : index
    %c0_148 = arith.constant 0 : index
    %c0_149 = arith.constant 0 : index
    %317 = vector.load %arg10[%c3_147, %c0_148, %c0_149] : memref<4x32x1xf32, #tpu.memory_space<vmem>>, vector<1x32x1xf32>
    %318 = vector.shape_cast %317 : vector<1x32x1xf32> to vector<32x1xf32>
    %319 = vector.shape_cast %314 : vector<32x4xf32> to vector<1x32x4xf32>
    %cst_150 = arith.constant dense<0.000000e+00> : vector<1xf32>
    %320 = vector.multi_reduction <add>, %319, %cst_150 [1, 2] : vector<1x32x4xf32> to vector<1xf32>
    %321 = vector.shape_cast %320 : vector<1xf32> to vector<1x1x1xf32>
    %322 = vector.extract %321[0, 0, 0] : f32 from vector<1x1x1xf32>
    %323 = vector.broadcast %322 : f32 to vector<1x1xf32>
    %cst_151 = arith.constant 7.812500e-03 : f32
    %324 = vector.broadcast %cst_151 : f32 to vector<1x1xf32>
    %325 = arith.mulf %323, %324 : vector<1x1xf32>
    %326 = vector.broadcast %325 : vector<1x1xf32> to vector<32x4xf32>
    %327 = arith.subf %314, %326 : vector<32x4xf32>
    %328 = arith.mulf %327, %327 : vector<32x4xf32>
    %329 = vector.shape_cast %328 : vector<32x4xf32> to vector<1x32x4xf32>
    %cst_152 = arith.constant dense<0.000000e+00> : vector<1xf32>
    %330 = vector.multi_reduction <add>, %329, %cst_152 [1, 2] : vector<1x32x4xf32> to vector<1xf32>
    %331 = vector.shape_cast %330 : vector<1xf32> to vector<1x1x1xf32>
    %332 = vector.extract %331[0, 0, 0] : f32 from vector<1x1x1xf32>
    %333 = vector.broadcast %332 : f32 to vector<1x1xf32>
    %cst_153 = arith.constant 7.812500e-03 : f32
    %334 = vector.broadcast %cst_153 : f32 to vector<1x1xf32>
    %335 = arith.mulf %333, %334 : vector<1x1xf32>
    %cst_154 = arith.constant 9.99999993E-9 : f32
    %336 = vector.broadcast %cst_154 : f32 to vector<1x1xf32>
    %337 = arith.addf %335, %336 : vector<1x1xf32>
    %338 = math.rsqrt %337 : vector<1x1xf32>
    %339 = vector.broadcast %338 : vector<1x1xf32> to vector<32x4xf32>
    %340 = arith.mulf %327, %339 : vector<32x4xf32>
    %341 = vector.broadcast %316 : vector<32x1xf32> to vector<32x4xf32>
    %342 = arith.mulf %340, %341 : vector<32x4xf32>
    %343 = vector.broadcast %318 : vector<32x1xf32> to vector<32x4xf32>
    %344 = arith.addf %342, %343 : vector<32x4xf32>
    %345 = tpu.iota {dimensions = array<i32: 0>} : vector<4x8xi32>
    %346 = tpu.iota {dimensions = array<i32: 1>} : vector<4x8xi32>
    %c2_i32_155 = arith.constant 2 : i32
    %347 = vector.broadcast %c2_i32_155 : i32 to vector<4x8xi32>
    %348 = arith.muli %347, %345 : vector<4x8xi32>
    %349 = arith.cmpi eq, %346, %348 : vector<4x8xi32>
    %c2_i32_156 = arith.constant 2 : i32
    %350 = vector.broadcast %c2_i32_156 : i32 to vector<4x8xi32>
    %351 = arith.muli %350, %345 : vector<4x8xi32>
    %c1_i32 = arith.constant 1 : i32
    %352 = vector.broadcast %c1_i32 : i32 to vector<4x8xi32>
    %353 = arith.addi %351, %352 : vector<4x8xi32>
    %354 = arith.cmpi eq, %346, %353 : vector<4x8xi32>
    %355 = arith.ori %349, %354 : vector<4x8xi1>
    %356 = arith.extui %355 : vector<4x8xi1> to vector<4x8xi32>
    %357 = arith.sitofp %356 : vector<4x8xi32> to vector<4x8xf32>
    %cst_157 = arith.constant dense<0.000000e+00> : vector<32x8xf32>
    %358 = tpu.matmul %344, %357, %cst_157 {dimension_numbers = #tpu.dot_dimension_numbers<[1], [0], [0], [1], [0, 0, 1, 1], [], []>} : vector<32x4xf32>, vector<4x8xf32>, vector<32x8xf32> -> vector<32x8xf32>
    %359 = arith.addf %266, %358 : vector<32x8xf32>
    %360 = tpu.iota {dimensions = array<i32: 0>} : vector<8x16xi32>
    %361 = tpu.iota {dimensions = array<i32: 1>} : vector<8x16xi32>
    %c2_i32_158 = arith.constant 2 : i32
    %362 = vector.broadcast %c2_i32_158 : i32 to vector<8x16xi32>
    %363 = arith.muli %362, %360 : vector<8x16xi32>
    %364 = arith.cmpi eq, %361, %363 : vector<8x16xi32>
    %c2_i32_159 = arith.constant 2 : i32
    %365 = vector.broadcast %c2_i32_159 : i32 to vector<8x16xi32>
    %366 = arith.muli %365, %360 : vector<8x16xi32>
    %c1_i32_160 = arith.constant 1 : i32
    %367 = vector.broadcast %c1_i32_160 : i32 to vector<8x16xi32>
    %368 = arith.addi %366, %367 : vector<8x16xi32>
    %369 = arith.cmpi eq, %361, %368 : vector<8x16xi32>
    %370 = arith.ori %364, %369 : vector<8x16xi1>
    %371 = arith.extui %370 : vector<8x16xi1> to vector<8x16xi32>
    %372 = arith.sitofp %371 : vector<8x16xi32> to vector<8x16xf32>
    %cst_161 = arith.constant dense<0.000000e+00> : vector<32x16xf32>
    %373 = tpu.matmul %359, %372, %cst_161 {dimension_numbers = #tpu.dot_dimension_numbers<[1], [0], [0], [1], [0, 0, 1, 1], [], []>} : vector<32x8xf32>, vector<8x16xf32>, vector<32x16xf32> -> vector<32x16xf32>
    %374 = arith.addf %188, %373 : vector<32x16xf32>
    %375 = tpu.iota {dimensions = array<i32: 0>} : vector<16x32xi32>
    %376 = tpu.iota {dimensions = array<i32: 1>} : vector<16x32xi32>
    %c2_i32_162 = arith.constant 2 : i32
    %377 = vector.broadcast %c2_i32_162 : i32 to vector<16x32xi32>
    %378 = arith.muli %377, %375 : vector<16x32xi32>
    %379 = arith.cmpi eq, %376, %378 : vector<16x32xi32>
    %c2_i32_163 = arith.constant 2 : i32
    %380 = vector.broadcast %c2_i32_163 : i32 to vector<16x32xi32>
    %381 = arith.muli %380, %375 : vector<16x32xi32>
    %c1_i32_164 = arith.constant 1 : i32
    %382 = vector.broadcast %c1_i32_164 : i32 to vector<16x32xi32>
    %383 = arith.addi %381, %382 : vector<16x32xi32>
    %384 = arith.cmpi eq, %376, %383 : vector<16x32xi32>
    %385 = arith.ori %379, %384 : vector<16x32xi1>
    %386 = arith.extui %385 : vector<16x32xi1> to vector<16x32xi32>
    %387 = arith.sitofp %386 : vector<16x32xi32> to vector<16x32xf32>
    %cst_165 = arith.constant dense<0.000000e+00> : vector<32x32xf32>
    %388 = tpu.matmul %374, %387, %cst_165 {dimension_numbers = #tpu.dot_dimension_numbers<[1], [0], [0], [1], [0, 0, 1, 1], [], []>} : vector<32x16xf32>, vector<16x32xf32>, vector<32x32xf32> -> vector<32x32xf32>
    %389 = arith.addf %110, %388 : vector<32x32xf32>
    %c0_166 = arith.constant 0 : index
    %c0_167 = arith.constant 0 : index
    %390 = vector.load %arg11[%c0_166, %c0_167] : memref<32x1xf32, #tpu.memory_space<vmem>>, vector<32x1xf32>
    %c0_168 = arith.constant 0 : index
    %c0_169 = arith.constant 0 : index
    %391 = vector.load %arg12[%c0_168, %c0_169] : memref<32x1xf32, #tpu.memory_space<vmem>>, vector<32x1xf32>
    %c0_170 = arith.constant 0 : index
    %c0_171 = arith.constant 0 : index
    %392 = vector.load %arg13[%c0_170, %c0_171] : memref<32x1xf32, #tpu.memory_space<vmem>>, vector<32x1xf32>
    %393 = vector.shape_cast %389 : vector<32x32xf32> to vector<1x32x32xf32>
    %cst_172 = arith.constant dense<0.000000e+00> : vector<1xf32>
    %394 = vector.multi_reduction <add>, %393, %cst_172 [1, 2] : vector<1x32x32xf32> to vector<1xf32>
    %395 = vector.shape_cast %394 : vector<1xf32> to vector<1x1x1xf32>
    %396 = vector.extract %395[0, 0, 0] : f32 from vector<1x1x1xf32>
    %397 = vector.broadcast %396 : f32 to vector<1x1xf32>
    %cst_173 = arith.constant 9.765625E-4 : f32
    %398 = vector.broadcast %cst_173 : f32 to vector<1x1xf32>
    %399 = arith.mulf %397, %398 : vector<1x1xf32>
    %400 = vector.broadcast %399 : vector<1x1xf32> to vector<32x32xf32>
    %401 = arith.subf %389, %400 : vector<32x32xf32>
    %402 = arith.mulf %401, %401 : vector<32x32xf32>
    %403 = vector.shape_cast %402 : vector<32x32xf32> to vector<1x32x32xf32>
    %cst_174 = arith.constant dense<0.000000e+00> : vector<1xf32>
    %404 = vector.multi_reduction <add>, %403, %cst_174 [1, 2] : vector<1x32x32xf32> to vector<1xf32>
    %405 = vector.shape_cast %404 : vector<1xf32> to vector<1x1x1xf32>
    %406 = vector.extract %405[0, 0, 0] : f32 from vector<1x1x1xf32>
    %407 = vector.broadcast %406 : f32 to vector<1x1xf32>
    %cst_175 = arith.constant 9.765625E-4 : f32
    %408 = vector.broadcast %cst_175 : f32 to vector<1x1xf32>
    %409 = arith.mulf %407, %408 : vector<1x1xf32>
    %cst_176 = arith.constant 9.99999993E-9 : f32
    %410 = vector.broadcast %cst_176 : f32 to vector<1x1xf32>
    %411 = arith.addf %409, %410 : vector<1x1xf32>
    %412 = math.rsqrt %411 : vector<1x1xf32>
    %413 = vector.broadcast %412 : vector<1x1xf32> to vector<32x32xf32>
    %414 = arith.mulf %401, %413 : vector<32x32xf32>
    %415 = vector.broadcast %390 : vector<32x1xf32> to vector<32x32xf32>
    %416 = arith.mulf %414, %415 : vector<32x32xf32>
    %417 = vector.broadcast %391 : vector<32x1xf32> to vector<32x32xf32>
    %418 = arith.addf %416, %417 : vector<32x32xf32>
    %cst_177 = arith.constant 0.000000e+00 : f32
    %419 = vector.broadcast %cst_177 : f32 to vector<32x32xf32>
    %420 = arith.cmpf oge, %418, %419 : vector<32x32xf32>
    %421 = vector.broadcast %392 : vector<32x1xf32> to vector<32x32xf32>
    %422 = arith.mulf %421, %418 : vector<32x32xf32>
    %423 = arith.select %420, %418, %422 : vector<32x32xi1>, vector<32x32xf32>
    %c0_178 = arith.constant 0 : index
    %c0_179 = arith.constant 0 : index
    %424 = vector.load %arg14[%c0_178, %c0_179] : memref<16x32xf32, #tpu.memory_space<vmem>>, vector<16x32xf32>
    %cst_180 = arith.constant dense<0.000000e+00> : vector<16x32xf32>
    %425 = tpu.matmul %424, %423, %cst_180 {dimension_numbers = #tpu.dot_dimension_numbers<[1], [0], [0], [1], [0, 0, 1, 1], [], []>} : vector<16x32xf32>, vector<32x32xf32>, vector<16x32xf32> -> vector<16x32xf32>
    %c0_181 = arith.constant 0 : index
    %c0_182 = arith.constant 0 : index
    %426 = vector.load %arg15[%c0_181, %c0_182] : memref<16x1xf32, #tpu.memory_space<vmem>>, vector<16x1xf32>
    %427 = vector.broadcast %426 : vector<16x1xf32> to vector<16x32xf32>
    %428 = arith.addf %425, %427 : vector<16x32xf32>
    %c0_183 = arith.constant 0 : index
    %c0_184 = arith.constant 0 : index
    %429 = vector.load %arg16[%c0_183, %c0_184] : memref<16x1xf32, #tpu.memory_space<vmem>>, vector<16x1xf32>
    %c0_185 = arith.constant 0 : index
    %c0_186 = arith.constant 0 : index
    %430 = vector.load %arg17[%c0_185, %c0_186] : memref<16x1xf32, #tpu.memory_space<vmem>>, vector<16x1xf32>
    %431 = vector.shape_cast %428 : vector<16x32xf32> to vector<1x16x32xf32>
    %cst_187 = arith.constant dense<0.000000e+00> : vector<1xf32>
    %432 = vector.multi_reduction <add>, %431, %cst_187 [1, 2] : vector<1x16x32xf32> to vector<1xf32>
    %433 = vector.shape_cast %432 : vector<1xf32> to vector<1x1x1xf32>
    %434 = vector.extract %433[0, 0, 0] : f32 from vector<1x1x1xf32>
    %435 = vector.broadcast %434 : f32 to vector<1x1xf32>
    %cst_188 = arith.constant 0.001953125 : f32
    %436 = vector.broadcast %cst_188 : f32 to vector<1x1xf32>
    %437 = arith.mulf %435, %436 : vector<1x1xf32>
    %438 = vector.broadcast %437 : vector<1x1xf32> to vector<16x32xf32>
    %439 = arith.subf %428, %438 : vector<16x32xf32>
    %440 = arith.mulf %439, %439 : vector<16x32xf32>
    %441 = vector.shape_cast %440 : vector<16x32xf32> to vector<1x16x32xf32>
    %cst_189 = arith.constant dense<0.000000e+00> : vector<1xf32>
    %442 = vector.multi_reduction <add>, %441, %cst_189 [1, 2] : vector<1x16x32xf32> to vector<1xf32>
    %443 = vector.shape_cast %442 : vector<1xf32> to vector<1x1x1xf32>
    %444 = vector.extract %443[0, 0, 0] : f32 from vector<1x1x1xf32>
    %445 = vector.broadcast %444 : f32 to vector<1x1xf32>
    %cst_190 = arith.constant 0.001953125 : f32
    %446 = vector.broadcast %cst_190 : f32 to vector<1x1xf32>
    %447 = arith.mulf %445, %446 : vector<1x1xf32>
    %cst_191 = arith.constant 9.99999993E-9 : f32
    %448 = vector.broadcast %cst_191 : f32 to vector<1x1xf32>
    %449 = arith.addf %447, %448 : vector<1x1xf32>
    %450 = math.rsqrt %449 : vector<1x1xf32>
    %451 = vector.broadcast %450 : vector<1x1xf32> to vector<16x32xf32>
    %452 = arith.mulf %439, %451 : vector<16x32xf32>
    %453 = vector.broadcast %429 : vector<16x1xf32> to vector<16x32xf32>
    %454 = arith.mulf %452, %453 : vector<16x32xf32>
    %455 = vector.broadcast %430 : vector<16x1xf32> to vector<16x32xf32>
    %456 = arith.addf %454, %455 : vector<16x32xf32>
    %457 = arith.addf %456, %1 : vector<16x32xf32>
    %c0_192 = arith.constant 0 : index
    %c0_193 = arith.constant 0 : index
    %458 = vector.load %arg18[%c0_192, %c0_193] : memref<16x1xf32, #tpu.memory_space<vmem>>, vector<16x1xf32>
    %c0_194 = arith.constant 0 : index
    %c0_195 = arith.constant 0 : index
    %459 = vector.load %arg19[%c0_194, %c0_195] : memref<16x1xf32, #tpu.memory_space<vmem>>, vector<16x1xf32>
    %c0_196 = arith.constant 0 : index
    %c0_197 = arith.constant 0 : index
    %460 = vector.load %arg20[%c0_196, %c0_197] : memref<16x1xf32, #tpu.memory_space<vmem>>, vector<16x1xf32>
    %461 = vector.shape_cast %457 : vector<16x32xf32> to vector<1x16x32xf32>
    %cst_198 = arith.constant dense<0.000000e+00> : vector<1xf32>
    %462 = vector.multi_reduction <add>, %461, %cst_198 [1, 2] : vector<1x16x32xf32> to vector<1xf32>
    %463 = vector.shape_cast %462 : vector<1xf32> to vector<1x1x1xf32>
    %464 = vector.extract %463[0, 0, 0] : f32 from vector<1x1x1xf32>
    %465 = vector.broadcast %464 : f32 to vector<1x1xf32>
    %cst_199 = arith.constant 0.001953125 : f32
    %466 = vector.broadcast %cst_199 : f32 to vector<1x1xf32>
    %467 = arith.mulf %465, %466 : vector<1x1xf32>
    %468 = vector.broadcast %467 : vector<1x1xf32> to vector<16x32xf32>
    %469 = arith.subf %457, %468 : vector<16x32xf32>
    %470 = arith.mulf %469, %469 : vector<16x32xf32>
    %471 = vector.shape_cast %470 : vector<16x32xf32> to vector<1x16x32xf32>
    %cst_200 = arith.constant dense<0.000000e+00> : vector<1xf32>
    %472 = vector.multi_reduction <add>, %471, %cst_200 [1, 2] : vector<1x16x32xf32> to vector<1xf32>
    %473 = vector.shape_cast %472 : vector<1xf32> to vector<1x1x1xf32>
    %474 = vector.extract %473[0, 0, 0] : f32 from vector<1x1x1xf32>
    %475 = vector.broadcast %474 : f32 to vector<1x1xf32>
    %cst_201 = arith.constant 0.001953125 : f32
    %476 = vector.broadcast %cst_201 : f32 to vector<1x1xf32>
    %477 = arith.mulf %475, %476 : vector<1x1xf32>
    %cst_202 = arith.constant 9.99999993E-9 : f32
    %478 = vector.broadcast %cst_202 : f32 to vector<1x1xf32>
    %479 = arith.addf %477, %478 : vector<1x1xf32>
    %480 = math.rsqrt %479 : vector<1x1xf32>
    %481 = vector.broadcast %480 : vector<1x1xf32> to vector<16x32xf32>
    %482 = arith.mulf %469, %481 : vector<16x32xf32>
    %483 = vector.broadcast %458 : vector<16x1xf32> to vector<16x32xf32>
    %484 = arith.mulf %482, %483 : vector<16x32xf32>
    %485 = vector.broadcast %459 : vector<16x1xf32> to vector<16x32xf32>
    %486 = arith.addf %484, %485 : vector<16x32xf32>
    %cst_203 = arith.constant 0.000000e+00 : f32
    %487 = vector.broadcast %cst_203 : f32 to vector<16x32xf32>
    %488 = arith.cmpf oge, %486, %487 : vector<16x32xf32>
    %489 = vector.broadcast %460 : vector<16x1xf32> to vector<16x32xf32>
    %490 = arith.mulf %489, %486 : vector<16x32xf32>
    %491 = arith.select %488, %486, %490 : vector<16x32xi1>, vector<16x32xf32>
    %c0_204 = arith.constant 0 : index
    %c0_205 = arith.constant 0 : index
    %c0_206 = arith.constant 0 : index
    %492 = vector.load %arg21[%c0_204, %c0_205, %c0_206] : memref<1x16x32xf32, #tpu.memory_space<vmem>>, vector<1x16x32xf32>
    %493 = vector.shape_cast %492 : vector<1x16x32xf32> to vector<16x32xf32>
    %494 = vector.shape_cast %491 : vector<16x32xf32> to vector<1x16x32xf32>
    tpu.vector_store %arg21[%c0_204, %c0_205, %c0_206], %494 {strides = array<i32>} : memref<1x16x32xf32, #tpu.memory_space<vmem>>, vector<1x16x32xf32>,
    return
  }
  func.func @transform_0(%arg0: i32) -> (i32, i32, i32) {
    %c0_i32 = arith.constant 0 : i32
    %c0_i32_0 = arith.constant 0 : i32
    %c0_i32_1 = arith.constant 0 : i32
    return %arg0, %c0_i32, %c0_i32_0 : i32, i32, i32
  }
  func.func @transform_1(%arg0: i32) -> (i32, i32) {
    %c0_i32 = arith.constant 0 : i32
    %c0_i32_0 = arith.constant 0 : i32
    %c0_i32_1 = arith.constant 0 : i32
    return %c0_i32, %c0_i32_0 : i32, i32
  }
  func.func @transform_2(%arg0: i32) -> (i32, i32) {
    %c0_i32 = arith.constant 0 : i32
    %c0_i32_0 = arith.constant 0 : i32
    %c0_i32_1 = arith.constant 0 : i32
    return %c0_i32, %c0_i32_0 : i32, i32
  }
  func.func @transform_3(%arg0: i32) -> (i32, i32) {
    %c0_i32 = arith.constant 0 : i32
    %c0_i32_0 = arith.constant 0 : i32
    %c0_i32_1 = arith.constant 0 : i32
    return %c0_i32, %c0_i32_0 : i32, i32
  }
  func.func @transform_4(%arg0: i32) -> (i32, i32) {
    %c0_i32 = arith.constant 0 : i32
    %c0_i32_0 = arith.constant 0 : i32
    %c0_i32_1 = arith.constant 0 : i32
    return %c0_i32, %c0_i32_0 : i32, i32
  }
  func.func @transform_5(%arg0: i32) -> (i32, i32) {
    %c0_i32 = arith.constant 0 : i32
    %c0_i32_0 = arith.constant 0 : i32
    %c0_i32_1 = arith.constant 0 : i32
    return %c0_i32, %c0_i32_0 : i32, i32
  }
  func.func @transform_6(%arg0: i32) -> (i32, i32, i32, i32) {
    %c0_i32 = arith.constant 0 : i32
    %c0_i32_0 = arith.constant 0 : i32
    %c0_i32_1 = arith.constant 0 : i32
    %c0_i32_2 = arith.constant 0 : i32
    %c0_i32_3 = arith.constant 0 : i32
    return %c0_i32, %c0_i32_0, %c0_i32_1, %c0_i32_2 : i32, i32, i32, i32
  }
  func.func @transform_7(%arg0: i32) -> (i32, i32, i32) {
    %c0_i32 = arith.constant 0 : i32
    %c0_i32_0 = arith.constant 0 : i32
    %c0_i32_1 = arith.constant 0 : i32
    %c0_i32_2 = arith.constant 0 : i32
    return %c0_i32, %c0_i32_0, %c0_i32_1 : i32, i32, i32
  }
  func.func @transform_8(%arg0: i32) -> (i32, i32, i32) {
    %c0_i32 = arith.constant 0 : i32
    %c0_i32_0 = arith.constant 0 : i32
    %c0_i32_1 = arith.constant 0 : i32
    %c0_i32_2 = arith.constant 0 : i32
    return %c0_i32, %c0_i32_0, %c0_i32_1 : i32, i32, i32
  }
  func.func @transform_9(%arg0: i32) -> (i32, i32, i32) {
    %c0_i32 = arith.constant 0 : i32
    %c0_i32_0 = arith.constant 0 : i32
    %c0_i32_1 = arith.constant 0 : i32
    %c0_i32_2 = arith.constant 0 : i32
    return %c0_i32, %c0_i32_0, %c0_i32_1 : i32, i32, i32
  }
  func.func @transform_10(%arg0: i32) -> (i32, i32) {
    %c0_i32 = arith.constant 0 : i32
    %c0_i32_0 = arith.constant 0 : i32
    %c0_i32_1 = arith.constant 0 : i32
    return %c0_i32, %c0_i32_0 : i32, i32
  }
  func.func @transform_11(%arg0: i32) -> (i32, i32) {
    %c0_i32 = arith.constant 0 : i32
    %c0_i32_0 = arith.constant 0 : i32
    %c0_i32_1 = arith.constant 0 : i32
    return %c0_i32, %c0_i32_0 : i32, i32
  }
  func.func @transform_12(%arg0: i32) -> (i32, i32) {
    %c0_i32 = arith.constant 0 : i32
    %c0_i32_0 = arith.constant 0 : i32
    %c0_i32_1 = arith.constant 0 : i32
    return %c0_i32, %c0_i32_0 : i32, i32
  }
  func.func @transform_13(%arg0: i32) -> (i32, i32) {
    %c0_i32 = arith.constant 0 : i32
    %c0_i32_0 = arith.constant 0 : i32
    %c0_i32_1 = arith.constant 0 : i32
    return %c0_i32, %c0_i32_0 : i32, i32
  }
  func.func @transform_14(%arg0: i32) -> (i32, i32) {
    %c0_i32 = arith.constant 0 : i32
    %c0_i32_0 = arith.constant 0 : i32
    %c0_i32_1 = arith.constant 0 : i32
    return %c0_i32, %c0_i32_0 : i32, i32
  }
  func.func @transform_15(%arg0: i32) -> (i32, i32) {
    %c0_i32 = arith.constant 0 : i32
    %c0_i32_0 = arith.constant 0 : i32
    %c0_i32_1 = arith.constant 0 : i32
    return %c0_i32, %c0_i32_0 : i32, i32
  }
  func.func @transform_16(%arg0: i32) -> (i32, i32) {
    %c0_i32 = arith.constant 0 : i32
    %c0_i32_0 = arith.constant 0 : i32
    %c0_i32_1 = arith.constant 0 : i32
    return %c0_i32, %c0_i32_0 : i32, i32
  }
  func.func @transform_17(%arg0: i32) -> (i32, i32) {
    %c0_i32 = arith.constant 0 : i32
    %c0_i32_0 = arith.constant 0 : i32
    %c0_i32_1 = arith.constant 0 : i32
    return %c0_i32, %c0_i32_0 : i32, i32
  }
  func.func @transform_18(%arg0: i32) -> (i32, i32) {
    %c0_i32 = arith.constant 0 : i32
    %c0_i32_0 = arith.constant 0 : i32
    %c0_i32_1 = arith.constant 0 : i32
    return %c0_i32, %c0_i32_0 : i32, i32
  }
  func.func @transform_19(%arg0: i32) -> (i32, i32) {
    %c0_i32 = arith.constant 0 : i32
    %c0_i32_0 = arith.constant 0 : i32
    %c0_i32_1 = arith.constant 0 : i32
    return %c0_i32, %c0_i32_0 : i32, i32
  }
  func.func @transform_20(%arg0: i32) -> (i32, i32, i32) {
    %c0_i32 = arith.constant 0 : i32
    %c0_i32_0 = arith.constant 0 : i32
    %c0_i32_1 = arith.constant 0 : i32
    return %arg0, %c0_i32, %c0_i32_0 : i32, i32, i32
  }
}

</mosaic_0001>

<llo_original>
// kernel: block_forward.1
$region0: #{block_forward.1}
  #allocation0 [shape = 'u32[]', space=smem, size = 0x4, offset = 0x4, fixed_abs, tag = 'smem constant byte address 0x4 - core index']
  #allocation1 [shape = 'u32[72,128]{1,0:T(1,128)}', space=vmem, size = 0x9000, scoped, tag = 'internal scratch']
  #allocation2 [shape = 'f32[32,36]{1,0:T(8,128)}', space=vmem, size = 0x4000, scoped, tag = 'scratch operand']
  %s0 = inlined_call_operand.vmem [shape: f32[2,16,32], index: 0, kind: input, shape index: {}]
  %s1 = inlined_call_operand.vmem [shape: f32[32,16], index: 1, kind: input, shape index: {}]
  %s2 = inlined_call_operand.vmem [shape: f32[32,1], index: 2, kind: input, shape index: {}]
  %s3 = inlined_call_operand.vmem [shape: f32[32,1], index: 3, kind: input, shape index: {}]
  %s4 = inlined_call_operand.vmem [shape: f32[32,1], index: 4, kind: input, shape index: {}]
  %s5 = inlined_call_operand.vmem [shape: f32[32,1], index: 5, kind: input, shape index: {}]
  %s6 = inlined_call_operand.vmem [shape: f32[4,5,32,1], index: 6, kind: input, shape index: {}]
  %s7 = inlined_call_operand.vmem [shape: f32[4,32,1], index: 7, kind: input, shape index: {}]
  %s8 = inlined_call_operand.vmem [shape: f32[4,32,1], index: 8, kind: input, shape index: {}]
  %s9 = inlined_call_operand.vmem [shape: f32[4,32,1], index: 9, kind: input, shape index: {}]
  %s10 = inlined_call_operand.vmem [shape: f32[32,1], index: 10, kind: input, shape index: {}]
  %s11 = inlined_call_operand.vmem [shape: f32[32,1], index: 11, kind: input, shape index: {}]
  %s12 = inlined_call_operand.vmem [shape: f32[32,1], index: 12, kind: input, shape index: {}]
  %s13 = inlined_call_operand.vmem [shape: f32[16,32], index: 13, kind: input, shape index: {}]
  %s14 = inlined_call_operand.vmem [shape: f32[16,1], index: 14, kind: input, shape index: {}]
  %s15 = inlined_call_operand.vmem [shape: f32[16,1], index: 15, kind: input, shape index: {}]
  %s16 = inlined_call_operand.vmem [shape: f32[16,1], index: 16, kind: input, shape index: {}]
  %s17 = inlined_call_operand.vmem [shape: f32[16,1], index: 17, kind: input, shape index: {}]
  %s18 = inlined_call_operand.vmem [shape: f32[16,1], index: 18, kind: input, shape index: {}]
  %s19 = inlined_call_operand.vmem [shape: f32[16,1], index: 19, kind: input, shape index: {}]
  %s20 = inlined_call_operand.hbm [shape: f32[2,16,32], index: 20, kind: output, shape index: {}]
  %s21 = sld [smem:[#allocation0]]
  $region113: #{block_forward.1} parent=0
    _
  %s23 = ssub.s32 1, %s21
  %s24 = scalar_select 0, %s23, %s21
  $region1: #{block_forward.1} parent=0
    #allocation3 [shape = 'u8[16384]{0}', space=vmem, size = 0x4000, scoped, tag = 'output window, operand 0']
    #allocation4 [shape = 's32[2]{0}', space=sflag, size = 0x8, scoped, tag = 'scoped memory for block_forward.1']
    %25 = vsyncpa [#allocation4], 0
    %s26 = scalar_lea.sflag [#allocation4], 1
    %27 = vsyncpa %s26, 0
    loop: start=0, step=1, limit=4
    $region2: #{block_forward.1} parent=1 // loop_pre_header
      _
    $region3: #{block_forward.1} parent=1 // loop_header
      %s29 = sphi 0, %s33
      %p30 = scmp.ge.s32.totalorder %s29, 4
      %s39 = sphi 0, %s41
      %s42 = sphi 0, %s39
      %s43 = sphi 0, %s42
      %s59 = sphi 0, %s43
      %s63 = sphi 0, %s63
      %s65 = sphi 0, %s63
      %s66 = sphi 0, %s65
      %s80 = sphi 0, %s66
      %s84 = sphi 0, %s84
      %s86 = sphi 0, %s84
      %s87 = sphi 0, %s86
      %s101 = sphi 0, %s87
      %s105 = sphi 0, %s105
      %s107 = sphi 0, %s105
      %s108 = sphi 0, %s107
      %s122 = sphi 0, %s108
      %s126 = sphi 0, %s126
      %s128 = sphi 0, %s126
      %s129 = sphi 0, %s128
      %s143 = sphi 0, %s129
      %s147 = sphi 0, %s147
      %s149 = sphi 0, %s147
      %s150 = sphi 0, %s149
      %s164 = sphi 0, %s150
      %s168 = sphi 0, %s168
      %s170 = sphi 0, %s168
      %s171 = sphi 0, %s170
      %s185 = sphi 0, %s171
      %s189 = sphi 0, %s189
      %s191 = sphi 0, %s189
      %s192 = sphi 0, %s191
      %s206 = sphi 0, %s192
      %s210 = sphi 0, %s210
      %s212 = sphi 0, %s210
      %s213 = sphi 0, %s212
      %s227 = sphi 0, %s213
      %s231 = sphi 0, %s231
      %s233 = sphi 0, %s231
      %s234 = sphi 0, %s233
      %s248 = sphi 0, %s234
      %s252 = sphi 0, %s252
      %s254 = sphi 0, %s252
      %s255 = sphi 0, %s254
      %s269 = sphi 0, %s255
      %s273 = sphi 0, %s273
      %s275 = sphi 0, %s273
      %s276 = sphi 0, %s275
      %s290 = sphi 0, %s276
      %s294 = sphi 0, %s294
      %s296 = sphi 0, %s294
      %s297 = sphi 0, %s296
      %s311 = sphi 0, %s297
      %s315 = sphi 0, %s315
      %s317 = sphi 0, %s315
      %s318 = sphi 0, %s317
      %s332 = sphi 0, %s318
      %s336 = sphi 0, %s336
      %s338 = sphi 0, %s336
      %s339 = sphi 0, %s338
      %s353 = sphi 0, %s339
      %s357 = sphi 0, %s357
      %s359 = sphi 0, %s357
      %s360 = sphi 0, %s359
      %s374 = sphi 0, %s360
      %s378 = sphi 0, %s378
      %s380 = sphi 0, %s378
      %s381 = sphi 0, %s380
      %s395 = sphi 0, %s381
      %s399 = sphi 0, %s399
      %s401 = sphi 0, %s399
      %s402 = sphi 0, %s401
      %s416 = sphi 0, %s402
      %s420 = sphi 0, %s420
      %s422 = sphi 0, %s420
      %s423 = sphi 0, %s422
      %s437 = sphi 0, %s423
      %s441 = sphi 0, %s441
      %s443 = sphi 0, %s441
      %s444 = sphi 0, %s443
      %s458 = sphi 0, %s444
      %s464 = sphi 0, %s466
      %s467 = sphi 0, %s464
      %s468 = sphi 0, %s467
      %s484 = sphi 0, %s468
    $region4: #{block_forward.1} parent=1 // loop_header_branch
      %32 = sbr.rel (%p30) target = $region8
    $region5: #{block_forward.1} parent=1 // loop_body
      %s34 = ssub.s32 %s29, 1
      %s35 = ssub.s32 %s29, 2
      %s36 = sadd.s32 %s29, 1
      %s37 = ssub.s32 %s29, %s36
      %p38 = scmp.eq.s32.totalorder %s37, 0
      %s40 = sadd.s32 %s39, 1
      %s41 = scalar_select %p38, %s39, %s40
      %p44 = pneg %p38
      %p45 = scmp.eq.s32.totalorder %s29, 1
      %p46 = por %p44, %p45
      %p47 = scmp.ne.s32.totalorder %s39, %s42
      %p48 = scmp.eq.s32.totalorder %s29, 0
      %p49 = por %p47, %p48
      %p50 = scmp.ne.s32.totalorder %s39, %s42
      %p51 = scmp.eq.s32.totalorder %s34, 1
      %p52 = por %p50, %p51
      %p53 = scmp.ne.s32.totalorder %s42, %s43
      %p54 = scmp.eq.s32.totalorder %s34, 0
      %p55 = por %p53, %p54
      %p56 = scmp.ne.s32.totalorder %s42, %s43
      %p57 = scmp.eq.s32.totalorder %s35, 1
      %p58 = por %p56, %p57
      %p60 = scmp.ne.s32.totalorder %s43, %s59
      %p61 = scmp.eq.s32.totalorder %s35, 0
      %p62 = por %p60, %p61
      %s64 = sadd.s32 %s63, 1
      %p67 = scmp.eq.s32.totalorder %s29, 1
      %p68 = scmp.ne.s32.totalorder %s63, %s65
      %p69 = scmp.eq.s32.totalorder %s29, 0
      %p70 = por %p68, %p69
      %p71 = scmp.ne.s32.totalorder %s63, %s65
      %p72 = scmp.eq.s32.totalorder %s34, 1
      %p73 = por %p71, %p72
      %p74 = scmp.ne.s32.totalorder %s65, %s66
      %p75 = scmp.eq.s32.totalorder %s34, 0
      %p76 = por %p74, %p75
      %p77 = scmp.ne.s32.totalorder %s65, %s66
      %p78 = scmp.eq.s32.totalorder %s35, 1
      %p79 = por %p77, %p78
      %p81 = scmp.ne.s32.totalorder %s66, %s80
      %p82 = scmp.eq.s32.totalorder %s35, 0
      %p83 = por %p81, %p82
      %s85 = sadd.s32 %s84, 1
      %p88 = scmp.eq.s32.totalorder %s29, 1
      %p89 = scmp.ne.s32.totalorder %s84, %s86
      %p90 = scmp.eq.s32.totalorder %s29, 0
      %p91 = por %p89, %p90
      %p92 = scmp.ne.s32.totalorder %s84, %s86
      %p93 = scmp.eq.s32.totalorder %s34, 1
      %p94 = por %p92, %p93
      %p95 = scmp.ne.s32.totalorder %s86, %s87
      %p96 = scmp.eq.s32.totalorder %s34, 0
      %p97 = por %p95, %p96
      %p98 = scmp.ne.s32.totalorder %s86, %s87
      %p99 = scmp.eq.s32.totalorder %s35, 1
      %p100 = por %p98, %p99
      %p102 = scmp.ne.s32.totalorder %s87, %s101
      %p103 = scmp.eq.s32.totalorder %s35, 0
      %p104 = por %p102, %p103
      %s106 = sadd.s32 %s105, 1
      %p109 = scmp.eq.s32.totalorder %s29, 1
      %p110 = scmp.ne.s32.totalorder %s105, %s107
      %p111 = scmp.eq.s32.totalorder %s29, 0
      %p112 = por %p110, %p111
      %p113 = scmp.ne.s32.totalorder %s105, %s107
      %p114 = scmp.eq.s32.totalorder %s34, 1
      %p115 = por %p113, %p114
      %p116 = scmp.ne.s32.totalorder %s107, %s108
      %p117 = scmp.eq.s32.totalorder %s34, 0
      %p118 = por %p116, %p117
      %p119 = scmp.ne.s32.totalorder %s107, %s108
      %p120 = scmp.eq.s32.totalorder %s35, 1
      %p121 = por %p119, %p120
      %p123 = scmp.ne.s32.totalorder %s108, %s122
      %p124 = scmp.eq.s32.totalorder %s35, 0
      %p125 = por %p123, %p124
      %s127 = sadd.s32 %s126, 1
      %p130 = scmp.eq.s32.totalorder %s29, 1
      %p131 = scmp.ne.s32.totalorder %s126, %s128
      %p132 = scmp.eq.s32.totalorder %s29, 0
      %p133 = por %p131, %p132
      %p134 = scmp.ne.s32.totalorder %s126, %s128
      %p135 = scmp.eq.s32.totalorder %s34, 1
      %p136 = por %p134, %p135
      %p137 = scmp.ne.s32.totalorder %s128, %s129
      %p138 = scmp.eq.s32.totalorder %s34, 0
      %p139 = por %p137, %p138
      %p140 = scmp.ne.s32.totalorder %s128, %s129
      %p141 = scmp.eq.s32.totalorder %s35, 1
      %p142 = por %p140, %p141
      %p144 = scmp.ne.s32.totalorder %s129, %s143
      %p145 = scmp.eq.s32.totalorder %s35, 0
      %p146 = por %p144, %p145
      %s148 = sadd.s32 %s147, 1
      %p151 = scmp.eq.s32.totalorder %s29, 1
      %p152 = scmp.ne.s32.totalorder %s147, %s149
      %p153 = scmp.eq.s32.totalorder %s29, 0
      %p154 = por %p152, %p153
      %p155 = scmp.ne.s32.totalorder %s147, %s149
      %p156 = scmp.eq.s32.totalorder %s34, 1
      %p157 = por %p155, %p156
      %p158 = scmp.ne.s32.totalorder %s149, %s150
      %p159 = scmp.eq.s32.totalorder %s34, 0
      %p160 = por %p158, %p159
      %p161 = scmp.ne.s32.totalorder %s149, %s150
      %p162 = scmp.eq.s32.totalorder %s35, 1
      %p163 = por %p161, %p162
      %p165 = scmp.ne.s32.totalorder %s150, %s164
      %p166 = scmp.eq.s32.totalorder %s35, 0
      %p167 = por %p165, %p166
      %s169 = sadd.s32 %s168, 1
      %p172 = scmp.eq.s32.totalorder %s29, 1
      %p173 = scmp.ne.s32.totalorder %s168, %s170
      %p174 = scmp.eq.s32.totalorder %s29, 0
      %p175 = por %p173, %p174
      %p176 = scmp.ne.s32.totalorder %s168, %s170
      %p177 = scmp.eq.s32.totalorder %s34, 1
      %p178 = por %p176, %p177
      %p179 = scmp.ne.s32.totalorder %s170, %s171
      %p180 = scmp.eq.s32.totalorder %s34, 0
      %p181 = por %p179, %p180
      %p182 = scmp.ne.s32.totalorder %s170, %s171
      %p183 = scmp.eq.s32.totalorder %s35, 1
      %p184 = por %p182, %p183
      %p186 = scmp.ne.s32.totalorder %s171, %s185
      %p187 = scmp.eq.s32.totalorder %s35, 0
      %p188 = por %p186, %p187
      %s190 = sadd.s32 %s189, 1
      %p193 = scmp.eq.s32.totalorder %s29, 1
      %p194 = scmp.ne.s32.totalorder %s189, %s191
      %p195 = scmp.eq.s32.totalorder %s29, 0
      %p196 = por %p194, %p195
      %p197 = scmp.ne.s32.totalorder %s189, %s191
      %p198 = scmp.eq.s32.totalorder %s34, 1
      %p199 = por %p197, %p198
      %p200 = scmp.ne.s32.totalorder %s191, %s192
      %p201 = scmp.eq.s32.totalorder %s34, 0
      %p202 = por %p200, %p201
      %p203 = scmp.ne.s32.totalorder %s191, %s192
      %p204 = scmp.eq.s32.totalorder %s35, 1
      %p205 = por %p203, %p204
      %p207 = scmp.ne.s32.totalorder %s192, %s206
      %p208 = scmp.eq.s32.totalorder %s35, 0
      %p209 = por %p207, %p208
      %s211 = sadd.s32 %s210, 1
      %p214 = scmp.eq.s32.totalorder %s29, 1
      %p215 = scmp.ne.s32.totalorder %s210, %s212
      %p216 = scmp.eq.s32.totalorder %s29, 0
      %p217 = por %p215, %p216
      %p218 = scmp.ne.s32.totalorder %s210, %s212
      %p219 = scmp.eq.s32.totalorder %s34, 1
      %p220 = por %p218, %p219
      %p221 = scmp.ne.s32.totalorder %s212, %s213
      %p222 = scmp.eq.s32.totalorder %s34, 0
      %p223 = por %p221, %p222
      %p224 = scmp.ne.s32.totalorder %s212, %s213
      %p225 = scmp.eq.s32.totalorder %s35, 1
      %p226 = por %p224, %p225
      %p228 = scmp.ne.s32.totalorder %s213, %s227
      %p229 = scmp.eq.s32.totalorder %s35, 0
      %p230 = por %p228, %p229
      %s232 = sadd.s32 %s231, 1
      %p235 = scmp.eq.s32.totalorder %s29, 1
      %p236 = scmp.ne.s32.totalorder %s231, %s233
      %p237 = scmp.eq.s32.totalorder %s29, 0
      %p238 = por %p236, %p237
      %p239 = scmp.ne.s32.totalorder %s231, %s233
      %p240 = scmp.eq.s32.totalorder %s34, 1
      %p241 = por %p239, %p240
      %p242 = scmp.ne.s32.totalorder %s233, %s234
      %p243 = scmp.eq.s32.totalorder %s34, 0
      %p244 = por %p242, %p243
      %p245 = scmp.ne.s32.totalorder %s233, %s234
      %p246 = scmp.eq.s32.totalorder %s35, 1
      %p247 = por %p245, %p246
      %p249 = scmp.ne.s32.totalorder %s234, %s248
      %p250 = scmp.eq.s32.totalorder %s35, 0
      %p251 = por %p249, %p250
      %s253 = sadd.s32 %s252, 1
      %p256 = scmp.eq.s32.totalorder %s29, 1
      %p257 = scmp.ne.s32.totalorder %s252, %s254
      %p258 = scmp.eq.s32.totalorder %s29, 0
      %p259 = por %p257, %p258
      %p260 = scmp.ne.s32.totalorder %s252, %s254
      %p261 = scmp.eq.s32.totalorder %s34, 1
      %p262 = por %p260, %p261
      %p263 = scmp.ne.s32.totalorder %s254, %s255
      %p264 = scmp.eq.s32.totalorder %s34, 0
      %p265 = por %p263, %p264
      %p266 = scmp.ne.s32.totalorder %s254, %s255
      %p267 = scmp.eq.s32.totalorder %s35, 1
      %p268 = por %p266, %p267
      %p270 = scmp.ne.s32.totalorder %s255, %s269
      %p271 = scmp.eq.s32.totalorder %s35, 0
      %p272 = por %p270, %p271
      %s274 = sadd.s32 %s273, 1
      %p277 = scmp.eq.s32.totalorder %s29, 1
      %p278 = scmp.ne.s32.totalorder %s273, %s275
      %p279 = scmp.eq.s32.totalorder %s29, 0
      %p280 = por %p278, %p279
      %p281 = scmp.ne.s32.totalorder %s273, %s275
      %p282 = scmp.eq.s32.totalorder %s34, 1
      %p283 = por %p281, %p282
      %p284 = scmp.ne.s32.totalorder %s275, %s276
      %p285 = scmp.eq.s32.totalorder %s34, 0
      %p286 = por %p284, %p285
      %p287 = scmp.ne.s32.totalorder %s275, %s276
      %p288 = scmp.eq.s32.totalorder %s35, 1
      %p289 = por %p287, %p288
      %p291 = scmp.ne.s32.totalorder %s276, %s290
      %p292 = scmp.eq.s32.totalorder %s35, 0
      %p293 = por %p291, %p292
      %s295 = sadd.s32 %s294, 1
      %p298 = scmp.eq.s32.totalorder %s29, 1
      %p299 = scmp.ne.s32.totalorder %s294, %s296
      %p300 = scmp.eq.s32.totalorder %s29, 0
      %p301 = por %p299, %p300
      %p302 = scmp.ne.s32.totalorder %s294, %s296
      %p303 = scmp.eq.s32.totalorder %s34, 1
      %p304 = por %p302, %p303
      %p305 = scmp.ne.s32.totalorder %s296, %s297
      %p306 = scmp.eq.s32.totalorder %s34, 0
      %p307 = por %p305, %p306
      %p308 = scmp.ne.s32.totalorder %s296, %s297
      %p309 = scmp.eq.s32.totalorder %s35, 1
      %p310 = por %p308, %p309
      %p312 = scmp.ne.s32.totalorder %s297, %s311
      %p313 = scmp.eq.s32.totalorder %s35, 0
      %p314 = por %p312, %p313
      %s316 = sadd.s32 %s315, 1
      %p319 = scmp.eq.s32.totalorder %s29, 1
      %p320 = scmp.ne.s32.totalorder %s315, %s317
      %p321 = scmp.eq.s32.totalorder %s29, 0
      %p322 = por %p320, %p321
      %p323 = scmp.ne.s32.totalorder %s315, %s317
      %p324 = scmp.eq.s32.totalorder %s34, 1
      %p325 = por %p323, %p324
      %p326 = scmp.ne.s32.totalorder %s317, %s318
      %p327 = scmp.eq.s32.totalorder %s34, 0
      %p328 = por %p326, %p327
      %p329 = scmp.ne.s32.totalorder %s317, %s318
      %p330 = scmp.eq.s32.totalorder %s35, 1
      %p331 = por %p329, %p330
      %p333 = scmp.ne.s32.totalorder %s318, %s332
      %p334 = scmp.eq.s32.totalorder %s35, 0
      %p335 = por %p333, %p334
      %s337 = sadd.s32 %s336, 1
      %p340 = scmp.eq.s32.totalorder %s29, 1
      %p341 = scmp.ne.s32.totalorder %s336, %s338
      %p342 = scmp.eq.s32.totalorder %s29, 0
      %p343 = por %p341, %p342
      %p344 = scmp.ne.s32.totalorder %s336, %s338
      %p345 = scmp.eq.s32.totalorder %s34, 1
      %p346 = por %p344, %p345
      %p347 = scmp.ne.s32.totalorder %s338, %s339
      %p348 = scmp.eq.s32.totalorder %s34, 0
      %p349 = por %p347, %p348
      %p350 = scmp.ne.s32.totalorder %s338, %s339
      %p351 = scmp.eq.s32.totalorder %s35, 1
      %p352 = por %p350, %p351
      %p354 = scmp.ne.s32.totalorder %s339, %s353
      %p355 = scmp.eq.s32.totalorder %s35, 0
      %p356 = por %p354, %p355
      %s358 = sadd.s32 %s357, 1
      %p361 = scmp.eq.s32.totalorder %s29, 1
      %p362 = scmp.ne.s32.totalorder %s357, %s359
      %p363 = scmp.eq.s32.totalorder %s29, 0
      %p364 = por %p362, %p363
      %p365 = scmp.ne.s32.totalorder %s357, %s359
      %p366 = scmp.eq.s32.totalorder %s34, 1
      %p367 = por %p365, %p366
      %p368 = scmp.ne.s32.totalorder %s359, %s360
      %p369 = scmp.eq.s32.totalorder %s34, 0
      %p370 = por %p368, %p369
      %p371 = scmp.ne.s32.totalorder %s359, %s360
      %p372 = scmp.eq.s32.totalorder %s35, 1
      %p373 = por %p371, %p372
      %p375 = scmp.ne.s32.totalorder %s360, %s374
      %p376 = scmp.eq.s32.totalorder %s35, 0
      %p377 = por %p375, %p376
      %s379 = sadd.s32 %s378, 1
      %p382 = scmp.eq.s32.totalorder %s29, 1
      %p383 = scmp.ne.s32.totalorder %s378, %s380
      %p384 = scmp.eq.s32.totalorder %s29, 0
      %p385 = por %p383, %p384
      %p386 = scmp.ne.s32.totalorder %s378, %s380
      %p387 = scmp.eq.s32.totalorder %s34, 1
      %p388 = por %p386, %p387
      %p389 = scmp.ne.s32.totalorder %s380, %s381
      %p390 = scmp.eq.s32.totalorder %s34, 0
      %p391 = por %p389, %p390
      %p392 = scmp.ne.s32.totalorder %s380, %s381
      %p393 = scmp.eq.s32.totalorder %s35, 1
      %p394 = por %p392, %p393
      %p396 = scmp.ne.s32.totalorder %s381, %s395
      %p397 = scmp.eq.s32.totalorder %s35, 0
      %p398 = por %p396, %p397
      %s400 = sadd.s32 %s399, 1
      %p403 = scmp.eq.s32.totalorder %s29, 1
      %p404 = scmp.ne.s32.totalorder %s399, %s401
      %p405 = scmp.eq.s32.totalorder %s29, 0
      %p406 = por %p404, %p405
      %p407 = scmp.ne.s32.totalorder %s399, %s401
      %p408 = scmp.eq.s32.totalorder %s34, 1
      %p409 = por %p407, %p408
      %p410 = scmp.ne.s32.totalorder %s401, %s402
      %p411 = scmp.eq.s32.totalorder %s34, 0
      %p412 = por %p410, %p411
      %p413 = scmp.ne.s32.totalorder %s401, %s402
      %p414 = scmp.eq.s32.totalorder %s35, 1
      %p415 = por %p413, %p414
      %p417 = scmp.ne.s32.totalorder %s402, %s416
      %p418 = scmp.eq.s32.totalorder %s35, 0
      %p419 = por %p417, %p418
      %s421 = sadd.s32 %s420, 1
      %p424 = scmp.eq.s32.totalorder %s29, 1
      %p425 = scmp.ne.s32.totalorder %s420, %s422
      %p426 = scmp.eq.s32.totalorder %s29, 0
      %p427 = por %p425, %p426
      %p428 = scmp.ne.s32.totalorder %s420, %s422
      %p429 = scmp.eq.s32.totalorder %s34, 1
      %p430 = por %p428, %p429
      %p431 = scmp.ne.s32.totalorder %s422, %s423
      %p432 = scmp.eq.s32.totalorder %s34, 0
      %p433 = por %p431, %p432
      %p434 = scmp.ne.s32.totalorder %s422, %s423
      %p435 = scmp.eq.s32.totalorder %s35, 1
      %p436 = por %p434, %p435
      %p438 = scmp.ne.s32.totalorder %s423, %s437
      %p439 = scmp.eq.s32.totalorder %s35, 0
      %p440 = por %p438, %p439
      %s442 = sadd.s32 %s441, 1
      %p445 = scmp.eq.s32.totalorder %s29, 1
      %p446 = scmp.ne.s32.totalorder %s441, %s443
      %p447 = scmp.eq.s32.totalorder %s29, 0
      %p448 = por %p446, %p447
      %p449 = scmp.ne.s32.totalorder %s441, %s443
      %p450 = scmp.eq.s32.totalorder %s34, 1
      %p451 = por %p449, %p450
      %p452 = scmp.ne.s32.totalorder %s443, %s444
      %p453 = scmp.eq.s32.totalorder %s34, 0
      %p454 = por %p452, %p453
      %p455 = scmp.ne.s32.totalorder %s443, %s444
      %p456 = scmp.eq.s32.totalorder %s35, 1
      %p457 = por %p455, %p456
      %p459 = scmp.ne.s32.totalorder %s444, %s458
      %p460 = scmp.eq.s32.totalorder %s35, 0
      %p461 = por %p459, %p460
      %s462 = ssub.s32 %s29, %s36
      %p463 = scmp.eq.s32.totalorder %s462, 0
      %s465 = sadd.s32 %s464, 1
      %s466 = scalar_select %p463, %s464, %s465
      %p469 = pneg %p463
      %p470 = scmp.eq.s32.totalorder %s29, 1
      %p471 = por %p469, %p470
      %p472 = scmp.ne.s32.totalorder %s464, %s467
      %p473 = scmp.eq.s32.totalorder %s29, 0
      %p474 = por %p472, %p473
      %p475 = scmp.ne.s32.totalorder %s464, %s467
      %p476 = scmp.eq.s32.totalorder %s34, 1
      %p477 = por %p475, %p476
      %p478 = scmp.ne.s32.totalorder %s467, %s468
      %p479 = scmp.eq.s32.totalorder %s34, 0
      %p480 = por %p478, %p479
      %p481 = scmp.ne.s32.totalorder %s467, %s468
      %p482 = scmp.eq.s32.totalorder %s35, 1
      %p483 = por %p481, %p482
      %p485 = scmp.ne.s32.totalorder %s468, %s484
      %p486 = scmp.eq.s32.totalorder %s35, 0
      %p487 = por %p485, %p486
      %p488 = scmp.le.s32.totalorder 1, %s29
      %p489 = scmp.lt.s32.totalorder %s29, 3
      %p490 = pnand %p488, %p489
      %p491 = pneg %p490
      // Predicated region
      $region9: #{block_forward.1} parent=5 // pred_check
        _
      $region10: #{block_forward.1} parent=5 // pred_check_branch
        %493 = sbr.rel (%p490) target = $region12
      $region11: #{block_forward.1} parent=5 // pred_region
        %s494 = ssub.s32 %s29, 1
        // Predicated region
        $region13: #{block_forward.1} parent=11 // pred_check
          %p495 = pneg %p76
        $region14: #{block_forward.1} parent=11 // pred_check_branch
          %497 = sbr.rel (%p495) target = $region16
        $region15: #{block_forward.1} parent=11 // pred_region
          _
        $region16: #{block_forward.1} parent=11 // pred_fallthru
          _
        // Predicated region
        $region17: #{block_forward.1} parent=11 // pred_check
          %p498 = pneg %p97
        $region18: #{block_forward.1} parent=11 // pred_check_branch
          %500 = sbr.rel (%p498) target = $region20
        $region19: #{block_forward.1} parent=11 // pred_region
          _
        $region20: #{block_forward.1} parent=11 // pred_fallthru
          _
        // Predicated region
        $region21: #{block_forward.1} parent=11 // pred_check
          %p501 = pneg %p118
        $region22: #{block_forward.1} parent=11 // pred_check_branch
          %503 = sbr.rel (%p501) target = $region24
        $region23: #{block_forward.1} parent=11 // pred_region
          _
        $region24: #{block_forward.1} parent=11 // pred_fallthru
          _
        // Predicated region
        $region25: #{block_forward.1} parent=11 // pred_check
          %p504 = pneg %p139
        $region26: #{block_forward.1} parent=11 // pred_check_branch
          %506 = sbr.rel (%p504) target = $region28
        $region27: #{block_forward.1} parent=11 // pred_region
          _
        $region28: #{block_forward.1} parent=11 // pred_fallthru
          _
        // Predicated region
        $region29: #{block_forward.1} parent=11 // pred_check
          %p507 = pneg %p160
        $region30: #{block_forward.1} parent=11 // pred_check_branch
          %509 = sbr.rel (%p507) target = $region32
        $region31: #{block_forward.1} parent=11 // pred_region
          _
        $region32: #{block_forward.1} parent=11 // pred_fallthru
          _
        // Predicated region
        $region33: #{block_forward.1} parent=11 // pred_check
          %p510 = pneg %p181
        $region34: #{block_forward.1} parent=11 // pred_check_branch
          %512 = sbr.rel (%p510) target = $region36
        $region35: #{block_forward.1} parent=11 // pred_region
          _
        $region36: #{block_forward.1} parent=11 // pred_fallthru
          _
        // Predicated region
        $region37: #{block_forward.1} parent=11 // pred_check
          %p513 = pneg %p202
        $region38: #{block_forward.1} parent=11 // pred_check_branch
          %515 = sbr.rel (%p513) target = $region40
        $region39: #{block_forward.1} parent=11 // pred_region
          _
        $region40: #{block_forward.1} parent=11 // pred_fallthru
          _
        // Predicated region
        $region41: #{block_forward.1} parent=11 // pred_check
          %p516 = pneg %p223
        $region42: #{block_forward.1} parent=11 // pred_check_branch
          %518 = sbr.rel (%p516) target = $region44
        $region43: #{block_forward.1} parent=11 // pred_region
          _
        $region44: #{block_forward.1} parent=11 // pred_fallthru
          _
        // Predicated region
        $region45: #{block_forward.1} parent=11 // pred_check
          %p519 = pneg %p244
        $region46: #{block_forward.1} parent=11 // pred_check_branch
          %521 = sbr.rel (%p519) target = $region48
        $region47: #{block_forward.1} parent=11 // pred_region
          _
        $region48: #{block_forward.1} parent=11 // pred_fallthru
          _
        // Predicated region
        $region49: #{block_forward.1} parent=11 // pred_check
          %p522 = pneg %p265
        $region50: #{block_forward.1} parent=11 // pred_check_branch
          %524 = sbr.rel (%p522) target = $region52
        $region51: #{block_forward.1} parent=11 // pred_region
          _
        $region52: #{block_forward.1} parent=11 // pred_fallthru
          _
        // Predicated region
        $region53: #{block_forward.1} parent=11 // pred_check
          %p525 = pneg %p286
        $region54: #{block_forward.1} parent=11 // pred_check_branch
          %527 = sbr.rel (%p525) target = $region56
        $region55: #{block_forward.1} parent=11 // pred_region
          _
        $region56: #{block_forward.1} parent=11 // pred_fallthru
          _
        // Predicated region
        $region57: #{block_forward.1} parent=11 // pred_check
          %p528 = pneg %p307
        $region58: #{block_forward.1} parent=11 // pred_check_branch
          %530 = sbr.rel (%p528) target = $region60
        $region59: #{block_forward.1} parent=11 // pred_region
          _
        $region60: #{block_forward.1} parent=11 // pred_fallthru
          _
        // Predicated region
        $region61: #{block_forward.1} parent=11 // pred_check
          %p531 = pneg %p328
        $region62: #{block_forward.1} parent=11 // pred_check_branch
          %533 = sbr.rel (%p531) target = $region64
        $region63: #{block_forward.1} parent=11 // pred_region
          _
        $region64: #{block_forward.1} parent=11 // pred_fallthru
          _
        // Predicated region
        $region65: #{block_forward.1} parent=11 // pred_check
          %p534 = pneg %p349
        $region66: #{block_forward.1} parent=11 // pred_check_branch
          %536 = sbr.rel (%p534) target = $region68
        $region67: #{block_forward.1} parent=11 // pred_region
          _
        $region68: #{block_forward.1} parent=11 // pred_fallthru
          _
        // Predicated region
        $region69: #{block_forward.1} parent=11 // pred_check
          %p537 = pneg %p370
        $region70: #{block_forward.1} parent=11 // pred_check_branch
          %539 = sbr.rel (%p537) target = $region72
        $region71: #{block_forward.1} parent=11 // pred_region
          _
        $region72: #{block_forward.1} parent=11 // pred_fallthru
          _
        // Predicated region
        $region73: #{block_forward.1} parent=11 // pred_check
          %p540 = pneg %p391
        $region74: #{block_forward.1} parent=11 // pred_check_branch
          %542 = sbr.rel (%p540) target = $region76
        $region75: #{block_forward.1} parent=11 // pred_region
          _
        $region76: #{block_forward.1} parent=11 // pred_fallthru
          _
        // Predicated region
        $region77: #{block_forward.1} parent=11 // pred_check
          %p543 = pneg %p412
        $region78: #{block_forward.1} parent=11 // pred_check_branch
          %545 = sbr.rel (%p543) target = $region80
        $region79: #{block_forward.1} parent=11 // pred_region
          _
        $region80: #{block_forward.1} parent=11 // pred_fallthru
          _
        // Predicated region
        $region81: #{block_forward.1} parent=11 // pred_check
          %p546 = pneg %p433
        $region82: #{block_forward.1} parent=11 // pred_check_branch
          %548 = sbr.rel (%p546) target = $region84
        $region83: #{block_forward.1} parent=11 // pred_region
          _
        $region84: #{block_forward.1} parent=11 // pred_fallthru
          _
        // Predicated region
        $region85: #{block_forward.1} parent=11 // pred_check
          %p549 = pneg %p454
        $region86: #{block_forward.1} parent=11 // pred_check_branch
          %551 = sbr.rel (%p549) target = $region88
        $region87: #{block_forward.1} parent=11 // pred_region
          _
        $region88: #{block_forward.1} parent=11 // pred_fallthru
          _
      $region12: #{block_forward.1} parent=5 // pred_fallthru
        _
      %p552 = scmp.lt.s32.totalorder %s29, 2
      // Predicated region
      $region89: #{block_forward.1} parent=5 // pred_check
        %p553 = pneg %p552
      $region90: #{block_forward.1} parent=5 // pred_check_branch
        %555 = sbr.rel (%p553) target = $region92
      $region91: #{block_forward.1} parent=5 // pred_region
        // Predicated region
        $region93: #{block_forward.1} parent=91 // pred_check
          %p556 = pneg %p49
        $region94: #{block_forward.1} parent=91 // pred_check_branch
          %558 = sbr.rel (%p556) target = $region96
        $region95: #{block_forward.1} parent=91 // pred_region
          %p559 = scmp.lt.s32.totalorder %s29, 1
          %s560 = scalar_select %p559, %s29, 1
          %s561 = smul.addr %s560, 2
          %s562 = smul.addr %s561, 8
          %s563 = scalar_lea.vmem %s0, %s562
        $region96: #{block_forward.1} parent=91 // pred_fallthru
          _
      $region92: #{block_forward.1} parent=5 // pred_fallthru
        _
      %p564 = scmp.le.s32.totalorder 1, %s29
      %p565 = scmp.lt.s32.totalorder %s29, 3
      %p566 = pnand %p564, %p565
      %p567 = pneg %p566
      // Predicated region
      $region97: #{block_forward.1} parent=5 // pred_check
        _
      $region98: #{block_forward.1} parent=5 // pred_check_branch
        %569 = sbr.rel (%p566) target = $region100
      $region99: #{block_forward.1} parent=5 // pred_region
        %s570 = ssub.s32 %s29, 1
        %p571 = scmp.lt.s32.totalorder %s34, 1
        %s572 = scalar_select %p571, %s34, 1
        %s573 = smul.addr %s572, 2
        %s574 = smul.addr %s573, 8
        %s575 = scalar_lea.vmem %s0, %s574
        %p576 = pneg %p55
        %p577 = pneg %p52
        %p578 = pneg %p76
        %p579 = pneg %p73
        %p580 = pneg %p97
        %p581 = pneg %p94
        %p582 = pneg %p118
        %p583 = pneg %p115
        %p584 = pneg %p139
        %p585 = pneg %p136
        %p586 = pneg %p160
        %p587 = pneg %p157
        %p588 = pneg %p181
        %p589 = pneg %p178
        %p590 = pneg %p202
        %p591 = pneg %p199
        %p592 = pneg %p223
        %p593 = pneg %p220
        %p594 = pneg %p244
        %p595 = pneg %p241
        %p596 = pneg %p265
        %p597 = pneg %p262
        %p598 = pneg %p286
        %p599 = pneg %p283
        %p600 = pneg %p307
        %p601 = pneg %p304
        %p602 = pneg %p328
        %p603 = pneg %p325
        %p604 = pneg %p349
        %p605 = pneg %p346
        %p606 = pneg %p370
        %p607 = pneg %p367
        %p608 = pneg %p391
        %p609 = pneg %p388
        %p610 = pneg %p412
        %p611 = pneg %p409
        %p612 = pneg %p433
        %p613 = pneg %p430
        %p614 = pneg %p454
        %p615 = pneg %p451
        %p616 = pneg %p480
        %p617 = pneg %p477
        %s618 = sand.u32 %s467, 1
        %s619 = scalar_lea.sflag [#allocation4], %s618
        %s620 = sand.u32 %s467, 1
        %s621 = smul.addr %s620, 16
        %s622 = scalar_lea.vmem [#allocation3], %s621
        %p623 = scmp.lt.s32.totalorder %s34, 1
        %s624 = scalar_select %p623, %s34, 1
        %s625 = smul.addr %s624, 2
        %s626 = smul.addr %s625, 8
        %s627 = scalar_lea.vmem %s0, %s626
        %v628 = vld [vmem:[%s627] sm:$0xff]
        %v629 = vld [vmem:[%s627 + $0x8] sm:$0xff]
        %v630 = vld [vmem:[%s1] sm:$0xff]
        %v631 = vld [vmem:[%s1 + $0x8] sm:$0xff]
        %v632 = vld [vmem:[%s1 + $0x10] sm:$0xff]
        %v633 = vld [vmem:[%s1 + $0x18] sm:$0xff]
        %v634 = vld [vmem:[%s2] sm:$0xff]
        %v635 = vld [vmem:[%s2 + $0x8] sm:$0xff]
        %v636 = vld [vmem:[%s2 + $0x10] sm:$0xff]
        %v637 = vld [vmem:[%s2 + $0x18] sm:$0xff]
        %639 = vset.pattern.permute.xlu0 0
        %640 = vperm.xlu0 %639, %v634
        %v641 = vpop.permute.xlu0 %640
        %644 = vset.pattern.permute.xlu0 0
        %645 = vperm.xlu0 %644, %v635
        %v646 = vpop.permute.xlu0 %645
        %649 = vset.pattern.permute.xlu0 0
        %650 = vperm.xlu0 %649, %v636
        %v651 = vpop.permute.xlu0 %650
        %654 = vset.pattern.permute.xlu0 0
        %655 = vperm.xlu0 %654, %v637
        %v656 = vpop.permute.xlu0 %655
        %vm658 = vcmask 130048
        %v660 = vsel %vm658, %v630, 0
        %v663 = vsel %vm658, %v631, 0
        %v666 = vsel %vm658, %v632, 0
        %v669 = vsel %vm658, %v633, 0
        %671 = vmatpush.msra.mxu0 0.0
        %672 = vmatpush.msra.mxu0 0.0
        %673 = vmatpush.msra.mxu0 0.0
        %674 = vmatpush.msra.mxu0 0.0
        %675 = vmatpush.msra.mxu0 0.0
        %676 = vmatpush.msra.mxu0 0.0
        %677 = vmatpush.msra.mxu0 0.0
        %678 = vmatpush.msra.mxu0 0.0
        %679 = vmatpush.msra.mxu0 0.0
        %680 = vmatpush.msra.mxu0 0.0
        %681 = vmatpush.msra.mxu0 0.0
        %682 = vmatpush.msra.mxu0 0.0
        %683 = vmatpush.msra.mxu0 0.0
        %684 = vmatpush.msra.mxu0 0.0
        %685 = vmatpush.msra.mxu0 %v629
        %686 = vmatpush.msra.mxu0 %v628
        %687 = vmatmul.f32.gmra.mxu0 %v660
        %v688 = vpop.f32.mrf.mxu0
        %v689 = vadd.f32 %v641, %v688
        %690 = vmatmul.f32.gmra.mxu0 %v663
        %v691 = vpop.f32.mrf.mxu0
        %v692 = vadd.f32 %v646, %v691
        %693 = vmatmul.f32.gmra.mxu0 %v666
        %v694 = vpop.f32.mrf.mxu0
        %v695 = vadd.f32 %v651, %v694
        %696 = vmatmul.f32.gmra.mxu0 %v669
        %v697 = vpop.f32.mrf.mxu0
        %v698 = vadd.f32 %v656, %v697
        %699 = vdwg.mxu0
        %v700 = vld [vmem:[%s3] sm:$0xff]
        %v701 = vld [vmem:[%s3 + $0x8] sm:$0xff]
        %v702 = vld [vmem:[%s3 + $0x10] sm:$0xff]
        %v703 = vld [vmem:[%s3 + $0x18] sm:$0xff]
        %v704 = vld [vmem:[%s4] sm:$0xff]
        %v705 = vld [vmem:[%s4 + $0x8] sm:$0xff]
        %v706 = vld [vmem:[%s4 + $0x10] sm:$0xff]
        %v707 = vld [vmem:[%s4 + $0x18] sm:$0xff]
        %v708 = vld [vmem:[%s5] sm:$0xff]
        %v709 = vld [vmem:[%s5 + $0x8] sm:$0xff]
        %v710 = vld [vmem:[%s5 + $0x10] sm:$0xff]
        %v711 = vld [vmem:[%s5 + $0x18] sm:$0xff]
        %vm712 = vcmask 261120
        %v713 = vsel %vm712, %v689, 0.0
        %v714 = vsel %vm712, %v692, 0.0
        %v715 = vadd.f32 %v713, %v714
        %v716 = vsel %vm712, %v695, 0.0
        %v717 = vadd.f32 %v715, %v716
        %v718 = vsel %vm712, %v698, 0.0
        %v719 = vadd.f32 %v717, %v718
        %720 = vadd.xlane.f32.xlu0 %v719
        %v721 = vpop.xlane.xlu0 %720
        %v722 = vrot.slane %v721, 4
        %v723 = vadd.f32 %v721, %v722
        %v724 = vrot.slane %v723, 2
        %v725 = vadd.f32 %v723, %v724
        %v726 = vrot.slane %v725, 1
        %v727 = vadd.f32 %v725, %v726
        %s728 = vtos %v727
        %v729 = vstv %s728
        %v730 = vmul.f32 %v729, 0.0009765625
        %v731 = vsub.f32 %v689, %v730
        %v732 = vsub.f32 %v692, %v730
        %v733 = vsub.f32 %v695, %v730
        %v734 = vsub.f32 %v698, %v730
        %v735 = vmul.f32 %v731, %v731
        %v736 = vmul.f32 %v732, %v732
        %v737 = vmul.f32 %v733, %v733
        %v738 = vmul.f32 %v734, %v734
        %v739 = vsel %vm712, %v735, 0.0
        %v740 = vsel %vm712, %v736, 0.0
        %v741 = vadd.f32 %v739, %v740
        %v742 = vsel %vm712, %v737, 0.0
        %v743 = vadd.f32 %v741, %v742
        %v744 = vsel %vm712, %v738, 0.0
        %v745 = vadd.f32 %v743, %v744
        %746 = vadd.xlane.f32.xlu0 %v745
        %v747 = vpop.xlane.xlu0 %746
        %v748 = vrot.slane %v747, 4
        %v749 = vadd.f32 %v747, %v748
        %v750 = vrot.slane %v749, 2
        %v751 = vadd.f32 %v749, %v750
        %v752 = vrot.slane %v751, 1
        %v753 = vadd.f32 %v751, %v752
        %s754 = vtos %v753
        %v755 = vstv %s754
        %v756 = vmul.f32 %v755, 0.0009765625
        %v757 = vadd.f32 %v756, 1e-08
        %v758 = vrsqrt.pop %v757
        %v759 = vmul.f32 %v758, %v757
        %v760 = vmul.f32 %v759, %v758
        %v761 = vmul.f32 0.5, %v760
        %v762 = vsub.f32 1.5, %v761
        %v763 = vmul.f32 %v758, %v762
        %vm764 = vweird.f32 %v757
        %vm765 = vweird.f32 %v758
        %vm766 = vmor %vm764, %vm765
        %v767 = vsel %vm766, %v758, %v763
        %v768 = vmul.f32 %v731, %v767
        %v769 = vmul.f32 %v732, %v767
        %v770 = vmul.f32 %v733, %v767
        %v771 = vmul.f32 %v734, %v767
        %773 = vset.pattern.permute.xlu0 0
        %774 = vperm.xlu0 %773, %v700
        %v775 = vpop.permute.xlu0 %774
        %778 = vset.pattern.permute.xlu0 0
        %779 = vperm.xlu0 %778, %v701
        %v780 = vpop.permute.xlu0 %779
        %783 = vset.pattern.permute.xlu0 0
        %784 = vperm.xlu0 %783, %v702
        %v785 = vpop.permute.xlu0 %784
        %788 = vset.pattern.permute.xlu0 0
        %789 = vperm.xlu0 %788, %v703
        %v790 = vpop.permute.xlu0 %789
        %v792 = vmul.f32 %v768, %v775
        %v793 = vmul.f32 %v769, %v780
        %v794 = vmul.f32 %v770, %v785
        %v795 = vmul.f32 %v771, %v790
        %797 = vset.pattern.permute.xlu0 0
        %798 = vperm.xlu0 %797, %v704
        %v799 = vpop.permute.xlu0 %798
        %802 = vset.pattern.permute.xlu0 0
        %803 = vperm.xlu0 %802, %v705
        %v804 = vpop.permute.xlu0 %803
        %807 = vset.pattern.permute.xlu0 0
        %808 = vperm.xlu0 %807, %v706
        %v809 = vpop.permute.xlu0 %808
        %812 = vset.pattern.permute.xlu0 0
        %813 = vperm.xlu0 %812, %v707
        %v814 = vpop.permute.xlu0 %813
        %v816 = vadd.f32 %v792, %v799
        %v817 = vadd.f32 %v793, %v804
        %v818 = vadd.f32 %v794, %v809
        %v819 = vadd.f32 %v795, %v814
        %vm820 = vcmp.ge.f32.partialorder %v816, 0.0
        %vm821 = vcmp.ge.f32.partialorder %v817, 0.0
        %vm822 = vcmp.ge.f32.partialorder %v818, 0.0
        %vm823 = vcmp.ge.f32.partialorder %v819, 0.0
        %825 = vset.pattern.permute.xlu0 0
        %826 = vperm.xlu0 %825, %v708
        %v827 = vpop.permute.xlu0 %826
        %830 = vset.pattern.permute.xlu0 0
        %831 = vperm.xlu0 %830, %v709
        %v832 = vpop.permute.xlu0 %831
        %835 = vset.pattern.permute.xlu0 0
        %836 = vperm.xlu0 %835, %v710
        %v837 = vpop.permute.xlu0 %836
        %840 = vset.pattern.permute.xlu0 0
        %841 = vperm.xlu0 %840, %v711
        %v842 = vpop.permute.xlu0 %841
        %v844 = vmul.f32 %v827, %v816
        %v845 = vmul.f32 %v832, %v817
        %v846 = vmul.f32 %v837, %v818
        %v847 = vmul.f32 %v842, %v819
        %v848 = vsel %vm820, %v816, %v844
        %v849 = vsel %vm821, %v817, %v845
        %v850 = vsel %vm822, %v818, %v846
        %v851 = vsel %vm823, %v819, %v847
        %vm852 = vcmask 293888
        %853 = vst.msk [vmem:[#allocation2] sm:$0xff] %vm852, 0.0
        %854 = vst.msk [vmem:[#allocation2 + $0x8] sm:$0xff] %vm852, 0.0
        %855 = vst.msk [vmem:[#allocation2 + $0x10] sm:$0xff] %vm852, 0.0
        %856 = vst.msk [vmem:[#allocation2 + $0x18] sm:$0xff] %vm852, 0.0
        %861 = vrot.lane.b32.xlu0 %v848, 2
        %v862 = vpop.permute.xlu0 %861
        %863 = vrot.lane.b32.xlu0 %v849, 2
        %v864 = vpop.permute.xlu0 %863
        %865 = vrot.lane.b32.xlu0 %v850, 2
        %v866 = vpop.permute.xlu0 %865
        %867 = vrot.lane.b32.xlu0 %v851, 2
        %v868 = vpop.permute.xlu0 %867
        %vm873 = vcmask 277520
        %874 = vst.msk [vmem:[#allocation2] sm:$0xff] %vm873, %v862
        %875 = vst.msk [vmem:[#allocation2 + $0x8] sm:$0xff] %vm873, %v864
        %876 = vst.msk [vmem:[#allocation2 + $0x10] sm:$0xff] %vm873, %v866
        %877 = vst.msk [vmem:[#allocation2 + $0x18] sm:$0xff] %vm873, %v868
        %v878 = vld [vmem:[%s6] sm:$0xff]
        %v879 = vld [vmem:[%s6 + $0x8] sm:$0xff]
        %v880 = vld [vmem:[%s6 + $0x10] sm:$0xff]
        %v881 = vld [vmem:[%s6 + $0x18] sm:$0xff]
        %v882 = vld [vmem:[%s6 + $0x20] sm:$0xff]
        %v883 = vld [vmem:[%s6 + $0x28] sm:$0xff]
        %v884 = vld [vmem:[%s6 + $0x30] sm:$0xff]
        %v885 = vld [vmem:[%s6 + $0x38] sm:$0xff]
        %v886 = vld [vmem:[%s6 + $0x40] sm:$0xff]
        %v887 = vld [vmem:[%s6 + $0x48] sm:$0xff]
        %v888 = vld [vmem:[%s6 + $0x50] sm:$0xff]
        %v889 = vld [vmem:[%s6 + $0x58] sm:$0xff]
        %v890 = vld [vmem:[%s6 + $0x60] sm:$0xff]
        %v891 = vld [vmem:[%s6 + $0x68] sm:$0xff]
        %v892 = vld [vmem:[%s6 + $0x70] sm:$0xff]
        %v893 = vld [vmem:[%s6 + $0x78] sm:$0xff]
        %v894 = vld [vmem:[%s6 + $0x80] sm:$0xff]
        %v895 = vld [vmem:[%s6 + $0x88] sm:$0xff]
        %v896 = vld [vmem:[%s6 + $0x90] sm:$0xff]
        %v897 = vld [vmem:[%s6 + $0x98] sm:$0xff]
        %v898 = vld [vmem:[#allocation2] sm:$0xff]
        %v899 = vld [vmem:[#allocation2 + $0x8] sm:$0xff]
        %v900 = vld [vmem:[#allocation2 + $0x10] sm:$0xff]
        %v901 = vld [vmem:[#allocation2 + $0x18] sm:$0xff]
        %903 = vset.pattern.permute.xlu0 0
        %904 = vperm.xlu0 %903, %v878
        %v905 = vpop.permute.xlu0 %904
        %908 = vset.pattern.permute.xlu0 0
        %909 = vperm.xlu0 %908, %v879
        %v910 = vpop.permute.xlu0 %909
        %913 = vset.pattern.permute.xlu0 0
        %914 = vperm.xlu0 %913, %v880
        %v915 = vpop.permute.xlu0 %914
        %918 = vset.pattern.permute.xlu0 0
        %919 = vperm.xlu0 %918, %v881
        %v920 = vpop.permute.xlu0 %919
        %v922 = vmul.f32 %v905, %v898
        %v923 = vmul.f32 %v910, %v899
        %v924 = vmul.f32 %v915, %v900
        %v925 = vmul.f32 %v920, %v901
        %v926 = vadd.f32 %v922, 0.0
        %v927 = vadd.f32 %v923, 0.0
        %v928 = vadd.f32 %v924, 0.0
        %v929 = vadd.f32 %v925, 0.0
        %931 = vset.pattern.permute.xlu0 0
        %932 = vperm.xlu0 %931, %v882
        %v933 = vpop.permute.xlu0 %932
        %936 = vset.pattern.permute.xlu0 0
        %937 = vperm.xlu0 %936, %v883
        %v938 = vpop.permute.xlu0 %937
        %941 = vset.pattern.permute.xlu0 0
        %942 = vperm.xlu0 %941, %v884
        %v943 = vpop.permute.xlu0 %942
        %946 = vset.pattern.permute.xlu0 0
        %947 = vperm.xlu0 %946, %v885
        %v948 = vpop.permute.xlu0 %947
        %v950 = vmul.f32 %v933, %v898
        %v951 = vmul.f32 %v938, %v899
        %v952 = vmul.f32 %v943, %v900
        %v953 = vmul.f32 %v948, %v901
        %958 = vrot.lane.b32.xlu0 %v950, 127
        %v959 = vpop.permute.xlu0 %958
        %960 = vrot.lane.b32.xlu0 %v951, 127
        %v961 = vpop.permute.xlu0 %960
        %962 = vrot.lane.b32.xlu0 %v952, 127
        %v963 = vpop.permute.xlu0 %962
        %964 = vrot.lane.b32.xlu0 %v953, 127
        %v965 = vpop.permute.xlu0 %964
        %v970 = vadd.f32 %v926, %v959
        %v971 = vadd.f32 %v927, %v961
        %v972 = vadd.f32 %v928, %v963
        %v973 = vadd.f32 %v929, %v965
        %975 = vset.pattern.permute.xlu0 0
        %976 = vperm.xlu0 %975, %v886
        %v977 = vpop.permute.xlu0 %976
        %980 = vset.pattern.permute.xlu0 0
        %981 = vperm.xlu0 %980, %v887
        %v982 = vpop.permute.xlu0 %981
        %985 = vset.pattern.permute.xlu0 0
        %986 = vperm.xlu0 %985, %v888
        %v987 = vpop.permute.xlu0 %986
        %990 = vset.pattern.permute.xlu0 0
        %991 = vperm.xlu0 %990, %v889
        %v992 = vpop.permute.xlu0 %991
        %v994 = vmul.f32 %v977, %v898
        %v995 = vmul.f32 %v982, %v899
        %v996 = vmul.f32 %v987, %v900
        %v997 = vmul.f32 %v992, %v901
        %1002 = vrot.lane.b32.xlu0 %v994, 126
        %v1003 = vpop.permute.xlu0 %1002
        %1004 = vrot.lane.b32.xlu0 %v995, 126
        %v1005 = vpop.permute.xlu0 %1004
        %1006 = vrot.lane.b32.xlu0 %v996, 126
        %v1007 = vpop.permute.xlu0 %1006
        %1008 = vrot.lane.b32.xlu0 %v997, 126
        %v1009 = vpop.permute.xlu0 %1008
        %v1014 = vadd.f32 %v970, %v1003
        %v1015 = vadd.f32 %v971, %v1005
        %v1016 = vadd.f32 %v972, %v1007
        %v1017 = vadd.f32 %v973, %v1009
        %1019 = vset.pattern.permute.xlu0 0
        %1020 = vperm.xlu0 %1019, %v890
        %v1021 = vpop.permute.xlu0 %1020
        %1024 = vset.pattern.permute.xlu0 0
        %1025 = vperm.xlu0 %1024, %v891
        %v1026 = vpop.permute.xlu0 %1025
        %1029 = vset.pattern.permute.xlu0 0
        %1030 = vperm.xlu0 %1029, %v892
        %v1031 = vpop.permute.xlu0 %1030
        %1034 = vset.pattern.permute.xlu0 0
        %1035 = vperm.xlu0 %1034, %v893
        %v1036 = vpop.permute.xlu0 %1035
        %v1038 = vmul.f32 %v1021, %v898
        %v1039 = vmul.f32 %v1026, %v899
        %v1040 = vmul.f32 %v1031, %v900
        %v1041 = vmul.f32 %v1036, %v901
        %1046 = vrot.lane.b32.xlu0 %v1038, 125
        %v1047 = vpop.permute.xlu0 %1046
        %1048 = vrot.lane.b32.xlu0 %v1039, 125
        %v1049 = vpop.permute.xlu0 %1048
        %1050 = vrot.lane.b32.xlu0 %v1040, 125
        %v1051 = vpop.permute.xlu0 %1050
        %1052 = vrot.lane.b32.xlu0 %v1041, 125
        %v1053 = vpop.permute.xlu0 %1052
        %v1058 = vadd.f32 %v1014, %v1047
        %v1059 = vadd.f32 %v1015, %v1049
        %v1060 = vadd.f32 %v1016, %v1051
        %v1061 = vadd.f32 %v1017, %v1053
        %1063 = vset.pattern.permute.xlu0 0
        %1064 = vperm.xlu0 %1063, %v894
        %v1065 = vpop.permute.xlu0 %1064
        %1068 = vset.pattern.permute.xlu0 0
        %1069 = vperm.xlu0 %1068, %v895
        %v1070 = vpop.permute.xlu0 %1069
        %1073 = vset.pattern.permute.xlu0 0
        %1074 = vperm.xlu0 %1073, %v896
        %v1075 = vpop.permute.xlu0 %1074
        %1078 = vset.pattern.permute.xlu0 0
        %1079 = vperm.xlu0 %1078, %v897
        %v1080 = vpop.permute.xlu0 %1079
        %v1082 = vmul.f32 %v1065, %v898
        %v1083 = vmul.f32 %v1070, %v899
        %v1084 = vmul.f32 %v1075, %v900
        %v1085 = vmul.f32 %v1080, %v901
        %1090 = vrot.lane.b32.xlu0 %v1082, 124
        %v1091 = vpop.permute.xlu0 %1090
        %1092 = vrot.lane.b32.xlu0 %v1083, 124
        %v1093 = vpop.permute.xlu0 %1092
        %1094 = vrot.lane.b32.xlu0 %v1084, 124
        %v1095 = vpop.permute.xlu0 %1094
        %1096 = vrot.lane.b32.xlu0 %v1085, 124
        %v1097 = vpop.permute.xlu0 %1096
        %v1102 = vadd.f32 %v1058, %v1091
        %v1103 = vadd.f32 %v1059, %v1093
        %v1104 = vadd.f32 %v1060, %v1095
        %v1105 = vadd.f32 %v1061, %v1097
        %v1106 = vld [vmem:[%s7] sm:$0xff]
        %v1107 = vld [vmem:[%s7 + $0x8] sm:$0xff]
        %v1108 = vld [vmem:[%s7 + $0x10] sm:$0xff]
        %v1109 = vld [vmem:[%s7 + $0x18] sm:$0xff]
        %1111 = vset.pattern.permute.xlu0 0
        %1112 = vperm.xlu0 %1111, %v1106
        %v1113 = vpop.permute.xlu0 %1112
        %1116 = vset.pattern.permute.xlu0 0
        %1117 = vperm.xlu0 %1116, %v1107
        %v1118 = vpop.permute.xlu0 %1117
        %1121 = vset.pattern.permute.xlu0 0
        %1122 = vperm.xlu0 %1121, %v1108
        %v1123 = vpop.permute.xlu0 %1122
        %1126 = vset.pattern.permute.xlu0 0
        %1127 = vperm.xlu0 %1126, %v1109
        %v1128 = vpop.permute.xlu0 %1127
        %v1130 = vadd.f32 %v1102, %v1113
        %v1131 = vadd.f32 %v1103, %v1118
        %v1132 = vadd.f32 %v1104, %v1123
        %v1133 = vadd.f32 %v1105, %v1128
        %v1134 = vld [vmem:[%s8] sm:$0xff]
        %v1135 = vld [vmem:[%s8 + $0x8] sm:$0xff]
        %v1136 = vld [vmem:[%s8 + $0x10] sm:$0xff]
        %v1137 = vld [vmem:[%s8 + $0x18] sm:$0xff]
        %v1138 = vld [vmem:[%s9] sm:$0xff]
        %v1139 = vld [vmem:[%s9 + $0x8] sm:$0xff]
        %v1140 = vld [vmem:[%s9 + $0x10] sm:$0xff]
        %v1141 = vld [vmem:[%s9 + $0x18] sm:$0xff]
        %v1142 = vsel %vm712, %v1130, 0.0
        %v1143 = vsel %vm712, %v1131, 0.0
        %v1144 = vadd.f32 %v1142, %v1143
        %v1145 = vsel %vm712, %v1132, 0.0
        %v1146 = vadd.f32 %v1144, %v1145
        %v1147 = vsel %vm712, %v1133, 0.0
        %v1148 = vadd.f32 %v1146, %v1147
        %1149 = vadd.xlane.f32.xlu0 %v1148
        %v1150 = vpop.xlane.xlu0 %1149
        %v1151 = vrot.slane %v1150, 4
        %v1152 = vadd.f32 %v1150, %v1151
        %v1153 = vrot.slane %v1152, 2
        %v1154 = vadd.f32 %v1152, %v1153
        %v1155 = vrot.slane %v1154, 1
        %v1156 = vadd.f32 %v1154, %v1155
        %s1157 = vtos %v1156
        %v1158 = vstv %s1157
        %v1159 = vmul.f32 %v1158, 0.0009765625
        %v1160 = vsub.f32 %v1130, %v1159
        %v1161 = vsub.f32 %v1131, %v1159
        %v1162 = vsub.f32 %v1132, %v1159
        %v1163 = vsub.f32 %v1133, %v1159
        %v1164 = vmul.f32 %v1160, %v1160
        %v1165 = vmul.f32 %v1161, %v1161
        %v1166 = vmul.f32 %v1162, %v1162
        %v1167 = vmul.f32 %v1163, %v1163
        %v1168 = vsel %vm712, %v1164, 0.0
        %v1169 = vsel %vm712, %v1165, 0.0
        %v1170 = vadd.f32 %v1168, %v1169
        %v1171 = vsel %vm712, %v1166, 0.0
        %v1172 = vadd.f32 %v1170, %v1171
        %v1173 = vsel %vm712, %v1167, 0.0
        %v1174 = vadd.f32 %v1172, %v1173
        %1175 = vadd.xlane.f32.xlu0 %v1174
        %v1176 = vpop.xlane.xlu0 %1175
        %v1177 = vrot.slane %v1176, 4
        %v1178 = vadd.f32 %v1176, %v1177
        %v1179 = vrot.slane %v1178, 2
        %v1180 = vadd.f32 %v1178, %v1179
        %v1181 = vrot.slane %v1180, 1
        %v1182 = vadd.f32 %v1180, %v1181
        %s1183 = vtos %v1182
        %v1184 = vstv %s1183
        %v1185 = vmul.f32 %v1184, 0.0009765625
        %v1186 = vadd.f32 %v1185, 1e-08
        %v1187 = vrsqrt.pop %v1186
        %v1188 = vmul.f32 %v1187, %v1186
        %v1189 = vmul.f32 %v1188, %v1187
        %v1190 = vmul.f32 0.5, %v1189
        %v1191 = vsub.f32 1.5, %v1190
        %v1192 = vmul.f32 %v1187, %v1191
        %vm1193 = vweird.f32 %v1186
        %vm1194 = vweird.f32 %v1187
        %vm1195 = vmor %vm1193, %vm1194
        %v1196 = vsel %vm1195, %v1187, %v1192
        %v1197 = vmul.f32 %v1160, %v1196
        %v1198 = vmul.f32 %v1161, %v1196
        %v1199 = vmul.f32 %v1162, %v1196
        %v1200 = vmul.f32 %v1163, %v1196
        %1202 = vset.pattern.permute.xlu0 0
        %1203 = vperm.xlu0 %1202, %v1134
        %v1204 = vpop.permute.xlu0 %1203
        %1207 = vset.pattern.permute.xlu0 0
        %1208 = vperm.xlu0 %1207, %v1135
        %v1209 = vpop.permute.xlu0 %1208
        %1212 = vset.pattern.permute.xlu0 0
        %1213 = vperm.xlu0 %1212, %v1136
        %v1214 = vpop.permute.xlu0 %1213
        %1217 = vset.pattern.permute.xlu0 0
        %1218 = vperm.xlu0 %1217, %v1137
        %v1219 = vpop.permute.xlu0 %1218
        %v1221 = vmul.f32 %v1197, %v1204
        %v1222 = vmul.f32 %v1198, %v1209
        %v1223 = vmul.f32 %v1199, %v1214
        %v1224 = vmul.f32 %v1200, %v1219
        %1226 = vset.pattern.permute.xlu0 0
        %1227 = vperm.xlu0 %1226, %v1138
        %v1228 = vpop.permute.xlu0 %1227
        %1231 = vset.pattern.permute.xlu0 0
        %1232 = vperm.xlu0 %1231, %v1139
        %v1233 = vpop.permute.xlu0 %1232
        %1236 = vset.pattern.permute.xlu0 0
        %1237 = vperm.xlu0 %1236, %v1140
        %v1238 = vpop.permute.xlu0 %1237
        %1241 = vset.pattern.permute.xlu0 0
        %1242 = vperm.xlu0 %1241, %v1141
        %v1243 = vpop.permute.xlu0 %1242
        %v1245 = vadd.f32 %v1221, %v1228
        %v1246 = vadd.f32 %v1222, %v1233
        %v1247 = vadd.f32 %v1223, %v1238
        %v1248 = vadd.f32 %v1224, %v1243
        %1249 = vst.msk [vmem:[#allocation2] sm:$0xff] %vm852, 0.0
        %1250 = vst.msk [vmem:[#allocation2 + $0x8] sm:$0xff] %vm852, 0.0
        %1251 = vst.msk [vmem:[#allocation2 + $0x10] sm:$0xff] %vm852, 0.0
        %1252 = vst.msk [vmem:[#allocation2 + $0x18] sm:$0xff] %vm852, 0.0
        %1257 = vrot.lane.b32.xlu0 %v1245, 2
        %v1258 = vpop.permute.xlu0 %1257
        %1259 = vrot.lane.b32.xlu0 %v1246, 2
        %v1260 = vpop.permute.xlu0 %1259
        %1261 = vrot.lane.b32.xlu0 %v1247, 2
        %v1262 = vpop.permute.xlu0 %1261
        %1263 = vrot.lane.b32.xlu0 %v1248, 2
        %v1264 = vpop.permute.xlu0 %1263
        %1269 = vst.msk [vmem:[#allocation2] sm:$0xff] %vm873, %v1258
        %1270 = vst.msk [vmem:[#allocation2 + $0x8] sm:$0xff] %vm873, %v1260
        %1271 = vst.msk [vmem:[#allocation2 + $0x10] sm:$0xff] %vm873, %v1262
        %1272 = vst.msk [vmem:[#allocation2 + $0x18] sm:$0xff] %vm873, %v1264
        %s1273 = scalar_lea.vmem %s6, 160
        %v1274 = vld [vmem:[%s1273] sm:$0xff]
        %v1275 = vld [vmem:[%s1273 + $0x8] sm:$0xff]
        %v1276 = vld [vmem:[%s1273 + $0x10] sm:$0xff]
        %v1277 = vld [vmem:[%s1273 + $0x18] sm:$0xff]
        %v1278 = vld [vmem:[%s1273 + $0x20] sm:$0xff]
        %v1279 = vld [vmem:[%s1273 + $0x28] sm:$0xff]
        %v1280 = vld [vmem:[%s1273 + $0x30] sm:$0xff]
        %v1281 = vld [vmem:[%s1273 + $0x38] sm:$0xff]
        %v1282 = vld [vmem:[%s1273 + $0x40] sm:$0xff]
        %v1283 = vld [vmem:[%s1273 + $0x48] sm:$0xff]
        %v1284 = vld [vmem:[%s1273 + $0x50] sm:$0xff]
        %v1285 = vld [vmem:[%s1273 + $0x58] sm:$0xff]
        %v1286 = vld [vmem:[%s1273 + $0x60] sm:$0xff]
        %v1287 = vld [vmem:[%s1273 + $0x68] sm:$0xff]
        %v1288 = vld [vmem:[%s1273 + $0x70] sm:$0xff]
        %v1289 = vld [vmem:[%s1273 + $0x78] sm:$0xff]
        %v1290 = vld [vmem:[%s1273 + $0x80] sm:$0xff]
        %v1291 = vld [vmem:[%s1273 + $0x88] sm:$0xff]
        %v1292 = vld [vmem:[%s1273 + $0x90] sm:$0xff]
        %v1293 = vld [vmem:[%s1273 + $0x98] sm:$0xff]
        %v1294 = vld [vmem:[#allocation2] sm:$0xff]
        %v1295 = vld [vmem:[#allocation2 + $0x8] sm:$0xff]
        %v1296 = vld [vmem:[#allocation2 + $0x10] sm:$0xff]
        %v1297 = vld [vmem:[#allocation2 + $0x18] sm:$0xff]
        %1299 = vset.pattern.permute.xlu0 0
        %1300 = vperm.xlu0 %1299, %v1274
        %v1301 = vpop.permute.xlu0 %1300
        %1304 = vset.pattern.permute.xlu0 0
        %1305 = vperm.xlu0 %1304, %v1275
        %v1306 = vpop.permute.xlu0 %1305
        %1309 = vset.pattern.permute.xlu0 0
        %1310 = vperm.xlu0 %1309, %v1276
        %v1311 = vpop.permute.xlu0 %1310
        %1314 = vset.pattern.permute.xlu0 0
        %1315 = vperm.xlu0 %1314, %v1277
        %v1316 = vpop.permute.xlu0 %1315
        %v1318 = vmul.f32 %v1301, %v1294
        %v1319 = vmul.f32 %v1306, %v1295
        %v1320 = vmul.f32 %v1311, %v1296
        %v1321 = vmul.f32 %v1316, %v1297
        %v1322 = vadd.f32 %v1318, 0.0
        %v1323 = vadd.f32 %v1319, 0.0
        %v1324 = vadd.f32 %v1320, 0.0
        %v1325 = vadd.f32 %v1321, 0.0
        %1327 = vset.pattern.permute.xlu0 0
        %1328 = vperm.xlu0 %1327, %v1278
        %v1329 = vpop.permute.xlu0 %1328
        %1332 = vset.pattern.permute.xlu0 0
        %1333 = vperm.xlu0 %1332, %v1279
        %v1334 = vpop.permute.xlu0 %1333
        %1337 = vset.pattern.permute.xlu0 0
        %1338 = vperm.xlu0 %1337, %v1280
        %v1339 = vpop.permute.xlu0 %1338
        %1342 = vset.pattern.permute.xlu0 0
        %1343 = vperm.xlu0 %1342, %v1281
        %v1344 = vpop.permute.xlu0 %1343
        %v1346 = vmul.f32 %v1329, %v1294
        %v1347 = vmul.f32 %v1334, %v1295
        %v1348 = vmul.f32 %v1339, %v1296
        %v1349 = vmul.f32 %v1344, %v1297
        %1354 = vrot.lane.b32.xlu0 %v1346, 127
        %v1355 = vpop.permute.xlu0 %1354
        %1356 = vrot.lane.b32.xlu0 %v1347, 127
        %v1357 = vpop.permute.xlu0 %1356
        %1358 = vrot.lane.b32.xlu0 %v1348, 127
        %v1359 = vpop.permute.xlu0 %1358
        %1360 = vrot.lane.b32.xlu0 %v1349, 127
        %v1361 = vpop.permute.xlu0 %1360
        %v1366 = vadd.f32 %v1322, %v1355
        %v1367 = vadd.f32 %v1323, %v1357
        %v1368 = vadd.f32 %v1324, %v1359
        %v1369 = vadd.f32 %v1325, %v1361
        %1371 = vset.pattern.permute.xlu0 0
        %1372 = vperm.xlu0 %1371, %v1282
        %v1373 = vpop.permute.xlu0 %1372
        %1376 = vset.pattern.permute.xlu0 0
        %1377 = vperm.xlu0 %1376, %v1283
        %v1378 = vpop.permute.xlu0 %1377
        %1381 = vset.pattern.permute.xlu0 0
        %1382 = vperm.xlu0 %1381, %v1284
        %v1383 = vpop.permute.xlu0 %1382
        %1386 = vset.pattern.permute.xlu0 0
        %1387 = vperm.xlu0 %1386, %v1285
        %v1388 = vpop.permute.xlu0 %1387
        %v1390 = vmul.f32 %v1373, %v1294
        %v1391 = vmul.f32 %v1378, %v1295
        %v1392 = vmul.f32 %v1383, %v1296
        %v1393 = vmul.f32 %v1388, %v1297
        %1398 = vrot.lane.b32.xlu0 %v1390, 126
        %v1399 = vpop.permute.xlu0 %1398
        %1400 = vrot.lane.b32.xlu0 %v1391, 126
        %v1401 = vpop.permute.xlu0 %1400
        %1402 = vrot.lane.b32.xlu0 %v1392, 126
        %v1403 = vpop.permute.xlu0 %1402
        %1404 = vrot.lane.b32.xlu0 %v1393, 126
        %v1405 = vpop.permute.xlu0 %1404
        %v1410 = vadd.f32 %v1366, %v1399
        %v1411 = vadd.f32 %v1367, %v1401
        %v1412 = vadd.f32 %v1368, %v1403
        %v1413 = vadd.f32 %v1369, %v1405
        %1415 = vset.pattern.permute.xlu0 0
        %1416 = vperm.xlu0 %1415, %v1286
        %v1417 = vpop.permute.xlu0 %1416
        %1420 = vset.pattern.permute.xlu0 0
        %1421 = vperm.xlu0 %1420, %v1287
        %v1422 = vpop.permute.xlu0 %1421
        %1425 = vset.pattern.permute.xlu0 0
        %1426 = vperm.xlu0 %1425, %v1288
        %v1427 = vpop.permute.xlu0 %1426
        %1430 = vset.pattern.permute.xlu0 0
        %1431 = vperm.xlu0 %1430, %v1289
        %v1432 = vpop.permute.xlu0 %1431
        %v1434 = vmul.f32 %v1417, %v1294
        %v1435 = vmul.f32 %v1422, %v1295
        %v1436 = vmul.f32 %v1427, %v1296
        %v1437 = vmul.f32 %v1432, %v1297
        %1442 = vrot.lane.b32.xlu0 %v1434, 125
        %v1443 = vpop.permute.xlu0 %1442
        %1444 = vrot.lane.b32.xlu0 %v1435, 125
        %v1445 = vpop.permute.xlu0 %1444
        %1446 = vrot.lane.b32.xlu0 %v1436, 125
        %v1447 = vpop.permute.xlu0 %1446
        %1448 = vrot.lane.b32.xlu0 %v1437, 125
        %v1449 = vpop.permute.xlu0 %1448
        %v1454 = vadd.f32 %v1410, %v1443
        %v1455 = vadd.f32 %v1411, %v1445
        %v1456 = vadd.f32 %v1412, %v1447
        %v1457 = vadd.f32 %v1413, %v1449
        %1459 = vset.pattern.permute.xlu0 0
        %1460 = vperm.xlu0 %1459, %v1290
        %v1461 = vpop.permute.xlu0 %1460
        %1464 = vset.pattern.permute.xlu0 0
        %1465 = vperm.xlu0 %1464, %v1291
        %v1466 = vpop.permute.xlu0 %1465
        %1469 = vset.pattern.permute.xlu0 0
        %1470 = vperm.xlu0 %1469, %v1292
        %v1471 = vpop.permute.xlu0 %1470
        %1474 = vset.pattern.permute.xlu0 0
        %1475 = vperm.xlu0 %1474, %v1293
        %v1476 = vpop.permute.xlu0 %1475
        %v1478 = vmul.f32 %v1461, %v1294
        %v1479 = vmul.f32 %v1466, %v1295
        %v1480 = vmul.f32 %v1471, %v1296
        %v1481 = vmul.f32 %v1476, %v1297
        %1486 = vrot.lane.b32.xlu0 %v1478, 124
        %v1487 = vpop.permute.xlu0 %1486
        %1488 = vrot.lane.b32.xlu0 %v1479, 124
        %v1489 = vpop.permute.xlu0 %1488
        %1490 = vrot.lane.b32.xlu0 %v1480, 124
        %v1491 = vpop.permute.xlu0 %1490
        %1492 = vrot.lane.b32.xlu0 %v1481, 124
        %v1493 = vpop.permute.xlu0 %1492
        %v1498 = vadd.f32 %v1454, %v1487
        %v1499 = vadd.f32 %v1455, %v1489
        %v1500 = vadd.f32 %v1456, %v1491
        %v1501 = vadd.f32 %v1457, %v1493
        %v1502 = vlaneseq
        %v1503 = vshrl.u32 %v1502, 7
        %v1504 = vadd.s32 %v1503, 8
        %v1505 = vadd.s32 %v1503, 16
        %v1506 = vadd.s32 %v1503, 24
        %v1507 = vlaneseq
        %v1508 = vand.u32 %v1507, 127
        %v1509 = vmul.u32 %v1508, 2
        %vm1510 = vcmp.eq.s32.totalorder %v1503, %v1509
        %vm1511 = vcmp.eq.s32.totalorder %v1504, %v1509
        %vm1512 = vcmp.eq.s32.totalorder %v1505, %v1509
        %vm1513 = vcmp.eq.s32.totalorder %v1506, %v1509
        %v1514 = vsel %vm1510, 1, 0
        %v1515 = vsel %vm1511, 1, 0
        %v1516 = vsel %vm1512, 1, 0
        %v1517 = vsel %vm1513, 1, 0
        %v1518 = vcvt.s32.f32 %v1514
        %v1519 = vcvt.s32.f32 %v1515
        %v1520 = vcvt.s32.f32 %v1516
        %v1521 = vcvt.s32.f32 %v1517
        %s1522 = scalar_lea.vmem %s7, 32
        %v1523 = vld [vmem:[%s1522] sm:$0xff]
        %v1524 = vld [vmem:[%s1522 + $0x8] sm:$0xff]
        %v1525 = vld [vmem:[%s1522 + $0x10] sm:$0xff]
        %v1526 = vld [vmem:[%s1522 + $0x18] sm:$0xff]
        %1528 = vset.pattern.permute.xlu0 0
        %1529 = vperm.xlu0 %1528, %v1523
        %v1530 = vpop.permute.xlu0 %1529
        %1533 = vset.pattern.permute.xlu0 0
        %1534 = vperm.xlu0 %1533, %v1524
        %v1535 = vpop.permute.xlu0 %1534
        %1538 = vset.pattern.permute.xlu0 0
        %1539 = vperm.xlu0 %1538, %v1525
        %v1540 = vpop.permute.xlu0 %1539
        %1543 = vset.pattern.permute.xlu0 0
        %1544 = vperm.xlu0 %1543, %v1526
        %v1545 = vpop.permute.xlu0 %1544
        %v1548 = vsel %vm712, %v1498, 0
        %v1551 = vsel %vm712, %v1499, 0
        %v1554 = vsel %vm712, %v1500, 0
        %v1557 = vsel %vm712, %v1501, 0
        %1559 = vmatpush.msra.mxu0 0.0
        %1560 = vmatpush.msra.mxu0 0.0
        %1561 = vmatpush.msra.mxu0 0.0
        %1562 = vmatpush.msra.mxu0 0.0
        %1563 = vmatpush.msra.mxu0 0.0
        %1564 = vmatpush.msra.mxu0 0.0
        %1565 = vmatpush.msra.mxu0 0.0
        %1566 = vmatpush.msra.mxu0 0.0
        %1567 = vmatpush.msra.mxu0 0.0
        %1568 = vmatpush.msra.mxu0 0.0
        %1569 = vmatpush.msra.mxu0 0.0
        %1570 = vmatpush.msra.mxu0 0.0
        %1571 = vmatpush.msra.mxu0 %v1521
        %1572 = vmatpush.msra.mxu0 %v1520
        %1573 = vmatpush.msra.mxu0 %v1519
        %1574 = vmatpush.msra.mxu0 %v1518
        %1575 = vmatmul.f32.gmra.mxu0 %v1548
        %v1576 = vpop.f32.mrf.mxu0
        %v1577 = vadd.f32 %v1530, %v1576
        %1578 = vmatmul.f32.gmra.mxu0 %v1551
        %v1579 = vpop.f32.mrf.mxu0
        %v1580 = vadd.f32 %v1535, %v1579
        %1581 = vmatmul.f32.gmra.mxu0 %v1554
        %v1582 = vpop.f32.mrf.mxu0
        %v1583 = vadd.f32 %v1540, %v1582
        %1584 = vmatmul.f32.gmra.mxu0 %v1557
        %v1585 = vpop.f32.mrf.mxu0
        %v1586 = vadd.f32 %v1545, %v1585
        %1587 = vdwg.mxu0
        %s1588 = scalar_lea.vmem %s8, 32
        %v1589 = vld [vmem:[%s1588] sm:$0xff]
        %v1590 = vld [vmem:[%s1588 + $0x8] sm:$0xff]
        %v1591 = vld [vmem:[%s1588 + $0x10] sm:$0xff]
        %v1592 = vld [vmem:[%s1588 + $0x18] sm:$0xff]
        %s1593 = scalar_lea.vmem %s9, 32
        %v1594 = vld [vmem:[%s1593] sm:$0xff]
        %v1595 = vld [vmem:[%s1593 + $0x8] sm:$0xff]
        %v1596 = vld [vmem:[%s1593 + $0x10] sm:$0xff]
        %v1597 = vld [vmem:[%s1593 + $0x18] sm:$0xff]
        %v1598 = vsel %vm658, %v1577, 0.0
        %v1599 = vsel %vm658, %v1580, 0.0
        %v1600 = vadd.f32 %v1598, %v1599
        %v1601 = vsel %vm658, %v1583, 0.0
        %v1602 = vadd.f32 %v1600, %v1601
        %v1603 = vsel %vm658, %v1586, 0.0
        %v1604 = vadd.f32 %v1602, %v1603
        %1605 = vadd.xlane.f32.xlu0 %v1604
        %v1606 = vpop.xlane.xlu0 %1605
        %v1607 = vrot.slane %v1606, 4
        %v1608 = vadd.f32 %v1606, %v1607
        %v1609 = vrot.slane %v1608, 2
        %v1610 = vadd.f32 %v1608, %v1609
        %v1611 = vrot.slane %v1610, 1
        %v1612 = vadd.f32 %v1610, %v1611
        %s1613 = vtos %v1612
        %v1614 = vstv %s1613
        %v1615 = vmul.f32 %v1614, 0.001953125
        %v1616 = vsub.f32 %v1577, %v1615
        %v1617 = vsub.f32 %v1580, %v1615
        %v1618 = vsub.f32 %v1583, %v1615
        %v1619 = vsub.f32 %v1586, %v1615
        %v1620 = vmul.f32 %v1616, %v1616
        %v1621 = vmul.f32 %v1617, %v1617
        %v1622 = vmul.f32 %v1618, %v1618
        %v1623 = vmul.f32 %v1619, %v1619
        %v1624 = vsel %vm658, %v1620, 0.0
        %v1625 = vsel %vm658, %v1621, 0.0
        %v1626 = vadd.f32 %v1624, %v1625
        %v1627 = vsel %vm658, %v1622, 0.0
        %v1628 = vadd.f32 %v1626, %v1627
        %v1629 = vsel %vm658, %v1623, 0.0
        %v1630 = vadd.f32 %v1628, %v1629
        %1631 = vadd.xlane.f32.xlu0 %v1630
        %v1632 = vpop.xlane.xlu0 %1631
        %v1633 = vrot.slane %v1632, 4
        %v1634 = vadd.f32 %v1632, %v1633
        %v1635 = vrot.slane %v1634, 2
        %v1636 = vadd.f32 %v1634, %v1635
        %v1637 = vrot.slane %v1636, 1
        %v1638 = vadd.f32 %v1636, %v1637
        %s1639 = vtos %v1638
        %v1640 = vstv %s1639
        %v1641 = vmul.f32 %v1640, 0.001953125
        %v1642 = vadd.f32 %v1641, 1e-08
        %v1643 = vrsqrt.pop %v1642
        %v1644 = vmul.f32 %v1643, %v1642
        %v1645 = vmul.f32 %v1644, %v1643
        %v1646 = vmul.f32 0.5, %v1645
        %v1647 = vsub.f32 1.5, %v1646
        %v1648 = vmul.f32 %v1643, %v1647
        %vm1649 = vweird.f32 %v1642
        %vm1650 = vweird.f32 %v1643
        %vm1651 = vmor %vm1649, %vm1650
        %v1652 = vsel %vm1651, %v1643, %v1648
        %v1653 = vmul.f32 %v1616, %v1652
        %v1654 = vmul.f32 %v1617, %v1652
        %v1655 = vmul.f32 %v1618, %v1652
        %v1656 = vmul.f32 %v1619, %v1652
        %1658 = vset.pattern.permute.xlu0 0
        %1659 = vperm.xlu0 %1658, %v1589
        %v1660 = vpop.permute.xlu0 %1659
        %1663 = vset.pattern.permute.xlu0 0
        %1664 = vperm.xlu0 %1663, %v1590
        %v1665 = vpop.permute.xlu0 %1664
        %1668 = vset.pattern.permute.xlu0 0
        %1669 = vperm.xlu0 %1668, %v1591
        %v1670 = vpop.permute.xlu0 %1669
        %1673 = vset.pattern.permute.xlu0 0
        %1674 = vperm.xlu0 %1673, %v1592
        %v1675 = vpop.permute.xlu0 %1674
        %v1677 = vmul.f32 %v1653, %v1660
        %v1678 = vmul.f32 %v1654, %v1665
        %v1679 = vmul.f32 %v1655, %v1670
        %v1680 = vmul.f32 %v1656, %v1675
        %1682 = vset.pattern.permute.xlu0 0
        %1683 = vperm.xlu0 %1682, %v1594
        %v1684 = vpop.permute.xlu0 %1683
        %1687 = vset.pattern.permute.xlu0 0
        %1688 = vperm.xlu0 %1687, %v1595
        %v1689 = vpop.permute.xlu0 %1688
        %1692 = vset.pattern.permute.xlu0 0
        %1693 = vperm.xlu0 %1692, %v1596
        %v1694 = vpop.permute.xlu0 %1693
        %1697 = vset.pattern.permute.xlu0 0
        %1698 = vperm.xlu0 %1697, %v1597
        %v1699 = vpop.permute.xlu0 %1698
        %v1701 = vadd.f32 %v1677, %v1684
        %v1702 = vadd.f32 %v1678, %v1689
        %v1703 = vadd.f32 %v1679, %v1694
        %v1704 = vadd.f32 %v1680, %v1699
        %1705 = vst.msk [vmem:[#allocation2] sm:$0xff] %vm852, 0.0
        %1706 = vst.msk [vmem:[#allocation2 + $0x8] sm:$0xff] %vm852, 0.0
        %1707 = vst.msk [vmem:[#allocation2 + $0x10] sm:$0xff] %vm852, 0.0
        %1708 = vst.msk [vmem:[#allocation2 + $0x18] sm:$0xff] %vm852, 0.0
        %1713 = vrot.lane.b32.xlu0 %v1701, 2
        %v1714 = vpop.permute.xlu0 %1713
        %1715 = vrot.lane.b32.xlu0 %v1702, 2
        %v1716 = vpop.permute.xlu0 %1715
        %1717 = vrot.lane.b32.xlu0 %v1703, 2
        %v1718 = vpop.permute.xlu0 %1717
        %1719 = vrot.lane.b32.xlu0 %v1704, 2
        %v1720 = vpop.permute.xlu0 %1719
        %vm1725 = vcmask 146448
        %1726 = vst.msk [vmem:[#allocation2] sm:$0xff] %vm1725, %v1714
        %1727 = vst.msk [vmem:[#allocation2 + $0x8] sm:$0xff] %vm1725, %v1716
        %1728 = vst.msk [vmem:[#allocation2 + $0x10] sm:$0xff] %vm1725, %v1718
        %1729 = vst.msk [vmem:[#allocation2 + $0x18] sm:$0xff] %vm1725, %v1720
        %s1730 = scalar_lea.vmem %s6, 320
        %v1731 = vld [vmem:[%s1730] sm:$0xff]
        %v1732 = vld [vmem:[%s1730 + $0x8] sm:$0xff]
        %v1733 = vld [vmem:[%s1730 + $0x10] sm:$0xff]
        %v1734 = vld [vmem:[%s1730 + $0x18] sm:$0xff]
        %v1735 = vld [vmem:[%s1730 + $0x20] sm:$0xff]
        %v1736 = vld [vmem:[%s1730 + $0x28] sm:$0xff]
        %v1737 = vld [vmem:[%s1730 + $0x30] sm:$0xff]
        %v1738 = vld [vmem:[%s1730 + $0x38] sm:$0xff]
        %v1739 = vld [vmem:[%s1730 + $0x40] sm:$0xff]
        %v1740 = vld [vmem:[%s1730 + $0x48] sm:$0xff]
        %v1741 = vld [vmem:[%s1730 + $0x50] sm:$0xff]
        %v1742 = vld [vmem:[%s1730 + $0x58] sm:$0xff]
        %v1743 = vld [vmem:[%s1730 + $0x60] sm:$0xff]
        %v1744 = vld [vmem:[%s1730 + $0x68] sm:$0xff]
        %v1745 = vld [vmem:[%s1730 + $0x70] sm:$0xff]
        %v1746 = vld [vmem:[%s1730 + $0x78] sm:$0xff]
        %v1747 = vld [vmem:[%s1730 + $0x80] sm:$0xff]
        %v1748 = vld [vmem:[%s1730 + $0x88] sm:$0xff]
        %v1749 = vld [vmem:[%s1730 + $0x90] sm:$0xff]
        %v1750 = vld [vmem:[%s1730 + $0x98] sm:$0xff]
        %v1751 = vld [vmem:[#allocation2] sm:$0xff]
        %v1752 = vld [vmem:[#allocation2 + $0x8] sm:$0xff]
        %v1753 = vld [vmem:[#allocation2 + $0x10] sm:$0xff]
        %v1754 = vld [vmem:[#allocation2 + $0x18] sm:$0xff]
        %1756 = vset.pattern.permute.xlu0 0
        %1757 = vperm.xlu0 %1756, %v1731
        %v1758 = vpop.permute.xlu0 %1757
        %1761 = vset.pattern.permute.xlu0 0
        %1762 = vperm.xlu0 %1761, %v1732
        %v1763 = vpop.permute.xlu0 %1762
        %1766 = vset.pattern.permute.xlu0 0
        %1767 = vperm.xlu0 %1766, %v1733
        %v1768 = vpop.permute.xlu0 %1767
        %1771 = vset.pattern.permute.xlu0 0
        %1772 = vperm.xlu0 %1771, %v1734
        %v1773 = vpop.permute.xlu0 %1772
        %v1775 = vmul.f32 %v1758, %v1751
        %v1776 = vmul.f32 %v1763, %v1752
        %v1777 = vmul.f32 %v1768, %v1753
        %v1778 = vmul.f32 %v1773, %v1754
        %v1779 = vadd.f32 %v1775, 0.0
        %v1780 = vadd.f32 %v1776, 0.0
        %v1781 = vadd.f32 %v1777, 0.0
        %v1782 = vadd.f32 %v1778, 0.0
        %1784 = vset.pattern.permute.xlu0 0
        %1785 = vperm.xlu0 %1784, %v1735
        %v1786 = vpop.permute.xlu0 %1785
        %1789 = vset.pattern.permute.xlu0 0
        %1790 = vperm.xlu0 %1789, %v1736
        %v1791 = vpop.permute.xlu0 %1790
        %1794 = vset.pattern.permute.xlu0 0
        %1795 = vperm.xlu0 %1794, %v1737
        %v1796 = vpop.permute.xlu0 %1795
        %1799 = vset.pattern.permute.xlu0 0
        %1800 = vperm.xlu0 %1799, %v1738
        %v1801 = vpop.permute.xlu0 %1800
        %v1803 = vmul.f32 %v1786, %v1751
        %v1804 = vmul.f32 %v1791, %v1752
        %v1805 = vmul.f32 %v1796, %v1753
        %v1806 = vmul.f32 %v1801, %v1754
        %1811 = vrot.lane.b32.xlu0 %v1803, 127
        %v1812 = vpop.permute.xlu0 %1811
        %1813 = vrot.lane.b32.xlu0 %v1804, 127
        %v1814 = vpop.permute.xlu0 %1813
        %1815 = vrot.lane.b32.xlu0 %v1805, 127
        %v1816 = vpop.permute.xlu0 %1815
        %1817 = vrot.lane.b32.xlu0 %v1806, 127
        %v1818 = vpop.permute.xlu0 %1817
        %v1823 = vadd.f32 %v1779, %v1812
        %v1824 = vadd.f32 %v1780, %v1814
        %v1825 = vadd.f32 %v1781, %v1816
        %v1826 = vadd.f32 %v1782, %v1818
        %1828 = vset.pattern.permute.xlu0 0
        %1829 = vperm.xlu0 %1828, %v1739
        %v1830 = vpop.permute.xlu0 %1829
        %1833 = vset.pattern.permute.xlu0 0
        %1834 = vperm.xlu0 %1833, %v1740
        %v1835 = vpop.permute.xlu0 %1834
        %1838 = vset.pattern.permute.xlu0 0
        %1839 = vperm.xlu0 %1838, %v1741
        %v1840 = vpop.permute.xlu0 %1839
        %1843 = vset.pattern.permute.xlu0 0
        %1844 = vperm.xlu0 %1843, %v1742
        %v1845 = vpop.permute.xlu0 %1844
        %v1847 = vmul.f32 %v1830, %v1751
        %v1848 = vmul.f32 %v1835, %v1752
        %v1849 = vmul.f32 %v1840, %v1753
        %v1850 = vmul.f32 %v1845, %v1754
        %1855 = vrot.lane.b32.xlu0 %v1847, 126
        %v1856 = vpop.permute.xlu0 %1855
        %1857 = vrot.lane.b32.xlu0 %v1848, 126
        %v1858 = vpop.permute.xlu0 %1857
        %1859 = vrot.lane.b32.xlu0 %v1849, 126
        %v1860 = vpop.permute.xlu0 %1859
        %1861 = vrot.lane.b32.xlu0 %v1850, 126
        %v1862 = vpop.permute.xlu0 %1861
        %v1867 = vadd.f32 %v1823, %v1856
        %v1868 = vadd.f32 %v1824, %v1858
        %v1869 = vadd.f32 %v1825, %v1860
        %v1870 = vadd.f32 %v1826, %v1862
        %1872 = vset.pattern.permute.xlu0 0
        %1873 = vperm.xlu0 %1872, %v1743
        %v1874 = vpop.permute.xlu0 %1873
        %1877 = vset.pattern.permute.xlu0 0
        %1878 = vperm.xlu0 %1877, %v1744
        %v1879 = vpop.permute.xlu0 %1878
        %1882 = vset.pattern.permute.xlu0 0
        %1883 = vperm.xlu0 %1882, %v1745
        %v1884 = vpop.permute.xlu0 %1883
        %1887 = vset.pattern.permute.xlu0 0
        %1888 = vperm.xlu0 %1887, %v1746
        %v1889 = vpop.permute.xlu0 %1888
        %v1891 = vmul.f32 %v1874, %v1751
        %v1892 = vmul.f32 %v1879, %v1752
        %v1893 = vmul.f32 %v1884, %v1753
        %v1894 = vmul.f32 %v1889, %v1754
        %1899 = vrot.lane.b32.xlu0 %v1891, 125
        %v1900 = vpop.permute.xlu0 %1899
        %1901 = vrot.lane.b32.xlu0 %v1892, 125
        %v1902 = vpop.permute.xlu0 %1901
        %1903 = vrot.lane.b32.xlu0 %v1893, 125
        %v1904 = vpop.permute.xlu0 %1903
        %1905 = vrot.lane.b32.xlu0 %v1894, 125
        %v1906 = vpop.permute.xlu0 %1905
        %v1911 = vadd.f32 %v1867, %v1900
        %v1912 = vadd.f32 %v1868, %v1902
        %v1913 = vadd.f32 %v1869, %v1904
        %v1914 = vadd.f32 %v1870, %v1906
        %1916 = vset.pattern.permute.xlu0 0
        %1917 = vperm.xlu0 %1916, %v1747
        %v1918 = vpop.permute.xlu0 %1917
        %1921 = vset.pattern.permute.xlu0 0
        %1922 = vperm.xlu0 %1921, %v1748
        %v1923 = vpop.permute.xlu0 %1922
        %1926 = vset.pattern.permute.xlu0 0
        %1927 = vperm.xlu0 %1926, %v1749
        %v1928 = vpop.permute.xlu0 %1927
        %1931 = vset.pattern.permute.xlu0 0
        %1932 = vperm.xlu0 %1931, %v1750
        %v1933 = vpop.permute.xlu0 %1932
        %v1935 = vmul.f32 %v1918, %v1751
        %v1936 = vmul.f32 %v1923, %v1752
        %v1937 = vmul.f32 %v1928, %v1753
        %v1938 = vmul.f32 %v1933, %v1754
        %1943 = vrot.lane.b32.xlu0 %v1935, 124
        %v1944 = vpop.permute.xlu0 %1943
        %1945 = vrot.lane.b32.xlu0 %v1936, 124
        %v1946 = vpop.permute.xlu0 %1945
        %1947 = vrot.lane.b32.xlu0 %v1937, 124
        %v1948 = vpop.permute.xlu0 %1947
        %1949 = vrot.lane.b32.xlu0 %v1938, 124
        %v1950 = vpop.permute.xlu0 %1949
        %v1955 = vadd.f32 %v1911, %v1944
        %v1956 = vadd.f32 %v1912, %v1946
        %v1957 = vadd.f32 %v1913, %v1948
        %v1958 = vadd.f32 %v1914, %v1950
        %s1959 = scalar_lea.vmem %s7, 64
        %v1960 = vld [vmem:[%s1959] sm:$0xff]
        %v1961 = vld [vmem:[%s1959 + $0x8] sm:$0xff]
        %v1962 = vld [vmem:[%s1959 + $0x10] sm:$0xff]
        %v1963 = vld [vmem:[%s1959 + $0x18] sm:$0xff]
        %1965 = vset.pattern.permute.xlu0 0
        %1966 = vperm.xlu0 %1965, %v1960
        %v1967 = vpop.permute.xlu0 %1966
        %1970 = vset.pattern.permute.xlu0 0
        %1971 = vperm.xlu0 %1970, %v1961
        %v1972 = vpop.permute.xlu0 %1971
        %1975 = vset.pattern.permute.xlu0 0
        %1976 = vperm.xlu0 %1975, %v1962
        %v1977 = vpop.permute.xlu0 %1976
        %1980 = vset.pattern.permute.xlu0 0
        %1981 = vperm.xlu0 %1980, %v1963
        %v1982 = vpop.permute.xlu0 %1981
        %v1985 = vsel %vm658, %v1955, 0
        %v1988 = vsel %vm658, %v1956, 0
        %v1991 = vsel %vm658, %v1957, 0
        %v1994 = vsel %vm658, %v1958, 0
        %1996 = vmatpush.msra.mxu0 0.0
        %1997 = vmatpush.msra.mxu0 0.0
        %1998 = vmatpush.msra.mxu0 0.0
        %1999 = vmatpush.msra.mxu0 0.0
        %2000 = vmatpush.msra.mxu0 0.0
        %2001 = vmatpush.msra.mxu0 0.0
        %2002 = vmatpush.msra.mxu0 0.0
        %2003 = vmatpush.msra.mxu0 0.0
        %2004 = vmatpush.msra.mxu0 0.0
        %2005 = vmatpush.msra.mxu0 0.0
        %2006 = vmatpush.msra.mxu0 0.0
        %2007 = vmatpush.msra.mxu0 0.0
        %2008 = vmatpush.msra.mxu0 0.0
        %2009 = vmatpush.msra.mxu0 0.0
        %2010 = vmatpush.msra.mxu0 %v1519
        %2011 = vmatpush.msra.mxu0 %v1518
        %2012 = vmatmul.f32.gmra.mxu0 %v1985
        %v2013 = vpop.f32.mrf.mxu0
        %v2014 = vadd.f32 %v1967, %v2013
        %2015 = vmatmul.f32.gmra.mxu0 %v1988
        %v2016 = vpop.f32.mrf.mxu0
        %v2017 = vadd.f32 %v1972, %v2016
        %2018 = vmatmul.f32.gmra.mxu0 %v1991
        %v2019 = vpop.f32.mrf.mxu0
        %v2020 = vadd.f32 %v1977, %v2019
        %2021 = vmatmul.f32.gmra.mxu0 %v1994
        %v2022 = vpop.f32.mrf.mxu0
        %v2023 = vadd.f32 %v1982, %v2022
        %2024 = vdwg.mxu0
        %s2025 = scalar_lea.vmem %s8, 64
        %v2026 = vld [vmem:[%s2025] sm:$0xff]
        %v2027 = vld [vmem:[%s2025 + $0x8] sm:$0xff]
        %v2028 = vld [vmem:[%s2025 + $0x10] sm:$0xff]
        %v2029 = vld [vmem:[%s2025 + $0x18] sm:$0xff]
        %s2030 = scalar_lea.vmem %s9, 64
        %v2031 = vld [vmem:[%s2030] sm:$0xff]
        %v2032 = vld [vmem:[%s2030 + $0x8] sm:$0xff]
        %v2033 = vld [vmem:[%s2030 + $0x10] sm:$0xff]
        %v2034 = vld [vmem:[%s2030 + $0x18] sm:$0xff]
        %vm2035 = vcmask 64512
        %v2036 = vsel %vm2035, %v2014, 0.0
        %v2037 = vsel %vm2035, %v2017, 0.0
        %v2038 = vadd.f32 %v2036, %v2037
        %v2039 = vsel %vm2035, %v2020, 0.0
        %v2040 = vadd.f32 %v2038, %v2039
        %v2041 = vsel %vm2035, %v2023, 0.0
        %v2042 = vadd.f32 %v2040, %v2041
        %2043 = vadd.xlane.f32.xlu0 %v2042
        %v2044 = vpop.xlane.xlu0 %2043
        %v2045 = vrot.slane %v2044, 4
        %v2046 = vadd.f32 %v2044, %v2045
        %v2047 = vrot.slane %v2046, 2
        %v2048 = vadd.f32 %v2046, %v2047
        %v2049 = vrot.slane %v2048, 1
        %v2050 = vadd.f32 %v2048, %v2049
        %s2051 = vtos %v2050
        %v2052 = vstv %s2051
        %v2053 = vmul.f32 %v2052, 0.00390625
        %v2054 = vsub.f32 %v2014, %v2053
        %v2055 = vsub.f32 %v2017, %v2053
        %v2056 = vsub.f32 %v2020, %v2053
        %v2057 = vsub.f32 %v2023, %v2053
        %v2058 = vmul.f32 %v2054, %v2054
        %v2059 = vmul.f32 %v2055, %v2055
        %v2060 = vmul.f32 %v2056, %v2056
        %v2061 = vmul.f32 %v2057, %v2057
        %v2062 = vsel %vm2035, %v2058, 0.0
        %v2063 = vsel %vm2035, %v2059, 0.0
        %v2064 = vadd.f32 %v2062, %v2063
        %v2065 = vsel %vm2035, %v2060, 0.0
        %v2066 = vadd.f32 %v2064, %v2065
        %v2067 = vsel %vm2035, %v2061, 0.0
        %v2068 = vadd.f32 %v2066, %v2067
        %2069 = vadd.xlane.f32.xlu0 %v2068
        %v2070 = vpop.xlane.xlu0 %2069
        %v2071 = vrot.slane %v2070, 4
        %v2072 = vadd.f32 %v2070, %v2071
        %v2073 = vrot.slane %v2072, 2
        %v2074 = vadd.f32 %v2072, %v2073
        %v2075 = vrot.slane %v2074, 1
        %v2076 = vadd.f32 %v2074, %v2075
        %s2077 = vtos %v2076
        %v2078 = vstv %s2077
        %v2079 = vmul.f32 %v2078, 0.00390625
        %v2080 = vadd.f32 %v2079, 1e-08
        %v2081 = vrsqrt.pop %v2080
        %v2082 = vmul.f32 %v2081, %v2080
        %v2083 = vmul.f32 %v2082, %v2081
        %v2084 = vmul.f32 0.5, %v2083
        %v2085 = vsub.f32 1.5, %v2084
        %v2086 = vmul.f32 %v2081, %v2085
        %vm2087 = vweird.f32 %v2080
        %vm2088 = vweird.f32 %v2081
        %vm2089 = vmor %vm2087, %vm2088
        %v2090 = vsel %vm2089, %v2081, %v2086
        %v2091 = vmul.f32 %v2054, %v2090
        %v2092 = vmul.f32 %v2055, %v2090
        %v2093 = vmul.f32 %v2056, %v2090
        %v2094 = vmul.f32 %v2057, %v2090
        %2096 = vset.pattern.permute.xlu0 0
        %2097 = vperm.xlu0 %2096, %v2026
        %v2098 = vpop.permute.xlu0 %2097
        %2101 = vset.pattern.permute.xlu0 0
        %2102 = vperm.xlu0 %2101, %v2027
        %v2103 = vpop.permute.xlu0 %2102
        %2106 = vset.pattern.permute.xlu0 0
        %2107 = vperm.xlu0 %2106, %v2028
        %v2108 = vpop.permute.xlu0 %2107
        %2111 = vset.pattern.permute.xlu0 0
        %2112 = vperm.xlu0 %2111, %v2029
        %v2113 = vpop.permute.xlu0 %2112
        %v2115 = vmul.f32 %v2091, %v2098
        %v2116 = vmul.f32 %v2092, %v2103
        %v2117 = vmul.f32 %v2093, %v2108
        %v2118 = vmul.f32 %v2094, %v2113
        %2120 = vset.pattern.permute.xlu0 0
        %2121 = vperm.xlu0 %2120, %v2031
        %v2122 = vpop.permute.xlu0 %2121
        %2125 = vset.pattern.permute.xlu0 0
        %2126 = vperm.xlu0 %2125, %v2032
        %v2127 = vpop.permute.xlu0 %2126
        %2130 = vset.pattern.permute.xlu0 0
        %2131 = vperm.xlu0 %2130, %v2033
        %v2132 = vpop.permute.xlu0 %2131
        %2135 = vset.pattern.permute.xlu0 0
        %2136 = vperm.xlu0 %2135, %v2034
        %v2137 = vpop.permute.xlu0 %2136
        %v2139 = vadd.f32 %v2115, %v2122
        %v2140 = vadd.f32 %v2116, %v2127
        %v2141 = vadd.f32 %v2117, %v2132
        %v2142 = vadd.f32 %v2118, %v2137
        %2143 = vst.msk [vmem:[#allocation2] sm:$0xff] %vm852, 0.0
        %2144 = vst.msk [vmem:[#allocation2 + $0x8] sm:$0xff] %vm852, 0.0
        %2145 = vst.msk [vmem:[#allocation2 + $0x10] sm:$0xff] %vm852, 0.0
        %2146 = vst.msk [vmem:[#allocation2 + $0x18] sm:$0xff] %vm852, 0.0
        %2151 = vrot.lane.b32.xlu0 %v2139, 2
        %v2152 = vpop.permute.xlu0 %2151
        %2153 = vrot.lane.b32.xlu0 %v2140, 2
        %v2154 = vpop.permute.xlu0 %2153
        %2155 = vrot.lane.b32.xlu0 %v2141, 2
        %v2156 = vpop.permute.xlu0 %2155
        %2157 = vrot.lane.b32.xlu0 %v2142, 2
        %v2158 = vpop.permute.xlu0 %2157
        %vm2163 = vcmask 80912
        %2164 = vst.msk [vmem:[#allocation2] sm:$0xff] %vm2163, %v2152
        %2165 = vst.msk [vmem:[#allocation2 + $0x8] sm:$0xff] %vm2163, %v2154
        %2166 = vst.msk [vmem:[#allocation2 + $0x10] sm:$0xff] %vm2163, %v2156
        %2167 = vst.msk [vmem:[#allocation2 + $0x18] sm:$0xff] %vm2163, %v2158
        %s2168 = scalar_lea.vmem %s6, 480
        %v2169 = vld [vmem:[%s2168] sm:$0xff]
        %v2170 = vld [vmem:[%s2168 + $0x8] sm:$0xff]
        %v2171 = vld [vmem:[%s2168 + $0x10] sm:$0xff]
        %v2172 = vld [vmem:[%s2168 + $0x18] sm:$0xff]
        %v2173 = vld [vmem:[%s2168 + $0x20] sm:$0xff]
        %v2174 = vld [vmem:[%s2168 + $0x28] sm:$0xff]
        %v2175 = vld [vmem:[%s2168 + $0x30] sm:$0xff]
        %v2176 = vld [vmem:[%s2168 + $0x38] sm:$0xff]
        %v2177 = vld [vmem:[%s2168 + $0x40] sm:$0xff]
        %v2178 = vld [vmem:[%s2168 + $0x48] sm:$0xff]
        %v2179 = vld [vmem:[%s2168 + $0x50] sm:$0xff]
        %v2180 = vld [vmem:[%s2168 + $0x58] sm:$0xff]
        %v2181 = vld [vmem:[%s2168 + $0x60] sm:$0xff]
        %v2182 = vld [vmem:[%s2168 + $0x68] sm:$0xff]
        %v2183 = vld [vmem:[%s2168 + $0x70] sm:$0xff]
        %v2184 = vld [vmem:[%s2168 + $0x78] sm:$0xff]
        %v2185 = vld [vmem:[%s2168 + $0x80] sm:$0xff]
        %v2186 = vld [vmem:[%s2168 + $0x88] sm:$0xff]
        %v2187 = vld [vmem:[%s2168 + $0x90] sm:$0xff]
        %v2188 = vld [vmem:[%s2168 + $0x98] sm:$0xff]
        %v2189 = vld [vmem:[#allocation2] sm:$0xff]
        %v2190 = vld [vmem:[#allocation2 + $0x8] sm:$0xff]
        %v2191 = vld [vmem:[#allocation2 + $0x10] sm:$0xff]
        %v2192 = vld [vmem:[#allocation2 + $0x18] sm:$0xff]
        %2194 = vset.pattern.permute.xlu0 0
        %2195 = vperm.xlu0 %2194, %v2169
        %v2196 = vpop.permute.xlu0 %2195
        %2199 = vset.pattern.permute.xlu0 0
        %2200 = vperm.xlu0 %2199, %v2170
        %v2201 = vpop.permute.xlu0 %2200
        %2204 = vset.pattern.permute.xlu0 0
        %2205 = vperm.xlu0 %2204, %v2171
        %v2206 = vpop.permute.xlu0 %2205
        %2209 = vset.pattern.permute.xlu0 0
        %2210 = vperm.xlu0 %2209, %v2172
        %v2211 = vpop.permute.xlu0 %2210
        %v2213 = vmul.f32 %v2196, %v2189
        %v2214 = vmul.f32 %v2201, %v2190
        %v2215 = vmul.f32 %v2206, %v2191
        %v2216 = vmul.f32 %v2211, %v2192
        %v2217 = vadd.f32 %v2213, 0.0
        %v2218 = vadd.f32 %v2214, 0.0
        %v2219 = vadd.f32 %v2215, 0.0
        %v2220 = vadd.f32 %v2216, 0.0
        %2222 = vset.pattern.permute.xlu0 0
        %2223 = vperm.xlu0 %2222, %v2173
        %v2224 = vpop.permute.xlu0 %2223
        %2227 = vset.pattern.permute.xlu0 0
        %2228 = vperm.xlu0 %2227, %v2174
        %v2229 = vpop.permute.xlu0 %2228
        %2232 = vset.pattern.permute.xlu0 0
        %2233 = vperm.xlu0 %2232, %v2175
        %v2234 = vpop.permute.xlu0 %2233
        %2237 = vset.pattern.permute.xlu0 0
        %2238 = vperm.xlu0 %2237, %v2176
        %v2239 = vpop.permute.xlu0 %2238
        %v2241 = vmul.f32 %v2224, %v2189
        %v2242 = vmul.f32 %v2229, %v2190
        %v2243 = vmul.f32 %v2234, %v2191
        %v2244 = vmul.f32 %v2239, %v2192
        %2249 = vrot.lane.b32.xlu0 %v2241, 127
        %v2250 = vpop.permute.xlu0 %2249
        %2251 = vrot.lane.b32.xlu0 %v2242, 127
        %v2252 = vpop.permute.xlu0 %2251
        %2253 = vrot.lane.b32.xlu0 %v2243, 127
        %v2254 = vpop.permute.xlu0 %2253
        %2255 = vrot.lane.b32.xlu0 %v2244, 127
        %v2256 = vpop.permute.xlu0 %2255
        %v2261 = vadd.f32 %v2217, %v2250
        %v2262 = vadd.f32 %v2218, %v2252
        %v2263 = vadd.f32 %v2219, %v2254
        %v2264 = vadd.f32 %v2220, %v2256
        %2266 = vset.pattern.permute.xlu0 0
        %2267 = vperm.xlu0 %2266, %v2177
        %v2268 = vpop.permute.xlu0 %2267
        %2271 = vset.pattern.permute.xlu0 0
        %2272 = vperm.xlu0 %2271, %v2178
        %v2273 = vpop.permute.xlu0 %2272
        %2276 = vset.pattern.permute.xlu0 0
        %2277 = vperm.xlu0 %2276, %v2179
        %v2278 = vpop.permute.xlu0 %2277
        %2281 = vset.pattern.permute.xlu0 0
        %2282 = vperm.xlu0 %2281, %v2180
        %v2283 = vpop.permute.xlu0 %2282
        %v2285 = vmul.f32 %v2268, %v2189
        %v2286 = vmul.f32 %v2273, %v2190
        %v2287 = vmul.f32 %v2278, %v2191
        %v2288 = vmul.f32 %v2283, %v2192
        %2293 = vrot.lane.b32.xlu0 %v2285, 126
        %v2294 = vpop.permute.xlu0 %2293
        %2295 = vrot.lane.b32.xlu0 %v2286, 126
        %v2296 = vpop.permute.xlu0 %2295
        %2297 = vrot.lane.b32.xlu0 %v2287, 126
        %v2298 = vpop.permute.xlu0 %2297
        %2299 = vrot.lane.b32.xlu0 %v2288, 126
        %v2300 = vpop.permute.xlu0 %2299
        %v2305 = vadd.f32 %v2261, %v2294
        %v2306 = vadd.f32 %v2262, %v2296
        %v2307 = vadd.f32 %v2263, %v2298
        %v2308 = vadd.f32 %v2264, %v2300
        %2310 = vset.pattern.permute.xlu0 0
        %2311 = vperm.xlu0 %2310, %v2181
        %v2312 = vpop.permute.xlu0 %2311
        %2315 = vset.pattern.permute.xlu0 0
        %2316 = vperm.xlu0 %2315, %v2182
        %v2317 = vpop.permute.xlu0 %2316
        %2320 = vset.pattern.permute.xlu0 0
        %2321 = vperm.xlu0 %2320, %v2183
        %v2322 = vpop.permute.xlu0 %2321
        %2325 = vset.pattern.permute.xlu0 0
        %2326 = vperm.xlu0 %2325, %v2184
        %v2327 = vpop.permute.xlu0 %2326
        %v2329 = vmul.f32 %v2312, %v2189
        %v2330 = vmul.f32 %v2317, %v2190
        %v2331 = vmul.f32 %v2322, %v2191
        %v2332 = vmul.f32 %v2327, %v2192
        %2337 = vrot.lane.b32.xlu0 %v2329, 125
        %v2338 = vpop.permute.xlu0 %2337
        %2339 = vrot.lane.b32.xlu0 %v2330, 125
        %v2340 = vpop.permute.xlu0 %2339
        %2341 = vrot.lane.b32.xlu0 %v2331, 125
        %v2342 = vpop.permute.xlu0 %2341
        %2343 = vrot.lane.b32.xlu0 %v2332, 125
        %v2344 = vpop.permute.xlu0 %2343
        %v2349 = vadd.f32 %v2305, %v2338
        %v2350 = vadd.f32 %v2306, %v2340
        %v2351 = vadd.f32 %v2307, %v2342
        %v2352 = vadd.f32 %v2308, %v2344
        %2354 = vset.pattern.permute.xlu0 0
        %2355 = vperm.xlu0 %2354, %v2185
        %v2356 = vpop.permute.xlu0 %2355
        %2359 = vset.pattern.permute.xlu0 0
        %2360 = vperm.xlu0 %2359, %v2186
        %v2361 = vpop.permute.xlu0 %2360
        %2364 = vset.pattern.permute.xlu0 0
        %2365 = vperm.xlu0 %2364, %v2187
        %v2366 = vpop.permute.xlu0 %2365
        %2369 = vset.pattern.permute.xlu0 0
        %2370 = vperm.xlu0 %2369, %v2188
        %v2371 = vpop.permute.xlu0 %2370
        %v2373 = vmul.f32 %v2356, %v2189
        %v2374 = vmul.f32 %v2361, %v2190
        %v2375 = vmul.f32 %v2366, %v2191
        %v2376 = vmul.f32 %v2371, %v2192
        %2381 = vrot.lane.b32.xlu0 %v2373, 124
        %v2382 = vpop.permute.xlu0 %2381
        %2383 = vrot.lane.b32.xlu0 %v2374, 124
        %v2384 = vpop.permute.xlu0 %2383
        %2385 = vrot.lane.b32.xlu0 %v2375, 124
        %v2386 = vpop.permute.xlu0 %2385
        %2387 = vrot.lane.b32.xlu0 %v2376, 124
        %v2388 = vpop.permute.xlu0 %2387
        %v2393 = vadd.f32 %v2349, %v2382
        %v2394 = vadd.f32 %v2350, %v2384
        %v2395 = vadd.f32 %v2351, %v2386
        %v2396 = vadd.f32 %v2352, %v2388
        %s2397 = scalar_lea.vmem %s7, 96
        %v2398 = vld [vmem:[%s2397] sm:$0xff]
        %v2399 = vld [vmem:[%s2397 + $0x8] sm:$0xff]
        %v2400 = vld [vmem:[%s2397 + $0x10] sm:$0xff]
        %v2401 = vld [vmem:[%s2397 + $0x18] sm:$0xff]
        %2403 = vset.pattern.permute.xlu0 0
        %2404 = vperm.xlu0 %2403, %v2398
        %v2405 = vpop.permute.xlu0 %2404
        %2408 = vset.pattern.permute.xlu0 0
        %2409 = vperm.xlu0 %2408, %v2399
        %v2410 = vpop.permute.xlu0 %2409
        %2413 = vset.pattern.permute.xlu0 0
        %2414 = vperm.xlu0 %2413, %v2400
        %v2415 = vpop.permute.xlu0 %2414
        %2418 = vset.pattern.permute.xlu0 0
        %2419 = vperm.xlu0 %2418, %v2401
        %v2420 = vpop.permute.xlu0 %2419
        %v2423 = vsel %vm2035, %v2393, 0
        %v2426 = vsel %vm2035, %v2394, 0
        %v2429 = vsel %vm2035, %v2395, 0
        %v2432 = vsel %vm2035, %v2396, 0
        %2434 = vmatpush.msra.mxu0 0.0
        %2435 = vmatpush.msra.mxu0 0.0
        %2436 = vmatpush.msra.mxu0 0.0
        %2437 = vmatpush.msra.mxu0 0.0
        %2438 = vmatpush.msra.mxu0 0.0
        %2439 = vmatpush.msra.mxu0 0.0
        %2440 = vmatpush.msra.mxu0 0.0
        %2441 = vmatpush.msra.mxu0 0.0
        %2442 = vmatpush.msra.mxu0 0.0
        %2443 = vmatpush.msra.mxu0 0.0
        %2444 = vmatpush.msra.mxu0 0.0
        %2445 = vmatpush.msra.mxu0 0.0
        %2446 = vmatpush.msra.mxu0 0.0
        %2447 = vmatpush.msra.mxu0 0.0
        %2448 = vmatpush.msra.mxu0 0.0
        %2449 = vmatpush.msra.mxu0 %v1518
        %2450 = vmatmul.f32.gmra.mxu0 %v2423
        %v2451 = vpop.f32.mrf.mxu0
        %v2452 = vadd.f32 %v2405, %v2451
        %2453 = vmatmul.f32.gmra.mxu0 %v2426
        %v2454 = vpop.f32.mrf.mxu0
        %v2455 = vadd.f32 %v2410, %v2454
        %2456 = vmatmul.f32.gmra.mxu0 %v2429
        %v2457 = vpop.f32.mrf.mxu0
        %v2458 = vadd.f32 %v2415, %v2457
        %2459 = vmatmul.f32.gmra.mxu0 %v2432
        %v2460 = vpop.f32.mrf.mxu0
        %v2461 = vadd.f32 %v2420, %v2460
        %2462 = vdwg.mxu0
        %s2463 = scalar_lea.vmem %s8, 96
        %v2464 = vld [vmem:[%s2463] sm:$0xff]
        %v2465 = vld [vmem:[%s2463 + $0x8] sm:$0xff]
        %v2466 = vld [vmem:[%s2463 + $0x10] sm:$0xff]
        %v2467 = vld [vmem:[%s2463 + $0x18] sm:$0xff]
        %s2468 = scalar_lea.vmem %s9, 96
        %v2469 = vld [vmem:[%s2468] sm:$0xff]
        %v2470 = vld [vmem:[%s2468 + $0x8] sm:$0xff]
        %v2471 = vld [vmem:[%s2468 + $0x10] sm:$0xff]
        %v2472 = vld [vmem:[%s2468 + $0x18] sm:$0xff]
        %vm2473 = vcmask 31744
        %v2474 = vsel %vm2473, %v2452, 0.0
        %v2475 = vsel %vm2473, %v2455, 0.0
        %v2476 = vadd.f32 %v2474, %v2475
        %v2477 = vsel %vm2473, %v2458, 0.0
        %v2478 = vadd.f32 %v2476, %v2477
        %v2479 = vsel %vm2473, %v2461, 0.0
        %v2480 = vadd.f32 %v2478, %v2479
        %2481 = vadd.xlane.f32.xlu0 %v2480
        %v2482 = vpop.xlane.xlu0 %2481
        %v2483 = vrot.slane %v2482, 4
        %v2484 = vadd.f32 %v2482, %v2483
        %v2485 = vrot.slane %v2484, 2
        %v2486 = vadd.f32 %v2484, %v2485
        %v2487 = vrot.slane %v2486, 1
        %v2488 = vadd.f32 %v2486, %v2487
        %s2489 = vtos %v2488
        %v2490 = vstv %s2489
        %v2491 = vmul.f32 %v2490, 0.0078125
        %v2492 = vsub.f32 %v2452, %v2491
        %v2493 = vsub.f32 %v2455, %v2491
        %v2494 = vsub.f32 %v2458, %v2491
        %v2495 = vsub.f32 %v2461, %v2491
        %v2496 = vmul.f32 %v2492, %v2492
        %v2497 = vmul.f32 %v2493, %v2493
        %v2498 = vmul.f32 %v2494, %v2494
        %v2499 = vmul.f32 %v2495, %v2495
        %v2500 = vsel %vm2473, %v2496, 0.0
        %v2501 = vsel %vm2473, %v2497, 0.0
        %v2502 = vadd.f32 %v2500, %v2501
        %v2503 = vsel %vm2473, %v2498, 0.0
        %v2504 = vadd.f32 %v2502, %v2503
        %v2505 = vsel %vm2473, %v2499, 0.0
        %v2506 = vadd.f32 %v2504, %v2505
        %2507 = vadd.xlane.f32.xlu0 %v2506
        %v2508 = vpop.xlane.xlu0 %2507
        %v2509 = vrot.slane %v2508, 4
        %v2510 = vadd.f32 %v2508, %v2509
        %v2511 = vrot.slane %v2510, 2
        %v2512 = vadd.f32 %v2510, %v2511
        %v2513 = vrot.slane %v2512, 1
        %v2514 = vadd.f32 %v2512, %v2513
        %s2515 = vtos %v2514
        %v2516 = vstv %s2515
        %v2517 = vmul.f32 %v2516, 0.0078125
        %v2518 = vadd.f32 %v2517, 1e-08
        %v2519 = vrsqrt.pop %v2518
        %v2520 = vmul.f32 %v2519, %v2518
        %v2521 = vmul.f32 %v2520, %v2519
        %v2522 = vmul.f32 0.5, %v2521
        %v2523 = vsub.f32 1.5, %v2522
        %v2524 = vmul.f32 %v2519, %v2523
        %vm2525 = vweird.f32 %v2518
        %vm2526 = vweird.f32 %v2519
        %vm2527 = vmor %vm2525, %vm2526
        %v2528 = vsel %vm2527, %v2519, %v2524
        %v2529 = vmul.f32 %v2492, %v2528
        %v2530 = vmul.f32 %v2493, %v2528
        %v2531 = vmul.f32 %v2494, %v2528
        %v2532 = vmul.f32 %v2495, %v2528
        %2534 = vset.pattern.permute.xlu0 0
        %2535 = vperm.xlu0 %2534, %v2464
        %v2536 = vpop.permute.xlu0 %2535
        %2539 = vset.pattern.permute.xlu0 0
        %2540 = vperm.xlu0 %2539, %v2465
        %v2541 = vpop.permute.xlu0 %2540
        %2544 = vset.pattern.permute.xlu0 0
        %2545 = vperm.xlu0 %2544, %v2466
        %v2546 = vpop.permute.xlu0 %2545
        %2549 = vset.pattern.permute.xlu0 0
        %2550 = vperm.xlu0 %2549, %v2467
        %v2551 = vpop.permute.xlu0 %2550
        %v2553 = vmul.f32 %v2529, %v2536
        %v2554 = vmul.f32 %v2530, %v2541
        %v2555 = vmul.f32 %v2531, %v2546
        %v2556 = vmul.f32 %v2532, %v2551
        %2558 = vset.pattern.permute.xlu0 0
        %2559 = vperm.xlu0 %2558, %v2469
        %v2560 = vpop.permute.xlu0 %2559
        %2563 = vset.pattern.permute.xlu0 0
        %2564 = vperm.xlu0 %2563, %v2470
        %v2565 = vpop.permute.xlu0 %2564
        %2568 = vset.pattern.permute.xlu0 0
        %2569 = vperm.xlu0 %2568, %v2471
        %v2570 = vpop.permute.xlu0 %2569
        %2573 = vset.pattern.permute.xlu0 0
        %2574 = vperm.xlu0 %2573, %v2472
        %v2575 = vpop.permute.xlu0 %2574
        %v2577 = vadd.f32 %v2553, %v2560
        %v2578 = vadd.f32 %v2554, %v2565
        %v2579 = vadd.f32 %v2555, %v2570
        %v2580 = vadd.f32 %v2556, %v2575
        %v2581 = vmul.u32 %v1503, 2
        %vm2582 = vcmp.eq.s32.totalorder %v1508, %v2581
        %v2583 = vadd.s32 %v2581, 1
        %vm2584 = vcmp.eq.s32.totalorder %v1508, %v2583
        %vm2585 = vmor %vm2582, %vm2584
        %v2586 = vsel %vm2585, 1, 0
        %v2587 = vcvt.s32.f32 %v2586
        %v2589 = vsel %vm2473, %v2577, 0
        %v2592 = vsel %vm2473, %v2578, 0
        %v2595 = vsel %vm2473, %v2579, 0
        %v2598 = vsel %vm2473, %v2580, 0
        %vm2600 = vcmask 1043456
        %v2602 = vsel %vm2600, %v2587, 0
        %2604 = vmatpush.msra.mxu0 0.0
        %2605 = vmatpush.msra.mxu0 0.0
        %2606 = vmatpush.msra.mxu0 0.0
        %2607 = vmatpush.msra.mxu0 0.0
        %2608 = vmatpush.msra.mxu0 0.0
        %2609 = vmatpush.msra.mxu0 0.0
        %2610 = vmatpush.msra.mxu0 0.0
        %2611 = vmatpush.msra.mxu0 0.0
        %2612 = vmatpush.msra.mxu0 0.0
        %2613 = vmatpush.msra.mxu0 0.0
        %2614 = vmatpush.msra.mxu0 0.0
        %2615 = vmatpush.msra.mxu0 0.0
        %2616 = vmatpush.msra.mxu0 0.0
        %2617 = vmatpush.msra.mxu0 0.0
        %2618 = vmatpush.msra.mxu0 0.0
        %2619 = vmatpush.msra.mxu0 %v2602
        %2620 = vmatmul.f32.gmra.mxu0 %v2589
        %v2621 = vpop.f32.mrf.mxu0
        %v2622 = vadd.f32 0.0, %v2621
        %2623 = vmatmul.f32.gmra.mxu0 %v2592
        %v2624 = vpop.f32.mrf.mxu0
        %v2625 = vadd.f32 0.0, %v2624
        %2626 = vmatmul.f32.gmra.mxu0 %v2595
        %v2627 = vpop.f32.mrf.mxu0
        %v2628 = vadd.f32 0.0, %v2627
        %2629 = vmatmul.f32.gmra.mxu0 %v2598
        %v2630 = vpop.f32.mrf.mxu0
        %v2631 = vadd.f32 0.0, %v2630
        %2632 = vdwg.mxu0
        %v2633 = vadd.f32 %v2139, %v2622
        %v2634 = vadd.f32 %v2140, %v2625
        %v2635 = vadd.f32 %v2141, %v2628
        %v2636 = vadd.f32 %v2142, %v2631
        %v2638 = vsel %vm2035, %v2633, 0
        %v2641 = vsel %vm2035, %v2634, 0
        %v2644 = vsel %vm2035, %v2635, 0
        %v2647 = vsel %vm2035, %v2636, 0
        %2649 = vmatpush.msra.mxu0 0.0
        %2650 = vmatpush.msra.mxu0 0.0
        %2651 = vmatpush.msra.mxu0 0.0
        %2652 = vmatpush.msra.mxu0 0.0
        %2653 = vmatpush.msra.mxu0 0.0
        %2654 = vmatpush.msra.mxu0 0.0
        %2655 = vmatpush.msra.mxu0 0.0
        %2656 = vmatpush.msra.mxu0 0.0
        %2657 = vmatpush.msra.mxu0 0.0
        %2658 = vmatpush.msra.mxu0 0.0
        %2659 = vmatpush.msra.mxu0 0.0
        %2660 = vmatpush.msra.mxu0 0.0
        %2661 = vmatpush.msra.mxu0 0.0
        %2662 = vmatpush.msra.mxu0 0.0
        %2663 = vmatpush.msra.mxu0 0.0
        %2664 = vmatpush.msra.mxu0 %v2587
        %2665 = vmatmul.f32.gmra.mxu0 %v2638
        %v2666 = vpop.f32.mrf.mxu0
        %v2667 = vadd.f32 0.0, %v2666
        %2668 = vmatmul.f32.gmra.mxu0 %v2641
        %v2669 = vpop.f32.mrf.mxu0
        %v2670 = vadd.f32 0.0, %v2669
        %2671 = vmatmul.f32.gmra.mxu0 %v2644
        %v2672 = vpop.f32.mrf.mxu0
        %v2673 = vadd.f32 0.0, %v2672
        %2674 = vmatmul.f32.gmra.mxu0 %v2647
        %v2675 = vpop.f32.mrf.mxu0
        %v2676 = vadd.f32 0.0, %v2675
        %2677 = vdwg.mxu0
        %v2678 = vadd.f32 %v1701, %v2667
        %v2679 = vadd.f32 %v1702, %v2670
        %v2680 = vadd.f32 %v1703, %v2673
        %v2681 = vadd.f32 %v1704, %v2676
        %v2682 = vmul.u32 %v1504, 2
        %vm2683 = vcmp.eq.s32.totalorder %v1508, %v2682
        %v2684 = vadd.s32 %v2682, 1
        %vm2685 = vcmp.eq.s32.totalorder %v1508, %v2684
        %vm2686 = vmor %vm2683, %vm2685
        %v2687 = vsel %vm2686, 1, 0
        %v2688 = vcvt.s32.f32 %v2687
        %v2690 = vsel %vm658, %v2678, 0
        %v2693 = vsel %vm658, %v2679, 0
        %v2696 = vsel %vm658, %v2680, 0
        %v2699 = vsel %vm658, %v2681, 0
        %2701 = vmatpush.msra.mxu0 0.0
        %2702 = vmatpush.msra.mxu0 0.0
        %2703 = vmatpush.msra.mxu0 0.0
        %2704 = vmatpush.msra.mxu0 0.0
        %2705 = vmatpush.msra.mxu0 0.0
        %2706 = vmatpush.msra.mxu0 0.0
        %2707 = vmatpush.msra.mxu0 0.0
        %2708 = vmatpush.msra.mxu0 0.0
        %2709 = vmatpush.msra.mxu0 0.0
        %2710 = vmatpush.msra.mxu0 0.0
        %2711 = vmatpush.msra.mxu0 0.0
        %2712 = vmatpush.msra.mxu0 0.0
        %2713 = vmatpush.msra.mxu0 0.0
        %2714 = vmatpush.msra.mxu0 0.0
        %2715 = vmatpush.msra.mxu0 %v2688
        %2716 = vmatpush.msra.mxu0 %v2587
        %2717 = vmatmul.f32.gmra.mxu0 %v2690
        %v2718 = vpop.f32.mrf.mxu0
        %v2719 = vadd.f32 0.0, %v2718
        %2720 = vmatmul.f32.gmra.mxu0 %v2693
        %v2721 = vpop.f32.mrf.mxu0
        %v2722 = vadd.f32 0.0, %v2721
        %2723 = vmatmul.f32.gmra.mxu0 %v2696
        %v2724 = vpop.f32.mrf.mxu0
        %v2725 = vadd.f32 0.0, %v2724
        %2726 = vmatmul.f32.gmra.mxu0 %v2699
        %v2727 = vpop.f32.mrf.mxu0
        %v2728 = vadd.f32 0.0, %v2727
        %2729 = vdwg.mxu0
        %v2730 = vadd.f32 %v1245, %v2719
        %v2731 = vadd.f32 %v1246, %v2722
        %v2732 = vadd.f32 %v1247, %v2725
        %v2733 = vadd.f32 %v1248, %v2728
        %v2734 = vld [vmem:[%s10] sm:$0xff]
        %v2735 = vld [vmem:[%s10 + $0x8] sm:$0xff]
        %v2736 = vld [vmem:[%s10 + $0x10] sm:$0xff]
        %v2737 = vld [vmem:[%s10 + $0x18] sm:$0xff]
        %v2738 = vld [vmem:[%s11] sm:$0xff]
        %v2739 = vld [vmem:[%s11 + $0x8] sm:$0xff]
        %v2740 = vld [vmem:[%s11 + $0x10] sm:$0xff]
        %v2741 = vld [vmem:[%s11 + $0x18] sm:$0xff]
        %v2742 = vld [vmem:[%s12] sm:$0xff]
        %v2743 = vld [vmem:[%s12 + $0x8] sm:$0xff]
        %v2744 = vld [vmem:[%s12 + $0x10] sm:$0xff]
        %v2745 = vld [vmem:[%s12 + $0x18] sm:$0xff]
        %v2746 = vsel %vm712, %v2730, 0.0
        %v2747 = vsel %vm712, %v2731, 0.0
        %v2748 = vadd.f32 %v2746, %v2747
        %v2749 = vsel %vm712, %v2732, 0.0
        %v2750 = vadd.f32 %v2748, %v2749
        %v2751 = vsel %vm712, %v2733, 0.0
        %v2752 = vadd.f32 %v2750, %v2751
        %2753 = vadd.xlane.f32.xlu0 %v2752
        %v2754 = vpop.xlane.xlu0 %2753
        %v2755 = vrot.slane %v2754, 4
        %v2756 = vadd.f32 %v2754, %v2755
        %v2757 = vrot.slane %v2756, 2
        %v2758 = vadd.f32 %v2756, %v2757
        %v2759 = vrot.slane %v2758, 1
        %v2760 = vadd.f32 %v2758, %v2759
        %s2761 = vtos %v2760
        %v2762 = vstv %s2761
        %v2763 = vmul.f32 %v2762, 0.0009765625
        %v2764 = vsub.f32 %v2730, %v2763
        %v2765 = vsub.f32 %v2731, %v2763
        %v2766 = vsub.f32 %v2732, %v2763
        %v2767 = vsub.f32 %v2733, %v2763
        %v2768 = vmul.f32 %v2764, %v2764
        %v2769 = vmul.f32 %v2765, %v2765
        %v2770 = vmul.f32 %v2766, %v2766
        %v2771 = vmul.f32 %v2767, %v2767
        %v2772 = vsel %vm712, %v2768, 0.0
        %v2773 = vsel %vm712, %v2769, 0.0
        %v2774 = vadd.f32 %v2772, %v2773
        %v2775 = vsel %vm712, %v2770, 0.0
        %v2776 = vadd.f32 %v2774, %v2775
        %v2777 = vsel %vm712, %v2771, 0.0
        %v2778 = vadd.f32 %v2776, %v2777
        %2779 = vadd.xlane.f32.xlu0 %v2778
        %v2780 = vpop.xlane.xlu0 %2779
        %v2781 = vrot.slane %v2780, 4
        %v2782 = vadd.f32 %v2780, %v2781
        %v2783 = vrot.slane %v2782, 2
        %v2784 = vadd.f32 %v2782, %v2783
        %v2785 = vrot.slane %v2784, 1
        %v2786 = vadd.f32 %v2784, %v2785
        %s2787 = vtos %v2786
        %v2788 = vstv %s2787
        %v2789 = vmul.f32 %v2788, 0.0009765625
        %v2790 = vadd.f32 %v2789, 1e-08
        %v2791 = vrsqrt.pop %v2790
        %v2792 = vmul.f32 %v2791, %v2790
        %v2793 = vmul.f32 %v2792, %v2791
        %v2794 = vmul.f32 0.5, %v2793
        %v2795 = vsub.f32 1.5, %v2794
        %v2796 = vmul.f32 %v2791, %v2795
        %vm2797 = vweird.f32 %v2790
        %vm2798 = vweird.f32 %v2791
        %vm2799 = vmor %vm2797, %vm2798
        %v2800 = vsel %vm2799, %v2791, %v2796
        %v2801 = vmul.f32 %v2764, %v2800
        %v2802 = vmul.f32 %v2765, %v2800
        %v2803 = vmul.f32 %v2766, %v2800
        %v2804 = vmul.f32 %v2767, %v2800
        %2806 = vset.pattern.permute.xlu0 0
        %2807 = vperm.xlu0 %2806, %v2734
        %v2808 = vpop.permute.xlu0 %2807
        %2811 = vset.pattern.permute.xlu0 0
        %2812 = vperm.xlu0 %2811, %v2735
        %v2813 = vpop.permute.xlu0 %2812
        %2816 = vset.pattern.permute.xlu0 0
        %2817 = vperm.xlu0 %2816, %v2736
        %v2818 = vpop.permute.xlu0 %2817
        %2821 = vset.pattern.permute.xlu0 0
        %2822 = vperm.xlu0 %2821, %v2737
        %v2823 = vpop.permute.xlu0 %2822
        %v2825 = vmul.f32 %v2801, %v2808
        %v2826 = vmul.f32 %v2802, %v2813
        %v2827 = vmul.f32 %v2803, %v2818
        %v2828 = vmul.f32 %v2804, %v2823
        %2830 = vset.pattern.permute.xlu0 0
        %2831 = vperm.xlu0 %2830, %v2738
        %v2832 = vpop.permute.xlu0 %2831
        %2835 = vset.pattern.permute.xlu0 0
        %2836 = vperm.xlu0 %2835, %v2739
        %v2837 = vpop.permute.xlu0 %2836
        %2840 = vset.pattern.permute.xlu0 0
        %2841 = vperm.xlu0 %2840, %v2740
        %v2842 = vpop.permute.xlu0 %2841
        %2845 = vset.pattern.permute.xlu0 0
        %2846 = vperm.xlu0 %2845, %v2741
        %v2847 = vpop.permute.xlu0 %2846
        %v2849 = vadd.f32 %v2825, %v2832
        %v2850 = vadd.f32 %v2826, %v2837
        %v2851 = vadd.f32 %v2827, %v2842
        %v2852 = vadd.f32 %v2828, %v2847
        %vm2853 = vcmp.ge.f32.partialorder %v2849, 0.0
        %vm2854 = vcmp.ge.f32.partialorder %v2850, 0.0
        %vm2855 = vcmp.ge.f32.partialorder %v2851, 0.0
        %vm2856 = vcmp.ge.f32.partialorder %v2852, 0.0
        %2858 = vset.pattern.permute.xlu0 0
        %2859 = vperm.xlu0 %2858, %v2742
        %v2860 = vpop.permute.xlu0 %2859
        %2863 = vset.pattern.permute.xlu0 0
        %2864 = vperm.xlu0 %2863, %v2743
        %v2865 = vpop.permute.xlu0 %2864
        %2868 = vset.pattern.permute.xlu0 0
        %2869 = vperm.xlu0 %2868, %v2744
        %v2870 = vpop.permute.xlu0 %2869
        %2873 = vset.pattern.permute.xlu0 0
        %2874 = vperm.xlu0 %2873, %v2745
        %v2875 = vpop.permute.xlu0 %2874
        %v2877 = vmul.f32 %v2860, %v2849
        %v2878 = vmul.f32 %v2865, %v2850
        %v2879 = vmul.f32 %v2870, %v2851
        %v2880 = vmul.f32 %v2875, %v2852
        %v2881 = vsel %vm2853, %v2849, %v2877
        %v2882 = vsel %vm2854, %v2850, %v2878
        %v2883 = vsel %vm2855, %v2851, %v2879
        %v2884 = vsel %vm2856, %v2852, %v2880
        %v2885 = vld [vmem:[%s13] sm:$0xff]
        %v2886 = vld [vmem:[%s13 + $0x8] sm:$0xff]
        %v2887 = vld [vmem:[%s14] sm:$0xff]
        %v2888 = vld [vmem:[%s14 + $0x8] sm:$0xff]
        %2890 = vset.pattern.permute.xlu0 0
        %2891 = vperm.xlu0 %2890, %v2887
        %v2892 = vpop.permute.xlu0 %2891
        %2895 = vset.pattern.permute.xlu0 0
        %2896 = vperm.xlu0 %2895, %v2888
        %v2897 = vpop.permute.xlu0 %2896
        %v2900 = vsel %vm712, %v2885, 0
        %v2903 = vsel %vm712, %v2886, 0
        %2905 = vmatpush.msra.mxu0 0.0
        %2906 = vmatpush.msra.mxu0 0.0
        %2907 = vmatpush.msra.mxu0 0.0
        %2908 = vmatpush.msra.mxu0 0.0
        %2909 = vmatpush.msra.mxu0 0.0
        %2910 = vmatpush.msra.mxu0 0.0
        %2911 = vmatpush.msra.mxu0 0.0
        %2912 = vmatpush.msra.mxu0 0.0
        %2913 = vmatpush.msra.mxu0 0.0
        %2914 = vmatpush.msra.mxu0 0.0
        %2915 = vmatpush.msra.mxu0 0.0
        %2916 = vmatpush.msra.mxu0 0.0
        %2917 = vmatpush.msra.mxu0 %v2884
        %2918 = vmatpush.msra.mxu0 %v2883
        %2919 = vmatpush.msra.mxu0 %v2882
        %2920 = vmatpush.msra.mxu0 %v2881
        %2921 = vmatmul.f32.gmra.mxu0 %v2900
        %v2922 = vpop.f32.mrf.mxu0
        %v2923 = vadd.f32 %v2892, %v2922
        %2924 = vmatmul.f32.gmra.mxu0 %v2903
        %v2925 = vpop.f32.mrf.mxu0
        %v2926 = vadd.f32 %v2897, %v2925
        %2927 = vdwg.mxu0
        %v2928 = vld [vmem:[%s15] sm:$0xff]
        %v2929 = vld [vmem:[%s15 + $0x8] sm:$0xff]
        %v2930 = vld [vmem:[%s16] sm:$0xff]
        %v2931 = vld [vmem:[%s16 + $0x8] sm:$0xff]
        %v2932 = vsel %vm712, %v2923, 0.0
        %v2933 = vsel %vm712, %v2926, 0.0
        %v2934 = vadd.f32 %v2932, %v2933
        %2935 = vadd.xlane.f32.xlu0 %v2934
        %v2936 = vpop.xlane.xlu0 %2935
        %v2937 = vrot.slane %v2936, 4
        %v2938 = vadd.f32 %v2936, %v2937
        %v2939 = vrot.slane %v2938, 2
        %v2940 = vadd.f32 %v2938, %v2939
        %v2941 = vrot.slane %v2940, 1
        %v2942 = vadd.f32 %v2940, %v2941
        %s2943 = vtos %v2942
        %v2944 = vstv %s2943
        %v2945 = vmul.f32 %v2944, 0.001953125
        %v2946 = vsub.f32 %v2923, %v2945
        %v2947 = vsub.f32 %v2926, %v2945
        %v2948 = vmul.f32 %v2946, %v2946
        %v2949 = vmul.f32 %v2947, %v2947
        %v2950 = vsel %vm712, %v2948, 0.0
        %v2951 = vsel %vm712, %v2949, 0.0
        %v2952 = vadd.f32 %v2950, %v2951
        %2953 = vadd.xlane.f32.xlu0 %v2952
        %v2954 = vpop.xlane.xlu0 %2953
        %v2955 = vrot.slane %v2954, 4
        %v2956 = vadd.f32 %v2954, %v2955
        %v2957 = vrot.slane %v2956, 2
        %v2958 = vadd.f32 %v2956, %v2957
        %v2959 = vrot.slane %v2958, 1
        %v2960 = vadd.f32 %v2958, %v2959
        %s2961 = vtos %v2960
        %v2962 = vstv %s2961
        %v2963 = vmul.f32 %v2962, 0.001953125
        %v2964 = vadd.f32 %v2963, 1e-08
        %v2965 = vrsqrt.pop %v2964
        %v2966 = vmul.f32 %v2965, %v2964
        %v2967 = vmul.f32 %v2966, %v2965
        %v2968 = vmul.f32 0.5, %v2967
        %v2969 = vsub.f32 1.5, %v2968
        %v2970 = vmul.f32 %v2965, %v2969
        %vm2971 = vweird.f32 %v2964
        %vm2972 = vweird.f32 %v2965
        %vm2973 = vmor %vm2971, %vm2972
        %v2974 = vsel %vm2973, %v2965, %v2970
        %v2975 = vmul.f32 %v2946, %v2974
        %v2976 = vmul.f32 %v2947, %v2974
        %2978 = vset.pattern.permute.xlu0 0
        %2979 = vperm.xlu0 %2978, %v2928
        %v2980 = vpop.permute.xlu0 %2979
        %2983 = vset.pattern.permute.xlu0 0
        %2984 = vperm.xlu0 %2983, %v2929
        %v2985 = vpop.permute.xlu0 %2984
        %v2987 = vmul.f32 %v2975, %v2980
        %v2988 = vmul.f32 %v2976, %v2985
        %2990 = vset.pattern.permute.xlu0 0
        %2991 = vperm.xlu0 %2990, %v2930
        %v2992 = vpop.permute.xlu0 %2991
        %2995 = vset.pattern.permute.xlu0 0
        %2996 = vperm.xlu0 %2995, %v2931
        %v2997 = vpop.permute.xlu0 %2996
        %v2999 = vadd.f32 %v2987, %v2992
        %v3000 = vadd.f32 %v2988, %v2997
        %v3001 = vadd.f32 %v2999, %v628
        %v3002 = vadd.f32 %v3000, %v629
        %v3003 = vld [vmem:[%s17] sm:$0xff]
        %v3004 = vld [vmem:[%s17 + $0x8] sm:$0xff]
        %v3005 = vld [vmem:[%s18] sm:$0xff]
        %v3006 = vld [vmem:[%s18 + $0x8] sm:$0xff]
        %v3007 = vld [vmem:[%s19] sm:$0xff]
        %v3008 = vld [vmem:[%s19 + $0x8] sm:$0xff]
        %v3009 = vsel %vm712, %v3001, 0.0
        %v3010 = vsel %vm712, %v3002, 0.0
        %v3011 = vadd.f32 %v3009, %v3010
        %3012 = vadd.xlane.f32.xlu0 %v3011
        %v3013 = vpop.xlane.xlu0 %3012
        %v3014 = vrot.slane %v3013, 4
        %v3015 = vadd.f32 %v3013, %v3014
        %v3016 = vrot.slane %v3015, 2
        %v3017 = vadd.f32 %v3015, %v3016
        %v3018 = vrot.slane %v3017, 1
        %v3019 = vadd.f32 %v3017, %v3018
        %s3020 = vtos %v3019
        %v3021 = vstv %s3020
        %v3022 = vmul.f32 %v3021, 0.001953125
        %v3023 = vsub.f32 %v3001, %v3022
        %v3024 = vsub.f32 %v3002, %v3022
        %v3025 = vmul.f32 %v3023, %v3023
        %v3026 = vmul.f32 %v3024, %v3024
        %v3027 = vsel %vm712, %v3025, 0.0
        %v3028 = vsel %vm712, %v3026, 0.0
        %v3029 = vadd.f32 %v3027, %v3028
        %3030 = vadd.xlane.f32.xlu0 %v3029
        %v3031 = vpop.xlane.xlu0 %3030
        %v3032 = vrot.slane %v3031, 4
        %v3033 = vadd.f32 %v3031, %v3032
        %v3034 = vrot.slane %v3033, 2
        %v3035 = vadd.f32 %v3033, %v3034
        %v3036 = vrot.slane %v3035, 1
        %v3037 = vadd.f32 %v3035, %v3036
        %s3038 = vtos %v3037
        %v3039 = vstv %s3038
        %v3040 = vmul.f32 %v3039, 0.001953125
        %v3041 = vadd.f32 %v3040, 1e-08
        %v3042 = vrsqrt.pop %v3041
        %v3043 = vmul.f32 %v3042, %v3041
        %v3044 = vmul.f32 %v3043, %v3042
        %v3045 = vmul.f32 0.5, %v3044
        %v3046 = vsub.f32 1.5, %v3045
        %v3047 = vmul.f32 %v3042, %v3046
        %vm3048 = vweird.f32 %v3041
        %vm3049 = vweird.f32 %v3042
        %vm3050 = vmor %vm3048, %vm3049
        %v3051 = vsel %vm3050, %v3042, %v3047
        %v3052 = vmul.f32 %v3023, %v3051
        %v3053 = vmul.f32 %v3024, %v3051
        %3055 = vset.pattern.permute.xlu0 0
        %3056 = vperm.xlu0 %3055, %v3003
        %v3057 = vpop.permute.xlu0 %3056
        %3060 = vset.pattern.permute.xlu0 0
        %3061 = vperm.xlu0 %3060, %v3004
        %v3062 = vpop.permute.xlu0 %3061
        %v3064 = vmul.f32 %v3052, %v3057
        %v3065 = vmul.f32 %v3053, %v3062
        %3067 = vset.pattern.permute.xlu0 0
        %3068 = vperm.xlu0 %3067, %v3005
        %v3069 = vpop.permute.xlu0 %3068
        %3072 = vset.pattern.permute.xlu0 0
        %3073 = vperm.xlu0 %3072, %v3006
        %v3074 = vpop.permute.xlu0 %3073
        %v3076 = vadd.f32 %v3064, %v3069
        %v3077 = vadd.f32 %v3065, %v3074
        %vm3078 = vcmp.ge.f32.partialorder %v3076, 0.0
        %vm3079 = vcmp.ge.f32.partialorder %v3077, 0.0
        %3081 = vset.pattern.permute.xlu0 0
        %3082 = vperm.xlu0 %3081, %v3007
        %v3083 = vpop.permute.xlu0 %3082
        %3086 = vset.pattern.permute.xlu0 0
        %3087 = vperm.xlu0 %3086, %v3008
        %v3088 = vpop.permute.xlu0 %3087
        %v3090 = vmul.f32 %v3083, %v3076
        %v3091 = vmul.f32 %v3088, %v3077
        %v3092 = vsel %vm3078, %v3076, %v3090
        %v3093 = vsel %vm3079, %v3077, %v3091
        %3094 = vst.msk [vmem:[%s622] sm:$0xff] %vm712, %v3092
        %3095 = vst.msk [vmem:[%s622 + $0x8] sm:$0xff] %vm712, %v3093
        %s3096 = sand.u32 %s467, 1
        %s3097 = scalar_lea.sflag [#allocation4], %s3096
        %s3098 = sand.u32 %s467, 1
        %s3099 = smul.addr %s3098, 16
        %s3100 = scalar_lea.vmem [#allocation3], %s3099
        // Predicated region
        $region101: #{block_forward.1} parent=99 // pred_check
          %p3101 = pneg %p477
        $region102: #{block_forward.1} parent=99 // pred_check_branch
          %3103 = sbr.rel (%p3101) target = $region104
        $region103: #{block_forward.1} parent=99 // pred_region
          %3105 = vsyncadd %s3097, 0
          %s3106 = smul.addr %s34, 2
          %s3107 = smul.addr %s3106, 8
          %s3108 = scalar_lea.hbm %s20, %s3107
          %s3109 = sshll.u32 %s3100, 4
          %s3110 = int_to_ptr.vmem [resolvable:$true] %s3109
          %s3111 = sshll.u32 %s3108, 4
          %s3112 = int_to_ptr.hbm [resolvable:$true] %s3111
          %3117 = dma.vmem_to_hbm [thread:$0]  %s3110, 256, %s3112, %s3097, 128, 128, 8
        $region104: #{block_forward.1} parent=99 // pred_fallthru
          _
      $region100: #{block_forward.1} parent=5 // pred_fallthru
        _
      %p3118 = scmp.le.s32.totalorder 2, %s29
      // Predicated region
      $region105: #{block_forward.1} parent=5 // pred_check
        %p3119 = pneg %p3118
      $region106: #{block_forward.1} parent=5 // pred_check_branch
        %3121 = sbr.rel (%p3119) target = $region108
      $region107: #{block_forward.1} parent=5 // pred_region
        %s3122 = ssub.s32 %s29, 2
        // Predicated region
        $region109: #{block_forward.1} parent=107 // pred_check
          %p3123 = pneg %p483
        $region110: #{block_forward.1} parent=107 // pred_check_branch
          %3125 = sbr.rel (%p3123) target = $region112
        $region111: #{block_forward.1} parent=107 // pred_region
          %s3126 = sand.u32 %s468, 1
          %s3127 = scalar_lea.sflag [#allocation4], %s3126
          %s3128 = sand.u32 %s468, 1
          %s3129 = smul.addr %s3128, 16
          %s3130 = scalar_lea.vmem [#allocation3], %s3129
          %3132 = dma.done %s3127, 256
        $region112: #{block_forward.1} parent=107 // pred_fallthru
          _
      $region108: #{block_forward.1} parent=5 // pred_fallthru
        _
    $region6: #{block_forward.1} parent=1 // loop_footer
      %s33 = sadd.s32 1, %s29
    $region7: #{block_forward.1} parent=1 // loop_footer_branch
      %28 = sbr.rel target = $region3
    $region8: #{block_forward.1} parent=1 // loop_exit
      _
    %3133 = vsyncpa [#allocation4], 1
    %s3134 = scalar_lea.sflag [#allocation4], 1
    %3135 = vsyncpa %s3134, 1

</llo_original>
